<compile_context>
chip_gen: v7x
topology: tpu7x:2x2x1
jax: 0.10.0
libtpu: 0.0.40
codegen_flags: <defaults>
</compile_context>

<pallas_src>
import functools

import numpy as np
import jax
import jax.numpy as jnp
from jax.experimental import pallas as pl
from jax.experimental.pallas import tpu as pltpu


def _round_up(v, m):
    return ((v + m - 1) // m) * m


# ----------------------------------------------------------------------------
# Pallas kernel: fused BasicBlock, one padded image per grid step
# ----------------------------------------------------------------------------
def _basic_block_kernel(xp_ref, cmask_ref, w1_ref, b1_ref, w2_ref, b2_ref,
                        o_ref, hp_ref, *, H, Wp, ident):
    """xp_ref   : (Hp*Wp, Cin_p)  bf16   zero-padded image slab (Hp = H+4)
       cmask_ref: (H*Wp, 1)       f32    1 at real columns, 0 at padded columns
       w*_ref   : (3, 3*C, C')    bf16   folded conv+BN weights, kw stacked on K
       b*_ref   : (1, C')         f32    folded BN biases
       o_ref    : (H*Wp, Cout_p)  f32    output (real rows, padded columns)
       hp_ref   : (Hp*Wp, Cmid_p) bf16   VMEM scratch for the intermediate."""
    Mq = H * Wp                 # rows of real output (all Wp columns per row)
    base = 2 * Wp               # first real row inside a padded image slab
    Cmid_p = hp_ref.shape[-1]

    def conv3x3(src_ref, w_ref):
        cin = src_ref.shape[-1]
        acc = None
        if cin % 128 == 0:
            # im2col along lanes: 3 matmuls with K = 3*cin (one per kernel row).
            for kh in range(3):
                s = (kh + 1) * Wp
                rows = jnp.concatenate(
                    [src_ref[s - 1 + kw: s - 1 + kw + Mq, :] for kw in range(3)],
                    axis=-1)                                    # (Mq, 3*cin)
                part = jnp.dot(rows, w_ref[kh],
                               preferred_element_type=jnp.float32)
                acc = part if acc is None else acc + part
        else:
            # 9 shifted-slab matmuls with K = cin (v5e / non-128 channel case).
            for kh in range(3):
                s = (kh + 1) * Wp
                for kw in range(3):
                    rows = src_ref[s - 1 + kw: s - 1 + kw + Mq, :]
                    part = jnp.dot(rows, w_ref[kh, kw * cin:(kw + 1) * cin, :],
                                   preferred_element_type=jnp.float32)
                    acc = part if acc is None else acc + part
        return acc

    # conv1 + folded BN1 + ReLU; re-zero padded columns so conv2 taps are clean.
    h = jnp.maximum(conv3x3(xp_ref, w1_ref) + b1_ref[...], 0.0)
    h = h * cmask_ref[...]

    # Genuine halo rows of the scratch must be zero every step: the scratch
    # persists across grid steps *and* across TensorCores when the grid axis is
    # sharded ("parallel"), so a pl.when(first-step) init would be unsafe.
    hp_ref[Wp:2 * Wp, :] = jnp.zeros((Wp, Cmid_p), hp_ref.dtype)
    hp_ref[(H + 2) * Wp:(H + 3) * Wp, :] = jnp.zeros((Wp, Cmid_p), hp_ref.dtype)
    hp_ref[base:base + Mq, :] = h.astype(hp_ref.dtype)

    # conv2 + folded BN2 (+ identity residual) + ReLU.
    y = conv3x3(hp_ref, w2_ref) + b2_ref[...]
    if ident:
        y = y + xp_ref[base:base + Mq, :].astype(jnp.float32)
    o_ref[...] = jnp.maximum(y, 0.0)


# ----------------------------------------------------------------------------
# Wrapper
# ----------------------------------------------------------------------------
def basic_block(x_nchw, params, *, ident):
    B, Cin, H, W = x_nchw.shape
    w1, b1, w2, b2 = params["w1"], params["b1"], params["w2"], params["b2"]
    Cmid, Cout = w1.shape[-1], w2.shape[-1]
    if ident:
        assert Cin == Cout, "identity residual requires matching channels"

    # Lane-dense channel padding; Cin padded only when the residual needs it.
    Cout_p = _round_up(Cout, 128)
    Cmid_p = _round_up(Cmid, 128)
    Cin_p = Cout_p if ident else Cin

    Wp = _round_up(W + 2, 16)   # padded row pitch; real columns live at 1..W
    Hp = H + 4                  # 1 genuine halo + 1 spill-guard row each side
    Mq = H * Wp                 # rows of output per image (padded columns kept)

    # NCHW -> NHWC -> zero-padded (B, Hp, Wp, Cin_p) -> flattened bf16 slab.
    x = jnp.transpose(x_nchw, (0, 2, 3, 1)).astype(jnp.bfloat16)
    xp = jnp.pad(x, ((0, 0), (2, 2), (1, Wp - W - 1), (0, Cin_p - Cin)))
    xp = xp.reshape(B * Hp * Wp, Cin_p)

    # Pack folded weights: (3,3,Ci,Co) -> (3, 3*Ci_p, Co_p) bf16, kw stacked on K.
    def pack_w(w, ci_p, co_p):
        ci, co = w.shape[2], w.shape[3]
        w = jnp.pad(w, ((0, 0), (0, 0), (0, ci_p - ci), (0, co_p - co)))
        return w.reshape(3, 3 * ci_p, co_p).astype(jnp.bfloat16)

    w1p = pack_w(w1, Cin_p, Cmid_p)
    w2p = pack_w(w2, Cmid_p, Cout_p)
    b1p = jnp.pad(b1, ((0, 0), (0, Cmid_p - Cmid))).astype(jnp.float32)
    b2p = jnp.pad(b2, ((0, 0), (0, Cout_p - Cout))).astype(jnp.float32)

    # (Mq, 1) f32 mask of real columns; identical for every image (VMEM-resident).
    col = np.arange(Wp)
    row_mask = ((col >= 1) & (col <= W)).astype(np.float32)
    cmask = jnp.asarray(np.tile(row_mask, H)[:, None])

    # VMEM budget: double-buffered input/output tiles + resident weights + scratch.
    bytes_in = Hp * Wp * Cin_p * 2
    bytes_out = Mq * Cout_p * 4
    bytes_w = (9 * Cin_p * Cmid_p + 9 * Cmid_p * Cout_p) * 2 \
        + (Cmid_p + Cout_p) * 4 + Mq * 4
    bytes_scr = Hp * Wp * Cmid_p * 2
    est = 2 * (bytes_in + bytes_out) + bytes_w + bytes_scr
    vmem_limit = int(min(64 * 1024 * 1024, max(16 * 1024 * 1024, 2 * est)))

    kernel = functools.partial(_basic_block_kernel, H=H, Wp=Wp, ident=ident)
    y = pl.pallas_call(
        kernel,
        grid=(B,),
        in_specs=[
            pl.BlockSpec((Hp * Wp, Cin_p), lambda i: (i, 0)),
            pl.BlockSpec((Mq, 1), lambda i: (0, 0)),
            pl.BlockSpec((3, 3 * Cin_p, Cmid_p), lambda i: (0, 0, 0)),
            pl.BlockSpec((1, Cmid_p), lambda i: (0, 0)),
            pl.BlockSpec((3, 3 * Cmid_p, Cout_p), lambda i: (0, 0, 0)),
            pl.BlockSpec((1, Cout_p), lambda i: (0, 0)),
        ],
        out_specs=pl.BlockSpec((Mq, Cout_p), lambda i: (i, 0)),
        out_shape=jax.ShapeDtypeStruct((B * Mq, Cout_p), jnp.float32),
        scratch_shapes=[pltpu.VMEM((Hp * Wp, Cmid_p), jnp.bfloat16)],
        compiler_params=pltpu.CompilerParams(
            dimension_semantics=("parallel",),
            vmem_limit_bytes=vmem_limit),
    )(xp, cmask, w1p, b1p, w2p, b2p)

    # Drop padded columns / padded channels, back to NCHW.
    y = y.reshape(B, H, Wp, Cout_p)[:, :, 1:1 + W, :Cout]
    return jnp.transpose(y, (0, 3, 1, 2))


# ----------------------------------------------------------------------------
# Parameters (deterministic; eval-mode BatchNorm folded into conv weights)
# ----------------------------------------------------------------------------
def init_block_params(key, inplanes, planes, eps=1e-5):
    ks = jax.random.split(key, 10)

    def nrm(k, shape, s=0.05):
        return jax.random.normal(k, shape, jnp.float32) * s

    def bn(k0, k1, k2, k3, c):
        gamma = jax.random.uniform(k0, (c,), jnp.float32, 0.5, 1.5)
        beta = nrm(k1, (c,), 0.1)
        mean = nrm(k2, (c,), 0.1)
        var = jax.random.uniform(k3, (c,), jnp.float32, 0.5, 1.5)
        return gamma, beta, mean, var

    w1 = nrm(ks[0], (3, 3, inplanes, planes))       # HWIO
    w2 = nrm(ks[1], (3, 3, planes, planes))
    g1, be1, m1, v1 = bn(ks[2], ks[3], ks[4], ks[5], planes)
    g2, be2, m2, v2 = bn(ks[6], ks[7], ks[8], ks[9], planes)
    s1 = g1 / jnp.sqrt(v1 + eps)
    s2 = g2 / jnp.sqrt(v2 + eps)
    return dict(w1=w1 * s1, b1=(be1 - m1 * s1)[None, :],
                w2=w2 * s2, b2=(be2 - m2 * s2)[None, :])


# ----------------------------------------------------------------------------
# Pure-JAX reference (same bf16 operand rounding, f32 accumulation)
# ----------------------------------------------------------------------------
def reference_basic_block(x_nchw, params, ident):
    B, Cin, H, W = x_nchw.shape
    x = jnp.transpose(x_nchw, (0, 2, 3, 1)).astype(jnp.bfloat16).astype(jnp.float32)
    w1 = params["w1"].astype(jnp.bfloat16).astype(jnp.float32)
    w2 = params["w2"].astype(jnp.bfloat16).astype(jnp.float32)

    def conv(inp, w):
        xp = jnp.pad(inp, ((0, 0), (1, 1), (1, 1), (0, 0)))
        out = jnp.zeros(inp.shape[:3] + (w.shape[-1],), jnp.float32)
        for kh in range(3):
            for kw in range(3):
                out = out + jnp.einsum(
                    "bhwc,cd->bhwd", xp[:, kh:kh + H, kw:kw + W, :], w[kh, kw],
                    precision=jax.lax.Precision.HIGHEST)
        return out

    h = jnp.maximum(conv(x, w1) + params["b1"][0], 0.0)
    h = h.astype(jnp.bfloat16).astype(jnp.float32)     # kernel stages h in bf16
    y = conv(h, w2) + params["b2"][0]
    if ident:
        y = y + x
    return jnp.transpose(jnp.maximum(y, 0.0), (0, 3, 1, 2))


# ----------------------------------------------------------------------------
if __name__ == "__main__":
    key = jax.random.PRNGKey(0)
    kx, kp1, kp2 = jax.random.split(key, 3)

    # identity block (inplanes == planes, residual add)
    B, C, H, W = 2, 128, 8, 8
    x = jax.random.normal(kx, (B, C, H, W), jnp.float32)
    params_id = init_block_params(kp1, C, C)
    fwd_id = jax.jit(functools.partial(basic_block, ident=True))
    y_id = jax.block_until_ready(fwd_id(x, params_id))
    assert y_id.shape == (B, C, H, W)
    ref_id = reference_basic_block(x, params_id, True)
    assert bool(jnp.allclose(y_id, ref_id, atol=2e-2, rtol=2e-2)), \
        float(jnp.max(jnp.abs(y_id - ref_id)))

    # non-identity block (channel expansion, no residual)
    Cin2 = 64
    x2 = jax.random.normal(kx, (B, Cin2, H, W), jnp.float32)
    params_ni = init_block_params(kp2, Cin2, C)
    fwd_ni = jax.jit(functools.partial(basic_block, ident=False))
    y_ni = jax.block_until_ready(fwd_ni(x2, params_ni))
    assert y_ni.shape == (B, C, H, W)
    ref_ni = reference_basic_block(x2, params_ni, False)
    assert bool(jnp.allclose(y_ni, ref_ni, atol=2e-2, rtol=2e-2)), \
        float(jnp.max(jnp.abs(y_ni - ref_ni)))

    print("KERNEL_OK")
</pallas_src>

<mosaic_0001>
module attributes {stable_mosaic.version = 11 : i64} {
  func.func @_basic_block_kernel(%arg0: i32, %arg1: memref<192x128xbf16, #tpu.memory_space<vmem>>, %arg2: memref<128x1xf32, #tpu.memory_space<vmem>>, %arg3: memref<3x384x128xbf16, #tpu.memory_space<vmem>>, %arg4: memref<1x128xf32, #tpu.memory_space<vmem>>, %arg5: memref<3x384x128xbf16, #tpu.memory_space<vmem>>, %arg6: memref<1x128xf32, #tpu.memory_space<vmem>>, %arg7: memref<128x128xf32, #tpu.memory_space<vmem>>, %arg8: memref<192x128xbf16, #tpu.memory_space<vmem>>) attributes {dimension_semantics = [#tpu.dimension_semantics<parallel>], iteration_bounds = array<i64: 2>, scalar_prefetch = 0 : i64, scratch_operands = 1 : i64, tpu.core_type = #tpu.core_type<tc>, window_params = [{transform_indices = @transform_0, window_bounds = array<i64: 192, 128>}, {pipeline_mode = #tpu.pipeline_mode<synchronous>, transform_indices = @transform_1, window_bounds = array<i64: 128, 1>}, {pipeline_mode = #tpu.pipeline_mode<synchronous>, transform_indices = @transform_2, window_bounds = array<i64: 3, 384, 128>}, {pipeline_mode = #tpu.pipeline_mode<synchronous>, transform_indices = @transform_3, window_bounds = array<i64: 1, 128>}, {pipeline_mode = #tpu.pipeline_mode<synchronous>, transform_indices = @transform_4, window_bounds = array<i64: 3, 384, 128>}, {pipeline_mode = #tpu.pipeline_mode<synchronous>, transform_indices = @transform_5, window_bounds = array<i64: 1, 128>}, {transform_indices = @transform_6, window_bounds = array<i64: 128, 128>}]} {
    %c15 = arith.constant 15 : index
    %c0 = arith.constant 0 : index
    %0 = vector.load %arg1[%c15, %c0] : memref<192x128xbf16, #tpu.memory_space<vmem>>, vector<128x128xbf16>
    %c16 = arith.constant 16 : index
    %c0_0 = arith.constant 0 : index
    %1 = vector.load %arg1[%c16, %c0_0] : memref<192x128xbf16, #tpu.memory_space<vmem>>, vector<128x128xbf16>
    %c17 = arith.constant 17 : index
    %c0_1 = arith.constant 0 : index
    %2 = vector.load %arg1[%c17, %c0_1] : memref<192x128xbf16, #tpu.memory_space<vmem>>, vector<128x128xbf16>
    %3 = tpu.concatenate %0, %1, %2 in 1 : vector<128x128xbf16>, vector<128x128xbf16>, vector<128x128xbf16> -> vector<128x384xbf16>
    %c0_2 = arith.constant 0 : index
    %c0_3 = arith.constant 0 : index
    %c0_4 = arith.constant 0 : index
    %4 = vector.load %arg3[%c0_2, %c0_3, %c0_4] : memref<3x384x128xbf16, #tpu.memory_space<vmem>>, vector<1x384x128xbf16>
    %5 = vector.shape_cast %4 : vector<1x384x128xbf16> to vector<384x128xbf16>
    %cst = arith.constant dense<0.000000e+00> : vector<128x128xf32>
    %6 = tpu.matmul %3, %5, %cst {dimension_numbers = #tpu.dot_dimension_numbers<[1], [0], [0], [1], [0, 0, 1, 1], [], []>} : vector<128x384xbf16>, vector<384x128xbf16>, vector<128x128xf32> -> vector<128x128xf32>
    %c31 = arith.constant 31 : index
    %c0_5 = arith.constant 0 : index
    %7 = vector.load %arg1[%c31, %c0_5] : memref<192x128xbf16, #tpu.memory_space<vmem>>, vector<128x128xbf16>
    %c32 = arith.constant 32 : index
    %c0_6 = arith.constant 0 : index
    %8 = vector.load %arg1[%c32, %c0_6] : memref<192x128xbf16, #tpu.memory_space<vmem>>, vector<128x128xbf16>
    %c33 = arith.constant 33 : index
    %c0_7 = arith.constant 0 : index
    %9 = vector.load %arg1[%c33, %c0_7] : memref<192x128xbf16, #tpu.memory_space<vmem>>, vector<128x128xbf16>
    %10 = tpu.concatenate %7, %8, %9 in 1 : vector<128x128xbf16>, vector<128x128xbf16>, vector<128x128xbf16> -> vector<128x384xbf16>
    %c1 = arith.constant 1 : index
    %c0_8 = arith.constant 0 : index
    %c0_9 = arith.constant 0 : index
    %11 = vector.load %arg3[%c1, %c0_8, %c0_9] : memref<3x384x128xbf16, #tpu.memory_space<vmem>>, vector<1x384x128xbf16>
    %12 = vector.shape_cast %11 : vector<1x384x128xbf16> to vector<384x128xbf16>
    %cst_10 = arith.constant dense<0.000000e+00> : vector<128x128xf32>
    %13 = tpu.matmul %10, %12, %cst_10 {dimension_numbers = #tpu.dot_dimension_numbers<[1], [0], [0], [1], [0, 0, 1, 1], [], []>} : vector<128x384xbf16>, vector<384x128xbf16>, vector<128x128xf32> -> vector<128x128xf32>
    %14 = arith.addf %6, %13 : vector<128x128xf32>
    %c47 = arith.constant 47 : index
    %c0_11 = arith.constant 0 : index
    %15 = vector.load %arg1[%c47, %c0_11] : memref<192x128xbf16, #tpu.memory_space<vmem>>, vector<128x128xbf16>
    %c48 = arith.constant 48 : index
    %c0_12 = arith.constant 0 : index
    %16 = vector.load %arg1[%c48, %c0_12] : memref<192x128xbf16, #tpu.memory_space<vmem>>, vector<128x128xbf16>
    %c49 = arith.constant 49 : index
    %c0_13 = arith.constant 0 : index
    %17 = vector.load %arg1[%c49, %c0_13] : memref<192x128xbf16, #tpu.memory_space<vmem>>, vector<128x128xbf16>
    %18 = tpu.concatenate %15, %16, %17 in 1 : vector<128x128xbf16>, vector<128x128xbf16>, vector<128x128xbf16> -> vector<128x384xbf16>
    %c2 = arith.constant 2 : index
    %c0_14 = arith.constant 0 : index
    %c0_15 = arith.constant 0 : index
    %19 = vector.load %arg3[%c2, %c0_14, %c0_15] : memref<3x384x128xbf16, #tpu.memory_space<vmem>>, vector<1x384x128xbf16>
    %20 = vector.shape_cast %19 : vector<1x384x128xbf16> to vector<384x128xbf16>
    %cst_16 = arith.constant dense<0.000000e+00> : vector<128x128xf32>
    %21 = tpu.matmul %18, %20, %cst_16 {dimension_numbers = #tpu.dot_dimension_numbers<[1], [0], [0], [1], [0, 0, 1, 1], [], []>} : vector<128x384xbf16>, vector<384x128xbf16>, vector<128x128xf32> -> vector<128x128xf32>
    %22 = arith.addf %14, %21 : vector<128x128xf32>
    %c0_17 = arith.constant 0 : index
    %c0_18 = arith.constant 0 : index
    %23 = vector.load %arg4[%c0_17, %c0_18] : memref<1x128xf32, #tpu.memory_space<vmem>>, vector<1x128xf32>
    %24 = vector.broadcast %23 : vector<1x128xf32> to vector<128x128xf32>
    %25 = arith.addf %22, %24 : vector<128x128xf32>
    %cst_19 = arith.constant 0.000000e+00 : f32
    %26 = vector.broadcast %cst_19 : f32 to vector<128x128xf32>
    %27 = arith.maximumf %25, %26 : vector<128x128xf32>
    %c0_20 = arith.constant 0 : index
    %c0_21 = arith.constant 0 : index
    %28 = vector.load %arg2[%c0_20, %c0_21] : memref<128x1xf32, #tpu.memory_space<vmem>>, vector<128x1xf32>
    %29 = vector.broadcast %28 : vector<128x1xf32> to vector<128x128xf32>
    %30 = arith.mulf %27, %29 : vector<128x128xf32>
    %cst_22 = arith.constant 0.000000e+00 : bf16
    %31 = vector.broadcast %cst_22 : bf16 to vector<16x128xbf16>
    %c16_23 = arith.constant 16 : index
    %c0_24 = arith.constant 0 : index
    %32 = vector.load %arg8[%c16_23, %c0_24] : memref<192x128xbf16, #tpu.memory_space<vmem>>, vector<16x128xbf16>
    tpu.vector_store %arg8[%c16_23, %c0_24], %31 {strides = array<i32>} : memref<192x128xbf16, #tpu.memory_space<vmem>>, vector<16x128xbf16>,
    %cst_25 = arith.constant 0.000000e+00 : bf16
    %33 = vector.broadcast %cst_25 : bf16 to vector<16x128xbf16>
    %c160 = arith.constant 160 : index
    %c0_26 = arith.constant 0 : index
    %34 = vector.load %arg8[%c160, %c0_26] : memref<192x128xbf16, #tpu.memory_space<vmem>>, vector<16x128xbf16>
    tpu.vector_store %arg8[%c160, %c0_26], %33 {strides = array<i32>} : memref<192x128xbf16, #tpu.memory_space<vmem>>, vector<16x128xbf16>,
    %35 = arith.truncf %30 : vector<128x128xf32> to vector<128x128xbf16>
    %c32_27 = arith.constant 32 : index
    %c0_28 = arith.constant 0 : index
    %36 = vector.load %arg8[%c32_27, %c0_28] : memref<192x128xbf16, #tpu.memory_space<vmem>>, vector<128x128xbf16>
    tpu.vector_store %arg8[%c32_27, %c0_28], %35 {strides = array<i32>} : memref<192x128xbf16, #tpu.memory_space<vmem>>, vector<128x128xbf16>,
    %c15_29 = arith.constant 15 : index
    %c0_30 = arith.constant 0 : index
    %37 = vector.load %arg8[%c15_29, %c0_30] : memref<192x128xbf16, #tpu.memory_space<vmem>>, vector<128x128xbf16>
    %c16_31 = arith.constant 16 : index
    %c0_32 = arith.constant 0 : index
    %38 = vector.load %arg8[%c16_31, %c0_32] : memref<192x128xbf16, #tpu.memory_space<vmem>>, vector<128x128xbf16>
    %c17_33 = arith.constant 17 : index
    %c0_34 = arith.constant 0 : index
    %39 = vector.load %arg8[%c17_33, %c0_34] : memref<192x128xbf16, #tpu.memory_space<vmem>>, vector<128x128xbf16>
    %40 = tpu.concatenate %37, %38, %39 in 1 : vector<128x128xbf16>, vector<128x128xbf16>, vector<128x128xbf16> -> vector<128x384xbf16>
    %c0_35 = arith.constant 0 : index
    %c0_36 = arith.constant 0 : index
    %c0_37 = arith.constant 0 : index
    %41 = vector.load %arg5[%c0_35, %c0_36, %c0_37] : memref<3x384x128xbf16, #tpu.memory_space<vmem>>, vector<1x384x128xbf16>
    %42 = vector.shape_cast %41 : vector<1x384x128xbf16> to vector<384x128xbf16>
    %cst_38 = arith.constant dense<0.000000e+00> : vector<128x128xf32>
    %43 = tpu.matmul %40, %42, %cst_38 {dimension_numbers = #tpu.dot_dimension_numbers<[1], [0], [0], [1], [0, 0, 1, 1], [], []>} : vector<128x384xbf16>, vector<384x128xbf16>, vector<128x128xf32> -> vector<128x128xf32>
    %c31_39 = arith.constant 31 : index
    %c0_40 = arith.constant 0 : index
    %44 = vector.load %arg8[%c31_39, %c0_40] : memref<192x128xbf16, #tpu.memory_space<vmem>>, vector<128x128xbf16>
    %c32_41 = arith.constant 32 : index
    %c0_42 = arith.constant 0 : index
    %45 = vector.load %arg8[%c32_41, %c0_42] : memref<192x128xbf16, #tpu.memory_space<vmem>>, vector<128x128xbf16>
    %c33_43 = arith.constant 33 : index
    %c0_44 = arith.constant 0 : index
    %46 = vector.load %arg8[%c33_43, %c0_44] : memref<192x128xbf16, #tpu.memory_space<vmem>>, vector<128x128xbf16>
    %47 = tpu.concatenate %44, %45, %46 in 1 : vector<128x128xbf16>, vector<128x128xbf16>, vector<128x128xbf16> -> vector<128x384xbf16>
    %c1_45 = arith.constant 1 : index
    %c0_46 = arith.constant 0 : index
    %c0_47 = arith.constant 0 : index
    %48 = vector.load %arg5[%c1_45, %c0_46, %c0_47] : memref<3x384x128xbf16, #tpu.memory_space<vmem>>, vector<1x384x128xbf16>
    %49 = vector.shape_cast %48 : vector<1x384x128xbf16> to vector<384x128xbf16>
    %cst_48 = arith.constant dense<0.000000e+00> : vector<128x128xf32>
    %50 = tpu.matmul %47, %49, %cst_48 {dimension_numbers = #tpu.dot_dimension_numbers<[1], [0], [0], [1], [0, 0, 1, 1], [], []>} : vector<128x384xbf16>, vector<384x128xbf16>, vector<128x128xf32> -> vector<128x128xf32>
    %51 = arith.addf %43, %50 : vector<128x128xf32>
    %c47_49 = arith.constant 47 : index
    %c0_50 = arith.constant 0 : index
    %52 = vector.load %arg8[%c47_49, %c0_50] : memref<192x128xbf16, #tpu.memory_space<vmem>>, vector<128x128xbf16>
    %c48_51 = arith.constant 48 : index
    %c0_52 = arith.constant 0 : index
    %53 = vector.load %arg8[%c48_51, %c0_52] : memref<192x128xbf16, #tpu.memory_space<vmem>>, vector<128x128xbf16>
    %c49_53 = arith.constant 49 : index
    %c0_54 = arith.constant 0 : index
    %54 = vector.load %arg8[%c49_53, %c0_54] : memref<192x128xbf16, #tpu.memory_space<vmem>>, vector<128x128xbf16>
    %55 = tpu.concatenate %52, %53, %54 in 1 : vector<128x128xbf16>, vector<128x128xbf16>, vector<128x128xbf16> -> vector<128x384xbf16>
    %c2_55 = arith.constant 2 : index
    %c0_56 = arith.constant 0 : index
    %c0_57 = arith.constant 0 : index
    %56 = vector.load %arg5[%c2_55, %c0_56, %c0_57] : memref<3x384x128xbf16, #tpu.memory_space<vmem>>, vector<1x384x128xbf16>
    %57 = vector.shape_cast %56 : vector<1x384x128xbf16> to vector<384x128xbf16>
    %cst_58 = arith.constant dense<0.000000e+00> : vector<128x128xf32>
    %58 = tpu.matmul %55, %57, %cst_58 {dimension_numbers = #tpu.dot_dimension_numbers<[1], [0], [0], [1], [0, 0, 1, 1], [], []>} : vector<128x384xbf16>, vector<384x128xbf16>, vector<128x128xf32> -> vector<128x128xf32>
    %59 = arith.addf %51, %58 : vector<128x128xf32>
    %c0_59 = arith.constant 0 : index
    %c0_60 = arith.constant 0 : index
    %60 = vector.load %arg6[%c0_59, %c0_60] : memref<1x128xf32, #tpu.memory_space<vmem>>, vector<1x128xf32>
    %61 = vector.broadcast %60 : vector<1x128xf32> to vector<128x128xf32>
    %62 = arith.addf %59, %61 : vector<128x128xf32>
    %c32_61 = arith.constant 32 : index
    %c0_62 = arith.constant 0 : index
    %63 = vector.load %arg1[%c32_61, %c0_62] : memref<192x128xbf16, #tpu.memory_space<vmem>>, vector<128x128xbf16>
    %64 = arith.extf %63 : vector<128x128xbf16> to vector<128x128xf32>
    %65 = arith.addf %62, %64 : vector<128x128xf32>
    %cst_63 = arith.constant 0.000000e+00 : f32
    %66 = vector.broadcast %cst_63 : f32 to vector<128x128xf32>
    %67 = arith.maximumf %65, %66 : vector<128x128xf32>
    %c0_64 = arith.constant 0 : index
    %c0_65 = arith.constant 0 : index
    %68 = vector.load %arg7[%c0_64, %c0_65] : memref<128x128xf32, #tpu.memory_space<vmem>>, vector<128x128xf32>
    tpu.vector_store %arg7[%c0_64, %c0_65], %67 {strides = array<i32>} : memref<128x128xf32, #tpu.memory_space<vmem>>, vector<128x128xf32>,
    return
  }
  func.func @transform_0(%arg0: i32) -> (i32, i32) {
    %c0_i32 = arith.constant 0 : i32
    %c0_i32_0 = arith.constant 0 : i32
    return %arg0, %c0_i32 : i32, i32
  }
  func.func @transform_1(%arg0: i32) -> (i32, i32) {
    %c0_i32 = arith.constant 0 : i32
    %c0_i32_0 = arith.constant 0 : i32
    %c0_i32_1 = arith.constant 0 : i32
    return %c0_i32, %c0_i32_0 : i32, i32
  }
  func.func @transform_2(%arg0: i32) -> (i32, i32, i32) {
    %c0_i32 = arith.constant 0 : i32
    %c0_i32_0 = arith.constant 0 : i32
    %c0_i32_1 = arith.constant 0 : i32
    %c0_i32_2 = arith.constant 0 : i32
    return %c0_i32, %c0_i32_0, %c0_i32_1 : i32, i32, i32
  }
  func.func @transform_3(%arg0: i32) -> (i32, i32) {
    %c0_i32 = arith.constant 0 : i32
    %c0_i32_0 = arith.constant 0 : i32
    %c0_i32_1 = arith.constant 0 : i32
    return %c0_i32, %c0_i32_0 : i32, i32
  }
  func.func @transform_4(%arg0: i32) -> (i32, i32, i32) {
    %c0_i32 = arith.constant 0 : i32
    %c0_i32_0 = arith.constant 0 : i32
    %c0_i32_1 = arith.constant 0 : i32
    %c0_i32_2 = arith.constant 0 : i32
    return %c0_i32, %c0_i32_0, %c0_i32_1 : i32, i32, i32
  }
  func.func @transform_5(%arg0: i32) -> (i32, i32) {
    %c0_i32 = arith.constant 0 : i32
    %c0_i32_0 = arith.constant 0 : i32
    %c0_i32_1 = arith.constant 0 : i32
    return %c0_i32, %c0_i32_0 : i32, i32
  }
  func.func @transform_6(%arg0: i32) -> (i32, i32) {
    %c0_i32 = arith.constant 0 : i32
    %c0_i32_0 = arith.constant 0 : i32
    return %arg0, %c0_i32 : i32, i32
  }
}

</mosaic_0001>

<llo_original>
// kernel: basic_block.1
$region0: #{basic_block.1}
  #allocation0 [shape = 'u32[]', space=smem, size = 0x4, offset = 0x4, fixed_abs, tag = 'smem constant byte address 0x4 - core index']
  #allocation1 [shape = 'u32[144,128]{1,0:T(1,128)}', space=vmem, size = 0x12000, scoped, tag = 'internal scratch']
  #allocation2 [shape = 'bf16[192,128]{1,0:T(16,128)(2,1)}', space=vmem, size = 0xc000, scoped, tag = 'scratch operand']
  %s0 = inlined_call_operand.vmem [shape: bf16[384,128], index: 0, kind: input, shape index: {}]
  %s1 = inlined_call_operand.vmem [shape: f32[128,1], index: 1, kind: input, shape index: {}]
  %s2 = inlined_call_operand.vmem [shape: bf16[3,384,128], index: 2, kind: input, shape index: {}]
  %s3 = inlined_call_operand.vmem [shape: f32[1,128], index: 3, kind: input, shape index: {}]
  %s4 = inlined_call_operand.vmem [shape: bf16[3,384,128], index: 4, kind: input, shape index: {}]
  %s5 = inlined_call_operand.vmem [shape: f32[1,128], index: 5, kind: input, shape index: {}]
  %s6 = inlined_call_operand.vmem [shape: f32[256,128], index: 6, kind: output, shape index: {}]
  %s7 = sld [smem:[#allocation0]]
  $region57: #{basic_block.1} parent=0
    _
  %s9 = ssub.s32 1, %s7
  %s10 = scalar_select 0, %s9, %s7
  loop: start=0, step=1, limit=4
  $region2: #{basic_block.1} parent=0 // loop_pre_header
    _
  $region3: #{basic_block.1} parent=0 // loop_header
    %s12 = sphi 0, %s16
    %p13 = scmp.ge.s32.totalorder %s12, 4
    %s22 = sphi 0, %s24
    %s25 = sphi 0, %s22
    %s26 = sphi 0, %s25
    %s42 = sphi 0, %s26
    %s46 = sphi 0, %s46
    %s48 = sphi 0, %s46
    %s49 = sphi 0, %s48
    %s63 = sphi 0, %s49
    %s67 = sphi 0, %s67
    %s69 = sphi 0, %s67
    %s70 = sphi 0, %s69
    %s84 = sphi 0, %s70
    %s88 = sphi 0, %s88
    %s90 = sphi 0, %s88
    %s91 = sphi 0, %s90
    %s105 = sphi 0, %s91
    %s109 = sphi 0, %s109
    %s111 = sphi 0, %s109
    %s112 = sphi 0, %s111
    %s126 = sphi 0, %s112
    %s130 = sphi 0, %s130
    %s132 = sphi 0, %s130
    %s133 = sphi 0, %s132
    %s147 = sphi 0, %s133
    %s153 = sphi 0, %s155
    %s156 = sphi 0, %s153
    %s157 = sphi 0, %s156
    %s173 = sphi 0, %s157
  $region4: #{basic_block.1} parent=0 // loop_header_branch
    %15 = sbr.rel (%p13) target = $region8
  $region5: #{basic_block.1} parent=0 // loop_body
    %s17 = ssub.s32 %s12, 1
    %s18 = ssub.s32 %s12, 2
    %s19 = sadd.s32 %s12, 1
    %s20 = ssub.s32 %s12, %s19
    %p21 = scmp.eq.s32.totalorder %s20, 0
    %s23 = sadd.s32 %s22, 1
    %s24 = scalar_select %p21, %s22, %s23
    %p27 = pneg %p21
    %p28 = scmp.eq.s32.totalorder %s12, 1
    %p29 = por %p27, %p28
    %p30 = scmp.ne.s32.totalorder %s22, %s25
    %p31 = scmp.eq.s32.totalorder %s12, 0
    %p32 = por %p30, %p31
    %p33 = scmp.ne.s32.totalorder %s22, %s25
    %p34 = scmp.eq.s32.totalorder %s17, 1
    %p35 = por %p33, %p34
    %p36 = scmp.ne.s32.totalorder %s25, %s26
    %p37 = scmp.eq.s32.totalorder %s17, 0
    %p38 = por %p36, %p37
    %p39 = scmp.ne.s32.totalorder %s25, %s26
    %p40 = scmp.eq.s32.totalorder %s18, 1
    %p41 = por %p39, %p40
    %p43 = scmp.ne.s32.totalorder %s26, %s42
    %p44 = scmp.eq.s32.totalorder %s18, 0
    %p45 = por %p43, %p44
    %s47 = sadd.s32 %s46, 1
    %p50 = scmp.eq.s32.totalorder %s12, 1
    %p51 = scmp.ne.s32.totalorder %s46, %s48
    %p52 = scmp.eq.s32.totalorder %s12, 0
    %p53 = por %p51, %p52
    %p54 = scmp.ne.s32.totalorder %s46, %s48
    %p55 = scmp.eq.s32.totalorder %s17, 1
    %p56 = por %p54, %p55
    %p57 = scmp.ne.s32.totalorder %s48, %s49
    %p58 = scmp.eq.s32.totalorder %s17, 0
    %p59 = por %p57, %p58
    %p60 = scmp.ne.s32.totalorder %s48, %s49
    %p61 = scmp.eq.s32.totalorder %s18, 1
    %p62 = por %p60, %p61
    %p64 = scmp.ne.s32.totalorder %s49, %s63
    %p65 = scmp.eq.s32.totalorder %s18, 0
    %p66 = por %p64, %p65
    %s68 = sadd.s32 %s67, 1
    %p71 = scmp.eq.s32.totalorder %s12, 1
    %p72 = scmp.ne.s32.totalorder %s67, %s69
    %p73 = scmp.eq.s32.totalorder %s12, 0
    %p74 = por %p72, %p73
    %p75 = scmp.ne.s32.totalorder %s67, %s69
    %p76 = scmp.eq.s32.totalorder %s17, 1
    %p77 = por %p75, %p76
    %p78 = scmp.ne.s32.totalorder %s69, %s70
    %p79 = scmp.eq.s32.totalorder %s17, 0
    %p80 = por %p78, %p79
    %p81 = scmp.ne.s32.totalorder %s69, %s70
    %p82 = scmp.eq.s32.totalorder %s18, 1
    %p83 = por %p81, %p82
    %p85 = scmp.ne.s32.totalorder %s70, %s84
    %p86 = scmp.eq.s32.totalorder %s18, 0
    %p87 = por %p85, %p86
    %s89 = sadd.s32 %s88, 1
    %p92 = scmp.eq.s32.totalorder %s12, 1
    %p93 = scmp.ne.s32.totalorder %s88, %s90
    %p94 = scmp.eq.s32.totalorder %s12, 0
    %p95 = por %p93, %p94
    %p96 = scmp.ne.s32.totalorder %s88, %s90
    %p97 = scmp.eq.s32.totalorder %s17, 1
    %p98 = por %p96, %p97
    %p99 = scmp.ne.s32.totalorder %s90, %s91
    %p100 = scmp.eq.s32.totalorder %s17, 0
    %p101 = por %p99, %p100
    %p102 = scmp.ne.s32.totalorder %s90, %s91
    %p103 = scmp.eq.s32.totalorder %s18, 1
    %p104 = por %p102, %p103
    %p106 = scmp.ne.s32.totalorder %s91, %s105
    %p107 = scmp.eq.s32.totalorder %s18, 0
    %p108 = por %p106, %p107
    %s110 = sadd.s32 %s109, 1
    %p113 = scmp.eq.s32.totalorder %s12, 1
    %p114 = scmp.ne.s32.totalorder %s109, %s111
    %p115 = scmp.eq.s32.totalorder %s12, 0
    %p116 = por %p114, %p115
    %p117 = scmp.ne.s32.totalorder %s109, %s111
    %p118 = scmp.eq.s32.totalorder %s17, 1
    %p119 = por %p117, %p118
    %p120 = scmp.ne.s32.totalorder %s111, %s112
    %p121 = scmp.eq.s32.totalorder %s17, 0
    %p122 = por %p120, %p121
    %p123 = scmp.ne.s32.totalorder %s111, %s112
    %p124 = scmp.eq.s32.totalorder %s18, 1
    %p125 = por %p123, %p124
    %p127 = scmp.ne.s32.totalorder %s112, %s126
    %p128 = scmp.eq.s32.totalorder %s18, 0
    %p129 = por %p127, %p128
    %s131 = sadd.s32 %s130, 1
    %p134 = scmp.eq.s32.totalorder %s12, 1
    %p135 = scmp.ne.s32.totalorder %s130, %s132
    %p136 = scmp.eq.s32.totalorder %s12, 0
    %p137 = por %p135, %p136
    %p138 = scmp.ne.s32.totalorder %s130, %s132
    %p139 = scmp.eq.s32.totalorder %s17, 1
    %p140 = por %p138, %p139
    %p141 = scmp.ne.s32.totalorder %s132, %s133
    %p142 = scmp.eq.s32.totalorder %s17, 0
    %p143 = por %p141, %p142
    %p144 = scmp.ne.s32.totalorder %s132, %s133
    %p145 = scmp.eq.s32.totalorder %s18, 1
    %p146 = por %p144, %p145
    %p148 = scmp.ne.s32.totalorder %s133, %s147
    %p149 = scmp.eq.s32.totalorder %s18, 0
    %p150 = por %p148, %p149
    %s151 = ssub.s32 %s12, %s19
    %p152 = scmp.eq.s32.totalorder %s151, 0
    %s154 = sadd.s32 %s153, 1
    %s155 = scalar_select %p152, %s153, %s154
    %p158 = pneg %p152
    %p159 = scmp.eq.s32.totalorder %s12, 1
    %p160 = por %p158, %p159
    %p161 = scmp.ne.s32.totalorder %s153, %s156
    %p162 = scmp.eq.s32.totalorder %s12, 0
    %p163 = por %p161, %p162
    %p164 = scmp.ne.s32.totalorder %s153, %s156
    %p165 = scmp.eq.s32.totalorder %s17, 1
    %p166 = por %p164, %p165
    %p167 = scmp.ne.s32.totalorder %s156, %s157
    %p168 = scmp.eq.s32.totalorder %s17, 0
    %p169 = por %p167, %p168
    %p170 = scmp.ne.s32.totalorder %s156, %s157
    %p171 = scmp.eq.s32.totalorder %s18, 1
    %p172 = por %p170, %p171
    %p174 = scmp.ne.s32.totalorder %s157, %s173
    %p175 = scmp.eq.s32.totalorder %s18, 0
    %p176 = por %p174, %p175
    %p177 = scmp.le.s32.totalorder 1, %s12
    %p178 = scmp.lt.s32.totalorder %s12, 3
    %p179 = pnand %p177, %p178
    %p180 = pneg %p179
    // Predicated region
    $region9: #{basic_block.1} parent=5 // pred_check
      _
    $region10: #{basic_block.1} parent=5 // pred_check_branch
      %182 = sbr.rel (%p179) target = $region12
    $region11: #{basic_block.1} parent=5 // pred_region
      %s183 = ssub.s32 %s12, 1
      // Predicated region
      $region13: #{basic_block.1} parent=11 // pred_check
        %p184 = pneg %p59
      $region14: #{basic_block.1} parent=11 // pred_check_branch
        %186 = sbr.rel (%p184) target = $region16
      $region15: #{basic_block.1} parent=11 // pred_region
        _
      $region16: #{basic_block.1} parent=11 // pred_fallthru
        _
      // Predicated region
      $region17: #{basic_block.1} parent=11 // pred_check
        %p187 = pneg %p80
      $region18: #{basic_block.1} parent=11 // pred_check_branch
        %189 = sbr.rel (%p187) target = $region20
      $region19: #{basic_block.1} parent=11 // pred_region
        _
      $region20: #{basic_block.1} parent=11 // pred_fallthru
        _
      // Predicated region
      $region21: #{basic_block.1} parent=11 // pred_check
        %p190 = pneg %p101
      $region22: #{basic_block.1} parent=11 // pred_check_branch
        %192 = sbr.rel (%p190) target = $region24
      $region23: #{basic_block.1} parent=11 // pred_region
        _
      $region24: #{basic_block.1} parent=11 // pred_fallthru
        _
      // Predicated region
      $region25: #{basic_block.1} parent=11 // pred_check
        %p193 = pneg %p122
      $region26: #{basic_block.1} parent=11 // pred_check_branch
        %195 = sbr.rel (%p193) target = $region28
      $region27: #{basic_block.1} parent=11 // pred_region
        _
      $region28: #{basic_block.1} parent=11 // pred_fallthru
        _
      // Predicated region
      $region29: #{basic_block.1} parent=11 // pred_check
        %p196 = pneg %p143
      $region30: #{basic_block.1} parent=11 // pred_check_branch
        %198 = sbr.rel (%p196) target = $region32
      $region31: #{basic_block.1} parent=11 // pred_region
        _
      $region32: #{basic_block.1} parent=11 // pred_fallthru
        _
    $region12: #{basic_block.1} parent=5 // pred_fallthru
      _
    %p199 = scmp.lt.s32.totalorder %s12, 2
    // Predicated region
    $region33: #{basic_block.1} parent=5 // pred_check
      %p200 = pneg %p199
    $region34: #{basic_block.1} parent=5 // pred_check_branch
      %202 = sbr.rel (%p200) target = $region36
    $region35: #{basic_block.1} parent=5 // pred_region
      // Predicated region
      $region37: #{basic_block.1} parent=35 // pred_check
        %p203 = pneg %p32
      $region38: #{basic_block.1} parent=35 // pred_check_branch
        %205 = sbr.rel (%p203) target = $region40
      $region39: #{basic_block.1} parent=35 // pred_region
        %s206 = smul.u32 24, %s12
        %p207 = scmp.lt.s32.totalorder %s206, 47
        %s208 = scalar_select %p207, %s206, 47
        %s209 = smul.addr %s208, 4
        %s210 = scalar_lea.vmem %s0, %s209
        %s211 = smul.u32 24, %s12
      $region40: #{basic_block.1} parent=35 // pred_fallthru
        _
    $region36: #{basic_block.1} parent=5 // pred_fallthru
      _
    %p212 = scmp.le.s32.totalorder 1, %s12
    %p213 = scmp.lt.s32.totalorder %s12, 3
    %p214 = pnand %p212, %p213
    %p215 = pneg %p214
    // Predicated region
    $region41: #{basic_block.1} parent=5 // pred_check
      _
    $region42: #{basic_block.1} parent=5 // pred_check_branch
      %217 = sbr.rel (%p214) target = $region44
    $region43: #{basic_block.1} parent=5 // pred_region
      %s218 = ssub.s32 %s12, 1
      %s219 = smul.u32 24, %s17
      %p220 = scmp.lt.s32.totalorder %s219, 47
      %s221 = scalar_select %p220, %s219, 47
      %s222 = smul.addr %s221, 4
      %s223 = scalar_lea.vmem %s0, %s222
      %p224 = pneg %p38
      %p225 = pneg %p35
      %p226 = pneg %p59
      %p227 = pneg %p56
      %p228 = pneg %p80
      %p229 = pneg %p77
      %p230 = pneg %p101
      %p231 = pneg %p98
      %p232 = pneg %p122
      %p233 = pneg %p119
      %p234 = pneg %p143
      %p235 = pneg %p140
      %p236 = pneg %p169
      %p237 = pneg %p166
      %s238 = smul.u32 16, %s17
      %p239 = scmp.lt.s32.totalorder %s238, 31
      %s240 = scalar_select %p239, %s238, 31
      %s241 = smul.addr %s240, 8
      %s242 = scalar_lea.vmem %s6, %s241
      %s243 = smul.u32 24, %s17
      %p244 = scmp.lt.s32.totalorder %s243, 47
      %s245 = scalar_select %p244, %s243, 47
      %s246 = smul.addr %s245, 4
      %s247 = scalar_lea.vmem %s0, %s246
      %s248 = smul.u32 24, %s17
      %s249 = smul.u32 16, %s17
      %p250 = scmp.lt.s32.totalorder %s249, 31
      %s251 = scalar_select %p250, %s249, 31
      %s252 = smul.addr %s251, 8
      %s253 = scalar_lea.vmem %s6, %s252
      %s254 = smul.u32 16, %s17
      %v256 = vld [vmem:[%s247 + $0x4] sm:$0x8]
      %v257 = vld [vmem:[%s247 + $0x8] sm:$0xf]
      %v258 = vld [vmem:[%s247 + $0xc] sm:$0xf]
      %v259 = vld [vmem:[%s247 + $0x10] sm:$0xf]
      %v260 = vld [vmem:[%s247 + $0x14] sm:$0xf]
      %v261 = vld [vmem:[%s247 + $0x18] sm:$0xf]
      %v262 = vld [vmem:[%s247 + $0x1c] sm:$0xf]
      %v263 = vld [vmem:[%s247 + $0x20] sm:$0xf]
      %v264 = vld [vmem:[%s247 + $0x24] sm:$0xf]
      %v265 = vld [vmem:[%s247 + $0x28] sm:$0xf]
      %v266 = vld [vmem:[%s247 + $0x2c] sm:$0xf]
      %v267 = vld [vmem:[%s247 + $0x30] sm:$0xf]
      %v268 = vld [vmem:[%s247 + $0x34] sm:$0xf]
      %v269 = vld [vmem:[%s247 + $0x38] sm:$0xf]
      %v270 = vld [vmem:[%s247 + $0x3c] sm:$0xf]
      %v271 = vld [vmem:[%s247 + $0x40] sm:$0xf]
      %v272 = vld [vmem:[%s247 + $0x44] sm:$0xf]
      %v273 = vld [vmem:[%s247 + $0x48] sm:$0x1]
      %v291 = vunpack.c.l.b16 %v256
      %v292 = vunpack.c.l.b16 %v257
      %v293 = vunpack.c.l.b16 %v258
      %v294 = vunpack.c.l.b16 %v259
      %v295 = vunpack.c.l.b16 %v260
      %v296 = vunpack.c.l.b16 %v261
      %v297 = vunpack.c.l.b16 %v262
      %v298 = vunpack.c.l.b16 %v263
      %v299 = vunpack.c.l.b16 %v264
      %v300 = vunpack.c.l.b16 %v265
      %v301 = vunpack.c.l.b16 %v266
      %v302 = vunpack.c.l.b16 %v267
      %v303 = vunpack.c.l.b16 %v268
      %v304 = vunpack.c.l.b16 %v269
      %v305 = vunpack.c.l.b16 %v270
      %v306 = vunpack.c.l.b16 %v271
      %v307 = vunpack.c.l.b16 %v272
      %v308 = vpack.c.b16 %v292, %v291
      %v309 = vpack.c.b16 %v294, %v293
      %v310 = vpack.c.b16 %v296, %v295
      %v311 = vpack.c.b16 %v298, %v297
      %v312 = vpack.c.b16 %v300, %v299
      %v313 = vpack.c.b16 %v302, %v301
      %v314 = vpack.c.b16 %v304, %v303
      %v315 = vpack.c.b16 %v306, %v305
      %v316 = vpack.c.b16 %v307, %v307
      %v317 = vpack.c.b16 %v293, %v292
      %v318 = vpack.c.b16 %v295, %v294
      %v319 = vpack.c.b16 %v297, %v296
      %v320 = vpack.c.b16 %v299, %v298
      %v321 = vpack.c.b16 %v301, %v300
      %v322 = vpack.c.b16 %v303, %v302
      %v323 = vpack.c.b16 %v305, %v304
      %v324 = vpack.c.b16 %v307, %v306
      %vm325 = vsmask.f32 3328
      %v327 = vshrl.u32 %v317, 16
      %v329 = vrot.slane %v327, 4
      %v330 = vshll.u32 %v317, 16
      %v332 = vrot.slane %v330, 5
      %v333 = vor.u32 %v329, %v332
      %v335 = vshrl.u32 %v318, 16
      %v337 = vrot.slane %v335, 4
      %v338 = vshll.u32 %v318, 16
      %v340 = vrot.slane %v338, 5
      %v341 = vor.u32 %v337, %v340
      %v342 = vsel %vm325, %v333, %v341
      %v344 = vshrl.u32 %v319, 16
      %v346 = vrot.slane %v344, 4
      %v347 = vshll.u32 %v319, 16
      %v349 = vrot.slane %v347, 5
      %v350 = vor.u32 %v346, %v349
      %v351 = vsel %vm325, %v341, %v350
      %v353 = vshrl.u32 %v320, 16
      %v355 = vrot.slane %v353, 4
      %v356 = vshll.u32 %v320, 16
      %v358 = vrot.slane %v356, 5
      %v359 = vor.u32 %v355, %v358
      %v360 = vsel %vm325, %v350, %v359
      %v362 = vshrl.u32 %v321, 16
      %v364 = vrot.slane %v362, 4
      %v365 = vshll.u32 %v321, 16
      %v367 = vrot.slane %v365, 5
      %v368 = vor.u32 %v364, %v367
      %v369 = vsel %vm325, %v359, %v368
      %v371 = vshrl.u32 %v322, 16
      %v373 = vrot.slane %v371, 4
      %v374 = vshll.u32 %v322, 16
      %v376 = vrot.slane %v374, 5
      %v377 = vor.u32 %v373, %v376
      %v378 = vsel %vm325, %v368, %v377
      %v380 = vshrl.u32 %v323, 16
      %v382 = vrot.slane %v380, 4
      %v383 = vshll.u32 %v323, 16
      %v385 = vrot.slane %v383, 5
      %v386 = vor.u32 %v382, %v385
      %v387 = vsel %vm325, %v377, %v386
      %v389 = vshrl.u32 %v324, 16
      %v391 = vrot.slane %v389, 4
      %v392 = vshll.u32 %v324, 16
      %v394 = vrot.slane %v392, 5
      %v395 = vor.u32 %v391, %v394
      %v396 = vsel %vm325, %v386, %v395
      %v398 = vunpack.c.l.b16 %v273
      %v399 = vpack.c.b16 %v398, %v398
      %vm400 = vcmask 1042432
      %v401 = vrot.slane %v317, 5
      %v402 = vrot.slane %v318, 5
      %v403 = vsel %vm400, %v401, %v402
      %v404 = vrot.slane %v319, 5
      %v405 = vsel %vm400, %v402, %v404
      %v406 = vrot.slane %v320, 5
      %v407 = vsel %vm400, %v404, %v406
      %v408 = vrot.slane %v321, 5
      %v409 = vsel %vm400, %v406, %v408
      %v410 = vrot.slane %v322, 5
      %v411 = vsel %vm400, %v408, %v410
      %v412 = vrot.slane %v323, 5
      %v413 = vsel %vm400, %v410, %v412
      %v414 = vrot.slane %v324, 5
      %v415 = vsel %vm400, %v412, %v414
      %v416 = vrot.slane %v399, 5
      %v417 = vsel %vm400, %v414, %v416
      %v418 = vld [vmem:[%s2] sm:$0xf]
      %v419 = vld [vmem:[%s2 + $0x4] sm:$0xf]
      %v420 = vld [vmem:[%s2 + $0x8] sm:$0xf]
      %v421 = vld [vmem:[%s2 + $0xc] sm:$0xf]
      %v422 = vld [vmem:[%s2 + $0x10] sm:$0xf]
      %v423 = vld [vmem:[%s2 + $0x14] sm:$0xf]
      %v424 = vld [vmem:[%s2 + $0x18] sm:$0xf]
      %v425 = vld [vmem:[%s2 + $0x1c] sm:$0xf]
      %v426 = vld [vmem:[%s2 + $0x20] sm:$0xf]
      %v427 = vld [vmem:[%s2 + $0x24] sm:$0xf]
      %v428 = vld [vmem:[%s2 + $0x28] sm:$0xf]
      %v429 = vld [vmem:[%s2 + $0x2c] sm:$0xf]
      %v430 = vld [vmem:[%s2 + $0x30] sm:$0xf]
      %v431 = vld [vmem:[%s2 + $0x34] sm:$0xf]
      %v432 = vld [vmem:[%s2 + $0x38] sm:$0xf]
      %v433 = vld [vmem:[%s2 + $0x3c] sm:$0xf]
      %v434 = vld [vmem:[%s2 + $0x40] sm:$0xf]
      %v435 = vld [vmem:[%s2 + $0x44] sm:$0xf]
      %v436 = vld [vmem:[%s2 + $0x48] sm:$0xf]
      %v437 = vld [vmem:[%s2 + $0x4c] sm:$0xf]
      %v438 = vld [vmem:[%s2 + $0x50] sm:$0xf]
      %v439 = vld [vmem:[%s2 + $0x54] sm:$0xf]
      %v440 = vld [vmem:[%s2 + $0x58] sm:$0xf]
      %v441 = vld [vmem:[%s2 + $0x5c] sm:$0xf]
      %v442 = vld [vmem:[%s2 + $0x60] sm:$0xf]
      %v443 = vld [vmem:[%s2 + $0x64] sm:$0xf]
      %v444 = vld [vmem:[%s2 + $0x68] sm:$0xf]
      %v445 = vld [vmem:[%s2 + $0x6c] sm:$0xf]
      %v446 = vld [vmem:[%s2 + $0x70] sm:$0xf]
      %v447 = vld [vmem:[%s2 + $0x74] sm:$0xf]
      %v448 = vld [vmem:[%s2 + $0x78] sm:$0xf]
      %v449 = vld [vmem:[%s2 + $0x7c] sm:$0xf]
      %v450 = vld [vmem:[%s2 + $0x80] sm:$0xf]
      %v451 = vld [vmem:[%s2 + $0x84] sm:$0xf]
      %v452 = vld [vmem:[%s2 + $0x88] sm:$0xf]
      %v453 = vld [vmem:[%s2 + $0x8c] sm:$0xf]
      %v454 = vld [vmem:[%s2 + $0x90] sm:$0xf]
      %v455 = vld [vmem:[%s2 + $0x94] sm:$0xf]
      %v456 = vld [vmem:[%s2 + $0x98] sm:$0xf]
      %v457 = vld [vmem:[%s2 + $0x9c] sm:$0xf]
      %v458 = vld [vmem:[%s2 + $0xa0] sm:$0xf]
      %v459 = vld [vmem:[%s2 + $0xa4] sm:$0xf]
      %v460 = vld [vmem:[%s2 + $0xa8] sm:$0xf]
      %v461 = vld [vmem:[%s2 + $0xac] sm:$0xf]
      %v462 = vld [vmem:[%s2 + $0xb0] sm:$0xf]
      %v463 = vld [vmem:[%s2 + $0xb4] sm:$0xf]
      %v464 = vld [vmem:[%s2 + $0xb8] sm:$0xf]
      %v465 = vld [vmem:[%s2 + $0xbc] sm:$0xf]
      %v466 = vld [vmem:[%s247 + $0xc] sm:$0x8]
      %v467 = vld [vmem:[%s247 + $0x48] sm:$0xf]
      %v468 = vld [vmem:[%s247 + $0x4c] sm:$0xf]
      %v469 = vld [vmem:[%s247 + $0x50] sm:$0x1]
      %v473 = vunpack.c.l.b16 %v466
      %v474 = vunpack.c.l.b16 %v467
      %v475 = vunpack.c.l.b16 %v468
      %v476 = vpack.c.b16 %v294, %v473
      %v477 = vpack.c.b16 %v474, %v307
      %v478 = vpack.c.b16 %v475, %v475
      %v479 = vpack.c.b16 %v475, %v474
      %v481 = vshrl.u32 %v479, 16
      %v483 = vrot.slane %v481, 4
      %v484 = vshll.u32 %v479, 16
      %v486 = vrot.slane %v484, 5
      %v487 = vor.u32 %v483, %v486
      %v488 = vsel %vm325, %v395, %v487
      %v490 = vunpack.c.l.b16 %v469
      %v491 = vpack.c.b16 %v490, %v490
      %v492 = vrot.slane %v479, 5
      %v493 = vsel %vm400, %v414, %v492
      %v494 = vrot.slane %v491, 5
      %v495 = vsel %vm400, %v492, %v494
      %s496 = scalar_lea.vmem %s2, 192
      %v497 = vld [vmem:[%s496] sm:$0xf]
      %v498 = vld [vmem:[%s496 + $0x4] sm:$0xf]
      %v499 = vld [vmem:[%s496 + $0x8] sm:$0xf]
      %v500 = vld [vmem:[%s496 + $0xc] sm:$0xf]
      %v501 = vld [vmem:[%s496 + $0x10] sm:$0xf]
      %v502 = vld [vmem:[%s496 + $0x14] sm:$0xf]
      %v503 = vld [vmem:[%s496 + $0x18] sm:$0xf]
      %v504 = vld [vmem:[%s496 + $0x1c] sm:$0xf]
      %v505 = vld [vmem:[%s496 + $0x20] sm:$0xf]
      %v506 = vld [vmem:[%s496 + $0x24] sm:$0xf]
      %v507 = vld [vmem:[%s496 + $0x28] sm:$0xf]
      %v508 = vld [vmem:[%s496 + $0x2c] sm:$0xf]
      %v509 = vld [vmem:[%s496 + $0x30] sm:$0xf]
      %v510 = vld [vmem:[%s496 + $0x34] sm:$0xf]
      %v511 = vld [vmem:[%s496 + $0x38] sm:$0xf]
      %v512 = vld [vmem:[%s496 + $0x3c] sm:$0xf]
      %v513 = vld [vmem:[%s496 + $0x40] sm:$0xf]
      %v514 = vld [vmem:[%s496 + $0x44] sm:$0xf]
      %v515 = vld [vmem:[%s496 + $0x48] sm:$0xf]
      %v516 = vld [vmem:[%s496 + $0x4c] sm:$0xf]
      %v517 = vld [vmem:[%s496 + $0x50] sm:$0xf]
      %v518 = vld [vmem:[%s496 + $0x54] sm:$0xf]
      %v519 = vld [vmem:[%s496 + $0x58] sm:$0xf]
      %v520 = vld [vmem:[%s496 + $0x5c] sm:$0xf]
      %v521 = vld [vmem:[%s496 + $0x60] sm:$0xf]
      %v522 = vld [vmem:[%s496 + $0x64] sm:$0xf]
      %v523 = vld [vmem:[%s496 + $0x68] sm:$0xf]
      %v524 = vld [vmem:[%s496 + $0x6c] sm:$0xf]
      %v525 = vld [vmem:[%s496 + $0x70] sm:$0xf]
      %v526 = vld [vmem:[%s496 + $0x74] sm:$0xf]
      %v527 = vld [vmem:[%s496 + $0x78] sm:$0xf]
      %v528 = vld [vmem:[%s496 + $0x7c] sm:$0xf]
      %v529 = vld [vmem:[%s496 + $0x80] sm:$0xf]
      %v530 = vld [vmem:[%s496 + $0x84] sm:$0xf]
      %v531 = vld [vmem:[%s496 + $0x88] sm:$0xf]
      %v532 = vld [vmem:[%s496 + $0x8c] sm:$0xf]
      %v533 = vld [vmem:[%s496 + $0x90] sm:$0xf]
      %v534 = vld [vmem:[%s496 + $0x94] sm:$0xf]
      %v535 = vld [vmem:[%s496 + $0x98] sm:$0xf]
      %v536 = vld [vmem:[%s496 + $0x9c] sm:$0xf]
      %v537 = vld [vmem:[%s496 + $0xa0] sm:$0xf]
      %v538 = vld [vmem:[%s496 + $0xa4] sm:$0xf]
      %v539 = vld [vmem:[%s496 + $0xa8] sm:$0xf]
      %v540 = vld [vmem:[%s496 + $0xac] sm:$0xf]
      %v541 = vld [vmem:[%s496 + $0xb0] sm:$0xf]
      %v542 = vld [vmem:[%s496 + $0xb4] sm:$0xf]
      %v543 = vld [vmem:[%s496 + $0xb8] sm:$0xf]
      %v544 = vld [vmem:[%s496 + $0xbc] sm:$0xf]
      %vm545 = vsmask.f32 4352
      %v547 = vshrl.u32 %v476, 16
      %v549 = vrot.slane %v547, 3
      %v550 = vshll.u32 %v476, 16
      %v552 = vrot.slane %v550, 4
      %v553 = vor.u32 %v549, %v552
      %v555 = vshrl.u32 %v310, 16
      %v557 = vrot.slane %v555, 3
      %v558 = vshll.u32 %v310, 16
      %v560 = vrot.slane %v558, 4
      %v561 = vor.u32 %v557, %v560
      %v562 = vsel %vm545, %v553, %v561
      %v564 = vshrl.u32 %v341, 16
      %v566 = vrot.slane %v564, 3
      %v567 = vshll.u32 %v341, 16
      %v569 = vrot.slane %v567, 4
      %v570 = vor.u32 %v566, %v569
      %v572 = vshrl.u32 %v351, 16
      %v574 = vrot.slane %v572, 3
      %v575 = vshll.u32 %v351, 16
      %v577 = vrot.slane %v575, 4
      %v578 = vor.u32 %v574, %v577
      %v579 = vsel %vm545, %v570, %v578
      %v581 = vshrl.u32 %v402, 16
      %v583 = vrot.slane %v581, 3
      %v584 = vshll.u32 %v402, 16
      %v586 = vrot.slane %v584, 4
      %v587 = vor.u32 %v583, %v586
      %v589 = vshrl.u32 %v405, 16
      %v591 = vrot.slane %v589, 3
      %v592 = vshll.u32 %v405, 16
      %v594 = vrot.slane %v592, 4
      %v595 = vor.u32 %v591, %v594
      %v596 = vsel %vm545, %v587, %v595
      %v598 = vshrl.u32 %v311, 16
      %v600 = vrot.slane %v598, 3
      %v601 = vshll.u32 %v311, 16
      %v603 = vrot.slane %v601, 4
      %v604 = vor.u32 %v600, %v603
      %v605 = vsel %vm545, %v561, %v604
      %v607 = vshrl.u32 %v360, 16
      %v609 = vrot.slane %v607, 3
      %v610 = vshll.u32 %v360, 16
      %v612 = vrot.slane %v610, 4
      %v613 = vor.u32 %v609, %v612
      %v614 = vsel %vm545, %v578, %v613
      %v616 = vshrl.u32 %v407, 16
      %v618 = vrot.slane %v616, 3
      %v619 = vshll.u32 %v407, 16
      %v621 = vrot.slane %v619, 4
      %v622 = vor.u32 %v618, %v621
      %v623 = vsel %vm545, %v595, %v622
      %v625 = vshrl.u32 %v312, 16
      %v627 = vrot.slane %v625, 3
      %v628 = vshll.u32 %v312, 16
      %v630 = vrot.slane %v628, 4
      %v631 = vor.u32 %v627, %v630
      %v632 = vsel %vm545, %v604, %v631
      %v634 = vshrl.u32 %v369, 16
      %v636 = vrot.slane %v634, 3
      %v637 = vshll.u32 %v369, 16
      %v639 = vrot.slane %v637, 4
      %v640 = vor.u32 %v636, %v639
      %v641 = vsel %vm545, %v613, %v640
      %v643 = vshrl.u32 %v409, 16
      %v645 = vrot.slane %v643, 3
      %v646 = vshll.u32 %v409, 16
      %v648 = vrot.slane %v646, 4
      %v649 = vor.u32 %v645, %v648
      %v650 = vsel %vm545, %v622, %v649
      %v652 = vshrl.u32 %v313, 16
      %v654 = vrot.slane %v652, 3
      %v655 = vshll.u32 %v313, 16
      %v657 = vrot.slane %v655, 4
      %v658 = vor.u32 %v654, %v657
      %v659 = vsel %vm545, %v631, %v658
      %v661 = vshrl.u32 %v378, 16
      %v663 = vrot.slane %v661, 3
      %v664 = vshll.u32 %v378, 16
      %v666 = vrot.slane %v664, 4
      %v667 = vor.u32 %v663, %v666
      %v668 = vsel %vm545, %v640, %v667
      %v670 = vshrl.u32 %v411, 16
      %v672 = vrot.slane %v670, 3
      %v673 = vshll.u32 %v411, 16
      %v675 = vrot.slane %v673, 4
      %v676 = vor.u32 %v672, %v675
      %v677 = vsel %vm545, %v649, %v676
      %v679 = vshrl.u32 %v314, 16
      %v681 = vrot.slane %v679, 3
      %v682 = vshll.u32 %v314, 16
      %v684 = vrot.slane %v682, 4
      %v685 = vor.u32 %v681, %v684
      %v686 = vsel %vm545, %v658, %v685
      %v688 = vshrl.u32 %v387, 16
      %v690 = vrot.slane %v688, 3
      %v691 = vshll.u32 %v387, 16
      %v693 = vrot.slane %v691, 4
      %v694 = vor.u32 %v690, %v693
      %v695 = vsel %vm545, %v667, %v694
      %v697 = vshrl.u32 %v413, 16
      %v699 = vrot.slane %v697, 3
      %v700 = vshll.u32 %v413, 16
      %v702 = vrot.slane %v700, 4
      %v703 = vor.u32 %v699, %v702
      %v704 = vsel %vm545, %v676, %v703
      %v706 = vshrl.u32 %v315, 16
      %v708 = vrot.slane %v706, 3
      %v709 = vshll.u32 %v315, 16
      %v711 = vrot.slane %v709, 4
      %v712 = vor.u32 %v708, %v711
      %v713 = vsel %vm545, %v685, %v712
      %v715 = vshrl.u32 %v396, 16
      %v717 = vrot.slane %v715, 3
      %v718 = vshll.u32 %v396, 16
      %v720 = vrot.slane %v718, 4
      %v721 = vor.u32 %v717, %v720
      %v722 = vsel %vm545, %v694, %v721
      %v724 = vshrl.u32 %v415, 16
      %v726 = vrot.slane %v724, 3
      %v727 = vshll.u32 %v415, 16
      %v729 = vrot.slane %v727, 4
      %v730 = vor.u32 %v726, %v729
      %v731 = vsel %vm545, %v703, %v730
      %v733 = vshrl.u32 %v477, 16
      %v735 = vrot.slane %v733, 3
      %v736 = vshll.u32 %v477, 16
      %v738 = vrot.slane %v736, 4
      %v739 = vor.u32 %v735, %v738
      %v740 = vsel %vm545, %v712, %v739
      %v742 = vshrl.u32 %v488, 16
      %v744 = vrot.slane %v742, 3
      %v745 = vshll.u32 %v488, 16
      %v747 = vrot.slane %v745, 4
      %v748 = vor.u32 %v744, %v747
      %v749 = vsel %vm545, %v721, %v748
      %v751 = vshrl.u32 %v493, 16
      %v753 = vrot.slane %v751, 3
      %v754 = vshll.u32 %v493, 16
      %v756 = vrot.slane %v754, 4
      %v757 = vor.u32 %v753, %v756
      %v758 = vsel %vm545, %v730, %v757
      %v760 = vshrl.u32 %v478, 16
      %v762 = vrot.slane %v760, 3
      %v763 = vshll.u32 %v478, 16
      %v765 = vrot.slane %v763, 4
      %v766 = vor.u32 %v762, %v765
      %v767 = vsel %vm545, %v739, %v766
      %v769 = vshrl.u32 %v487, 16
      %v771 = vrot.slane %v769, 3
      %v772 = vshll.u32 %v487, 16
      %v774 = vrot.slane %v772, 4
      %v775 = vor.u32 %v771, %v774
      %v776 = vsel %vm545, %v748, %v775
      %v778 = vshrl.u32 %v495, 16
      %v780 = vrot.slane %v778, 3
      %v781 = vshll.u32 %v495, 16
      %v783 = vrot.slane %v781, 4
      %v784 = vor.u32 %v780, %v783
      %v785 = vsel %vm545, %v757, %v784
      %v858 = vunpack.c.l.b16 %v497
      %v859 = vunpack.c.l.b16 %v498
      %v860 = vunpack.c.l.b16 %v499
      %v861 = vunpack.c.l.b16 %v500
      %v862 = vunpack.c.l.b16 %v501
      %v863 = vunpack.c.l.b16 %v502
      %v864 = vunpack.c.l.b16 %v503
      %v865 = vunpack.c.l.b16 %v504
      %v866 = vunpack.c.l.b16 %v505
      %v867 = vunpack.c.l.b16 %v506
      %v868 = vunpack.c.l.b16 %v507
      %v869 = vunpack.c.l.b16 %v508
      %v870 = vunpack.c.l.b16 %v509
      %v871 = vunpack.c.l.b16 %v510
      %v872 = vunpack.c.l.b16 %v511
      %v873 = vunpack.c.l.b16 %v512
      %v874 = vunpack.c.l.b16 %v513
      %v875 = vunpack.c.l.b16 %v514
      %v876 = vunpack.c.l.b16 %v515
      %v877 = vunpack.c.l.b16 %v516
      %v878 = vunpack.c.l.b16 %v517
      %v879 = vunpack.c.l.b16 %v518
      %v880 = vunpack.c.l.b16 %v519
      %v881 = vunpack.c.l.b16 %v520
      %v882 = vunpack.c.l.b16 %v521
      %v883 = vunpack.c.l.b16 %v522
      %v884 = vunpack.c.l.b16 %v523
      %v885 = vunpack.c.l.b16 %v524
      %v886 = vunpack.c.l.b16 %v525
      %v887 = vunpack.c.l.b16 %v526
      %v888 = vunpack.c.l.b16 %v527
      %v889 = vunpack.c.l.b16 %v528
      %v890 = vunpack.c.l.b16 %v529
      %v891 = vunpack.c.l.b16 %v530
      %v892 = vunpack.c.l.b16 %v531
      %v893 = vunpack.c.l.b16 %v532
      %v894 = vunpack.c.l.b16 %v533
      %v895 = vunpack.c.l.b16 %v534
      %v896 = vunpack.c.l.b16 %v535
      %v897 = vunpack.c.l.b16 %v536
      %v898 = vunpack.c.l.b16 %v537
      %v899 = vunpack.c.l.b16 %v538
      %v900 = vunpack.c.l.b16 %v539
      %v901 = vunpack.c.l.b16 %v540
      %v902 = vunpack.c.l.b16 %v541
      %v903 = vunpack.c.l.b16 %v542
      %v904 = vunpack.c.l.b16 %v543
      %v905 = vunpack.c.l.b16 %v544
      %v906 = vpack.c.b16 %v859, %v858
      %v907 = vpack.c.b16 %v861, %v860
      %v908 = vpack.c.b16 %v863, %v862
      %v909 = vpack.c.b16 %v865, %v864
      %v910 = vpack.c.b16 %v867, %v866
      %v911 = vpack.c.b16 %v869, %v868
      %v912 = vpack.c.b16 %v871, %v870
      %v913 = vpack.c.b16 %v873, %v872
      %v914 = vpack.c.b16 %v875, %v874
      %v915 = vpack.c.b16 %v877, %v876
      %v916 = vpack.c.b16 %v879, %v878
      %v917 = vpack.c.b16 %v881, %v880
      %v918 = vpack.c.b16 %v883, %v882
      %v919 = vpack.c.b16 %v885, %v884
      %v920 = vpack.c.b16 %v887, %v886
      %v921 = vpack.c.b16 %v889, %v888
      %v922 = vpack.c.b16 %v891, %v890
      %v923 = vpack.c.b16 %v893, %v892
      %v924 = vpack.c.b16 %v895, %v894
      %v925 = vpack.c.b16 %v897, %v896
      %v926 = vpack.c.b16 %v899, %v898
      %v927 = vpack.c.b16 %v901, %v900
      %v928 = vpack.c.b16 %v903, %v902
      %v929 = vpack.c.b16 %v905, %v904
      %954 = vmatprep.subr.bf16.mxu0 0
      %955 = vmatpush1.bf16.msra.mxu0 %v906
      %956 = vmatprep.subr.bf16.mxu0 0
      %957 = vmatpush1.bf16.msra.mxu0 %v907
      %958 = vmatprep.subr.bf16.mxu0 0
      %959 = vmatpush1.bf16.msra.mxu0 %v908
      %960 = vmatprep.subr.bf16.mxu0 0
      %961 = vmatpush1.bf16.msra.mxu0 %v909
      %962 = vmatprep.subr.bf16.mxu0 0
      %963 = vmatpush1.bf16.msra.mxu0 %v910
      %964 = vmatprep.subr.bf16.mxu0 0
      %965 = vmatpush1.bf16.msra.mxu0 %v911
      %966 = vmatprep.subr.bf16.mxu0 0
      %967 = vmatpush1.bf16.msra.mxu0 %v912
      %968 = vmatprep.subr.bf16.mxu0 0
      %969 = vmatpush1.bf16.msra.mxu0 %v913
      %970 = vmatprep.subr.bf16.mxu0 0
      %971 = vmatpush1.bf16.msra.mxu0 %v914
      %972 = vmatprep.subr.bf16.mxu0 0
      %973 = vmatpush1.bf16.msra.mxu0 %v915
      %974 = vmatprep.subr.bf16.mxu0 0
      %975 = vmatpush1.bf16.msra.mxu0 %v916
      %976 = vmatprep.subr.bf16.mxu0 0
      %977 = vmatpush1.bf16.msra.mxu0 %v917
      %978 = vmatprep.subr.bf16.mxu0 0
      %979 = vmatpush1.bf16.msra.mxu0 %v918
      %980 = vmatprep.subr.bf16.mxu0 0
      %981 = vmatpush1.bf16.msra.mxu0 %v919
      %982 = vmatprep.subr.bf16.mxu0 0
      %983 = vmatpush1.bf16.msra.mxu0 %v920
      %984 = vmatprep.subr.bf16.mxu0 0
      %985 = vmatpush1.bf16.msra.mxu0 %v921
      %986 = vmatprep.mubr.bf16.mxu0 %v579
      %987 = vmatmul.mubr.bf16.gmra.mrb[0].mxu0 %v562
      %v988 = vpop.f32.mrb[0].mxu0
      %v989 = vadd.f32 0.0, %v988
      %v990 = vpop.f32.mrb[0].mxu0
      %v991 = vpop.f32.mrb[0].mxu0
      %v992 = vadd.f32 0.0, %v991
      %v993 = vpop.f32.mrb[0].mxu0
      %994 = vmatprep.mubr.bf16.mxu0 %v614
      %995 = vmatmul.mubr.bf16.gmra.mrb[0].mxu0 %v605
      %v996 = vpop.f32.mrb[0].mxu0
      %v997 = vadd.f32 0.0, %v996
      %v998 = vpop.f32.mrb[0].mxu0
      %v999 = vpop.f32.mrb[0].mxu0
      %v1000 = vadd.f32 0.0, %v999
      %v1001 = vpop.f32.mrb[0].mxu0
      %1002 = vmatprep.mubr.bf16.mxu0 %v641
      %1003 = vmatmul.mubr.bf16.gmra.mrb[0].mxu0 %v632
      %v1004 = vpop.f32.mrb[0].mxu0
      %v1005 = vadd.f32 0.0, %v1004
      %v1006 = vpop.f32.mrb[0].mxu0
      %v1007 = vpop.f32.mrb[0].mxu0
      %v1008 = vadd.f32 0.0, %v1007
      %v1009 = vpop.f32.mrb[0].mxu0
      %1010 = vmatprep.mubr.bf16.mxu0 %v668
      %1011 = vmatmul.mubr.bf16.gmra.mrb[0].mxu0 %v659
      %v1012 = vpop.f32.mrb[0].mxu0
      %v1013 = vadd.f32 0.0, %v1012
      %v1014 = vpop.f32.mrb[0].mxu0
      %v1015 = vpop.f32.mrb[0].mxu0
      %v1016 = vadd.f32 0.0, %v1015
      %v1017 = vpop.f32.mrb[0].mxu0
      %1018 = vmatprep.mubr.bf16.mxu0 %v695
      %1019 = vmatmul.mubr.bf16.gmra.mrb[0].mxu0 %v686
      %v1020 = vpop.f32.mrb[0].mxu0
      %v1021 = vadd.f32 0.0, %v1020
      %v1022 = vpop.f32.mrb[0].mxu0
      %v1023 = vpop.f32.mrb[0].mxu0
      %v1024 = vadd.f32 0.0, %v1023
      %v1025 = vpop.f32.mrb[0].mxu0
      %1026 = vmatprep.mubr.bf16.mxu0 %v722
      %1027 = vmatmul.mubr.bf16.gmra.mrb[0].mxu0 %v713
      %v1028 = vpop.f32.mrb[0].mxu0
      %v1029 = vadd.f32 0.0, %v1028
      %v1030 = vpop.f32.mrb[0].mxu0
      %v1031 = vpop.f32.mrb[0].mxu0
      %v1032 = vadd.f32 0.0, %v1031
      %v1033 = vpop.f32.mrb[0].mxu0
      %1034 = vmatprep.mubr.bf16.mxu0 %v749
      %1035 = vmatmul.mubr.bf16.gmra.mrb[0].mxu0 %v740
      %v1036 = vpop.f32.mrb[0].mxu0
      %v1037 = vadd.f32 0.0, %v1036
      %v1038 = vpop.f32.mrb[0].mxu0
      %v1039 = vpop.f32.mrb[0].mxu0
      %v1040 = vadd.f32 0.0, %v1039
      %v1041 = vpop.f32.mrb[0].mxu0
      %1042 = vmatprep.mubr.bf16.mxu0 %v776
      %1043 = vmatmul.mubr.bf16.gmra.mrb[0].mxu0 %v767
      %v1044 = vpop.f32.mrb[0].mxu0
      %v1045 = vadd.f32 0.0, %v1044
      %v1046 = vpop.f32.mrb[0].mxu0
      %v1047 = vpop.f32.mrb[0].mxu0
      %v1048 = vadd.f32 0.0, %v1047
      %v1049 = vpop.f32.mrb[0].mxu0
      %1050 = vdwg.mxu0
      %1051 = vmatprep.subr.bf16.mxu0 0
      %1052 = vmatpush1.bf16.msra.mxu0 %v922
      %1053 = vmatprep.subr.bf16.mxu0 0
      %1054 = vmatpush1.bf16.msra.mxu0 %v923
      %1055 = vmatprep.subr.bf16.mxu0 0
      %1056 = vmatpush1.bf16.msra.mxu0 %v924
      %1057 = vmatprep.subr.bf16.mxu0 0
      %1058 = vmatpush1.bf16.msra.mxu0 %v925
      %1059 = vmatprep.subr.bf16.mxu0 0
      %1060 = vmatpush1.bf16.msra.mxu0 %v926
      %1061 = vmatprep.subr.bf16.mxu0 0
      %1062 = vmatpush1.bf16.msra.mxu0 %v927
      %1063 = vmatprep.subr.bf16.mxu0 0
      %1064 = vmatpush1.bf16.msra.mxu0 %v928
      %1065 = vmatprep.subr.bf16.mxu0 0
      %1066 = vmatpush1.bf16.msra.mxu0 %v929
      %1067 = vmatprep.subr.bf16.mxu0 0
      %1068 = vmatpush1.bf16.msra.mxu0 0
      %1069 = vmatprep.subr.bf16.mxu0 0
      %1070 = vmatpush1.bf16.msra.mxu0 0
      %1071 = vmatprep.subr.bf16.mxu0 0
      %1072 = vmatpush1.bf16.msra.mxu0 0
      %1073 = vmatprep.subr.bf16.mxu0 0
      %1074 = vmatpush1.bf16.msra.mxu0 0
      %1075 = vmatprep.subr.bf16.mxu0 0
      %1076 = vmatpush1.bf16.msra.mxu0 0
      %1077 = vmatprep.subr.bf16.mxu0 0
      %1078 = vmatpush1.bf16.msra.mxu0 0
      %1079 = vmatprep.subr.bf16.mxu0 0
      %1080 = vmatpush1.bf16.msra.mxu0 0
      %1081 = vmatprep.subr.bf16.mxu0 0
      %1082 = vmatpush1.bf16.msra.mxu0 0
      %1083 = vmatprep.mubr.bf16.mxu0 0
      %1084 = vmatmul.mubr.bf16.gmra.mrb[0].mxu0 %v596
      %v1085 = vpop.f32.mrb[0].mxu0
      %v1086 = vadd.f32 %v989, %v1085
      %v1087 = vpop.f32.mrb[0].mxu0
      %v1088 = vpop.f32.mrb[0].mxu0
      %v1089 = vadd.f32 %v992, %v1088
      %v1090 = vpop.f32.mrb[0].mxu0
      %1091 = vmatprep.mubr.bf16.mxu0 0
      %1092 = vmatmul.mubr.bf16.gmra.mrb[0].mxu0 %v623
      %v1093 = vpop.f32.mrb[0].mxu0
      %v1094 = vadd.f32 %v997, %v1093
      %v1095 = vpop.f32.mrb[0].mxu0
      %v1096 = vpop.f32.mrb[0].mxu0
      %v1097 = vadd.f32 %v1000, %v1096
      %v1098 = vpop.f32.mrb[0].mxu0
      %1099 = vmatprep.mubr.bf16.mxu0 0
      %1100 = vmatmul.mubr.bf16.gmra.mrb[0].mxu0 %v650
      %v1101 = vpop.f32.mrb[0].mxu0
      %v1102 = vadd.f32 %v1005, %v1101
      %v1103 = vpop.f32.mrb[0].mxu0
      %v1104 = vpop.f32.mrb[0].mxu0
      %v1105 = vadd.f32 %v1008, %v1104
      %v1106 = vpop.f32.mrb[0].mxu0
      %1107 = vmatprep.mubr.bf16.mxu0 0
      %1108 = vmatmul.mubr.bf16.gmra.mrb[0].mxu0 %v677
      %v1109 = vpop.f32.mrb[0].mxu0
      %v1110 = vadd.f32 %v1013, %v1109
      %v1111 = vpop.f32.mrb[0].mxu0
      %v1112 = vpop.f32.mrb[0].mxu0
      %v1113 = vadd.f32 %v1016, %v1112
      %v1114 = vpop.f32.mrb[0].mxu0
      %1115 = vmatprep.mubr.bf16.mxu0 0
      %1116 = vmatmul.mubr.bf16.gmra.mrb[0].mxu0 %v704
      %v1117 = vpop.f32.mrb[0].mxu0
      %v1118 = vadd.f32 %v1021, %v1117
      %v1119 = vpop.f32.mrb[0].mxu0
      %v1120 = vpop.f32.mrb[0].mxu0
      %v1121 = vadd.f32 %v1024, %v1120
      %v1122 = vpop.f32.mrb[0].mxu0
      %1123 = vmatprep.mubr.bf16.mxu0 0
      %1124 = vmatmul.mubr.bf16.gmra.mrb[0].mxu0 %v731
      %v1125 = vpop.f32.mrb[0].mxu0
      %v1126 = vadd.f32 %v1029, %v1125
      %v1127 = vpop.f32.mrb[0].mxu0
      %v1128 = vpop.f32.mrb[0].mxu0
      %v1129 = vadd.f32 %v1032, %v1128
      %v1130 = vpop.f32.mrb[0].mxu0
      %1131 = vmatprep.mubr.bf16.mxu0 0
      %1132 = vmatmul.mubr.bf16.gmra.mrb[0].mxu0 %v758
      %v1133 = vpop.f32.mrb[0].mxu0
      %v1134 = vadd.f32 %v1037, %v1133
      %v1135 = vpop.f32.mrb[0].mxu0
      %v1136 = vpop.f32.mrb[0].mxu0
      %v1137 = vadd.f32 %v1040, %v1136
      %v1138 = vpop.f32.mrb[0].mxu0
      %1139 = vmatprep.mubr.bf16.mxu0 0
      %1140 = vmatmul.mubr.bf16.gmra.mrb[0].mxu0 %v785
      %v1141 = vpop.f32.mrb[0].mxu0
      %v1142 = vadd.f32 %v1045, %v1141
      %v1143 = vpop.f32.mrb[0].mxu0
      %v1144 = vpop.f32.mrb[0].mxu0
      %v1145 = vadd.f32 %v1048, %v1144
      %v1146 = vpop.f32.mrb[0].mxu0
      %1147 = vdwg.mxu0
      %v1149 = vshrl.u32 %v308, 16
      %v1151 = vrot.slane %v1149, 3
      %v1152 = vshll.u32 %v308, 16
      %v1154 = vrot.slane %v1152, 4
      %v1155 = vor.u32 %v1151, %v1154
      %v1157 = vshrl.u32 %v309, 16
      %v1159 = vrot.slane %v1157, 3
      %v1160 = vshll.u32 %v309, 16
      %v1162 = vrot.slane %v1160, 4
      %v1163 = vor.u32 %v1159, %v1162
      %v1164 = vsel %vm545, %v1155, %v1163
      %v1166 = vshrl.u32 %v333, 16
      %v1168 = vrot.slane %v1166, 3
      %v1169 = vshll.u32 %v333, 16
      %v1171 = vrot.slane %v1169, 4
      %v1172 = vor.u32 %v1168, %v1171
      %v1174 = vshrl.u32 %v342, 16
      %v1176 = vrot.slane %v1174, 3
      %v1177 = vshll.u32 %v342, 16
      %v1179 = vrot.slane %v1177, 4
      %v1180 = vor.u32 %v1176, %v1179
      %v1181 = vsel %vm545, %v1172, %v1180
      %v1183 = vshrl.u32 %v401, 16
      %v1185 = vrot.slane %v1183, 3
      %v1186 = vshll.u32 %v401, 16
      %v1188 = vrot.slane %v1186, 4
      %v1189 = vor.u32 %v1185, %v1188
      %v1191 = vshrl.u32 %v403, 16
      %v1193 = vrot.slane %v1191, 3
      %v1194 = vshll.u32 %v403, 16
      %v1196 = vrot.slane %v1194, 4
      %v1197 = vor.u32 %v1193, %v1196
      %v1198 = vsel %vm545, %v1189, %v1197
      %v1199 = vsel %vm545, %v1163, %v561
      %v1200 = vsel %vm545, %v1180, %v578
      %v1201 = vsel %vm545, %v1197, %v595
      %v1203 = vshrl.u32 %v316, 16
      %v1205 = vrot.slane %v1203, 3
      %v1206 = vshll.u32 %v316, 16
      %v1208 = vrot.slane %v1206, 4
      %v1209 = vor.u32 %v1205, %v1208
      %v1210 = vsel %vm545, %v712, %v1209
      %v1212 = vshrl.u32 %v395, 16
      %v1214 = vrot.slane %v1212, 3
      %v1215 = vshll.u32 %v395, 16
      %v1217 = vrot.slane %v1215, 4
      %v1218 = vor.u32 %v1214, %v1217
      %v1219 = vsel %vm545, %v721, %v1218
      %v1221 = vshrl.u32 %v417, 16
      %v1223 = vrot.slane %v1221, 3
      %v1224 = vshll.u32 %v417, 16
      %v1226 = vrot.slane %v1224, 4
      %v1227 = vor.u32 %v1223, %v1226
      %v1228 = vsel %vm545, %v730, %v1227
      %v1286 = vunpack.c.l.b16 %v418
      %v1287 = vunpack.c.l.b16 %v419
      %v1288 = vunpack.c.l.b16 %v420
      %v1289 = vunpack.c.l.b16 %v421
      %v1290 = vunpack.c.l.b16 %v422
      %v1291 = vunpack.c.l.b16 %v423
      %v1292 = vunpack.c.l.b16 %v424
      %v1293 = vunpack.c.l.b16 %v425
      %v1294 = vunpack.c.l.b16 %v426
      %v1295 = vunpack.c.l.b16 %v427
      %v1296 = vunpack.c.l.b16 %v428
      %v1297 = vunpack.c.l.b16 %v429
      %v1298 = vunpack.c.l.b16 %v430
      %v1299 = vunpack.c.l.b16 %v431
      %v1300 = vunpack.c.l.b16 %v432
      %v1301 = vunpack.c.l.b16 %v433
      %v1302 = vunpack.c.l.b16 %v434
      %v1303 = vunpack.c.l.b16 %v435
      %v1304 = vunpack.c.l.b16 %v436
      %v1305 = vunpack.c.l.b16 %v437
      %v1306 = vunpack.c.l.b16 %v438
      %v1307 = vunpack.c.l.b16 %v439
      %v1308 = vunpack.c.l.b16 %v440
      %v1309 = vunpack.c.l.b16 %v441
      %v1310 = vunpack.c.l.b16 %v442
      %v1311 = vunpack.c.l.b16 %v443
      %v1312 = vunpack.c.l.b16 %v444
      %v1313 = vunpack.c.l.b16 %v445
      %v1314 = vunpack.c.l.b16 %v446
      %v1315 = vunpack.c.l.b16 %v447
      %v1316 = vunpack.c.l.b16 %v448
      %v1317 = vunpack.c.l.b16 %v449
      %v1318 = vunpack.c.l.b16 %v450
      %v1319 = vunpack.c.l.b16 %v451
      %v1320 = vunpack.c.l.b16 %v452
      %v1321 = vunpack.c.l.b16 %v453
      %v1322 = vunpack.c.l.b16 %v454
      %v1323 = vunpack.c.l.b16 %v455
      %v1324 = vunpack.c.l.b16 %v456
      %v1325 = vunpack.c.l.b16 %v457
      %v1326 = vunpack.c.l.b16 %v458
      %v1327 = vunpack.c.l.b16 %v459
      %v1328 = vunpack.c.l.b16 %v460
      %v1329 = vunpack.c.l.b16 %v461
      %v1330 = vunpack.c.l.b16 %v462
      %v1331 = vunpack.c.l.b16 %v463
      %v1332 = vunpack.c.l.b16 %v464
      %v1333 = vunpack.c.l.b16 %v465
      %v1334 = vpack.c.b16 %v1287, %v1286
      %v1335 = vpack.c.b16 %v1289, %v1288
      %v1336 = vpack.c.b16 %v1291, %v1290
      %v1337 = vpack.c.b16 %v1293, %v1292
      %v1338 = vpack.c.b16 %v1295, %v1294
      %v1339 = vpack.c.b16 %v1297, %v1296
      %v1340 = vpack.c.b16 %v1299, %v1298
      %v1341 = vpack.c.b16 %v1301, %v1300
      %v1342 = vpack.c.b16 %v1303, %v1302
      %v1343 = vpack.c.b16 %v1305, %v1304
      %v1344 = vpack.c.b16 %v1307, %v1306
      %v1345 = vpack.c.b16 %v1309, %v1308
      %v1346 = vpack.c.b16 %v1311, %v1310
      %v1347 = vpack.c.b16 %v1313, %v1312
      %v1348 = vpack.c.b16 %v1315, %v1314
      %v1349 = vpack.c.b16 %v1317, %v1316
      %v1350 = vpack.c.b16 %v1319, %v1318
      %v1351 = vpack.c.b16 %v1321, %v1320
      %v1352 = vpack.c.b16 %v1323, %v1322
      %v1353 = vpack.c.b16 %v1325, %v1324
      %v1354 = vpack.c.b16 %v1327, %v1326
      %v1355 = vpack.c.b16 %v1329, %v1328
      %v1356 = vpack.c.b16 %v1331, %v1330
      %v1357 = vpack.c.b16 %v1333, %v1332
      %1382 = vmatprep.subr.bf16.mxu0 0
      %1383 = vmatpush1.bf16.msra.mxu0 %v1334
      %1384 = vmatprep.subr.bf16.mxu0 0
      %1385 = vmatpush1.bf16.msra.mxu0 %v1335
      %1386 = vmatprep.subr.bf16.mxu0 0
      %1387 = vmatpush1.bf16.msra.mxu0 %v1336
      %1388 = vmatprep.subr.bf16.mxu0 0
      %1389 = vmatpush1.bf16.msra.mxu0 %v1337
      %1390 = vmatprep.subr.bf16.mxu0 0
      %1391 = vmatpush1.bf16.msra.mxu0 %v1338
      %1392 = vmatprep.subr.bf16.mxu0 0
      %1393 = vmatpush1.bf16.msra.mxu0 %v1339
      %1394 = vmatprep.subr.bf16.mxu0 0
      %1395 = vmatpush1.bf16.msra.mxu0 %v1340
      %1396 = vmatprep.subr.bf16.mxu0 0
      %1397 = vmatpush1.bf16.msra.mxu0 %v1341
      %1398 = vmatprep.subr.bf16.mxu0 0
      %1399 = vmatpush1.bf16.msra.mxu0 %v1342
      %1400 = vmatprep.subr.bf16.mxu0 0
      %1401 = vmatpush1.bf16.msra.mxu0 %v1343
      %1402 = vmatprep.subr.bf16.mxu0 0
      %1403 = vmatpush1.bf16.msra.mxu0 %v1344
      %1404 = vmatprep.subr.bf16.mxu0 0
      %1405 = vmatpush1.bf16.msra.mxu0 %v1345
      %1406 = vmatprep.subr.bf16.mxu0 0
      %1407 = vmatpush1.bf16.msra.mxu0 %v1346
      %1408 = vmatprep.subr.bf16.mxu0 0
      %1409 = vmatpush1.bf16.msra.mxu0 %v1347
      %1410 = vmatprep.subr.bf16.mxu0 0
      %1411 = vmatpush1.bf16.msra.mxu0 %v1348
      %1412 = vmatprep.subr.bf16.mxu0 0
      %1413 = vmatpush1.bf16.msra.mxu0 %v1349
      %1414 = vmatprep.mubr.bf16.mxu0 %v1181
      %1415 = vmatmul.mubr.bf16.gmra.mrb[0].mxu0 %v1164
      %v1416 = vpop.f32.mrb[0].mxu0
      %v1417 = vadd.f32 %v1086, %v1416
      %v1418 = vpop.f32.mrb[0].mxu0
      %v1419 = vpop.f32.mrb[0].mxu0
      %v1420 = vadd.f32 %v1089, %v1419
      %v1421 = vpop.f32.mrb[0].mxu0
      %1422 = vmatprep.mubr.bf16.mxu0 %v1200
      %1423 = vmatmul.mubr.bf16.gmra.mrb[0].mxu0 %v1199
      %v1424 = vpop.f32.mrb[0].mxu0
      %v1425 = vadd.f32 %v1094, %v1424
      %v1426 = vpop.f32.mrb[0].mxu0
      %v1427 = vpop.f32.mrb[0].mxu0
      %v1428 = vadd.f32 %v1097, %v1427
      %v1429 = vpop.f32.mrb[0].mxu0
      %1430 = vmatprep.mubr.bf16.mxu0 %v614
      %1431 = vmatmul.mubr.bf16.gmra.mrb[0].mxu0 %v605
      %v1432 = vpop.f32.mrb[0].mxu0
      %v1433 = vadd.f32 %v1102, %v1432
      %v1434 = vpop.f32.mrb[0].mxu0
      %v1435 = vpop.f32.mrb[0].mxu0
      %v1436 = vadd.f32 %v1105, %v1435
      %v1437 = vpop.f32.mrb[0].mxu0
      %1438 = vmatprep.mubr.bf16.mxu0 %v641
      %1439 = vmatmul.mubr.bf16.gmra.mrb[0].mxu0 %v632
      %v1440 = vpop.f32.mrb[0].mxu0
      %v1441 = vadd.f32 %v1110, %v1440
      %v1442 = vpop.f32.mrb[0].mxu0
      %v1443 = vpop.f32.mrb[0].mxu0
      %v1444 = vadd.f32 %v1113, %v1443
      %v1445 = vpop.f32.mrb[0].mxu0
      %1446 = vmatprep.mubr.bf16.mxu0 %v668
      %1447 = vmatmul.mubr.bf16.gmra.mrb[0].mxu0 %v659
      %v1448 = vpop.f32.mrb[0].mxu0
      %v1449 = vadd.f32 %v1118, %v1448
      %v1450 = vpop.f32.mrb[0].mxu0
      %v1451 = vpop.f32.mrb[0].mxu0
      %v1452 = vadd.f32 %v1121, %v1451
      %v1453 = vpop.f32.mrb[0].mxu0
      %1454 = vmatprep.mubr.bf16.mxu0 %v695
      %1455 = vmatmul.mubr.bf16.gmra.mrb[0].mxu0 %v686
      %v1456 = vpop.f32.mrb[0].mxu0
      %v1457 = vadd.f32 %v1126, %v1456
      %v1458 = vpop.f32.mrb[0].mxu0
      %v1459 = vpop.f32.mrb[0].mxu0
      %v1460 = vadd.f32 %v1129, %v1459
      %v1461 = vpop.f32.mrb[0].mxu0
      %1462 = vmatprep.mubr.bf16.mxu0 %v722
      %1463 = vmatmul.mubr.bf16.gmra.mrb[0].mxu0 %v713
      %v1464 = vpop.f32.mrb[0].mxu0
      %v1465 = vadd.f32 %v1134, %v1464
      %v1466 = vpop.f32.mrb[0].mxu0
      %v1467 = vpop.f32.mrb[0].mxu0
      %v1468 = vadd.f32 %v1137, %v1467
      %v1469 = vpop.f32.mrb[0].mxu0
      %1470 = vmatprep.mubr.bf16.mxu0 %v1219
      %1471 = vmatmul.mubr.bf16.gmra.mrb[0].mxu0 %v1210
      %v1472 = vpop.f32.mrb[0].mxu0
      %v1473 = vadd.f32 %v1142, %v1472
      %v1474 = vpop.f32.mrb[0].mxu0
      %v1475 = vpop.f32.mrb[0].mxu0
      %v1476 = vadd.f32 %v1145, %v1475
      %v1477 = vpop.f32.mrb[0].mxu0
      %1478 = vdwg.mxu0
      %1479 = vmatprep.subr.bf16.mxu0 0
      %1480 = vmatpush1.bf16.msra.mxu0 %v1350
      %1481 = vmatprep.subr.bf16.mxu0 0
      %1482 = vmatpush1.bf16.msra.mxu0 %v1351
      %1483 = vmatprep.subr.bf16.mxu0 0
      %1484 = vmatpush1.bf16.msra.mxu0 %v1352
      %1485 = vmatprep.subr.bf16.mxu0 0
      %1486 = vmatpush1.bf16.msra.mxu0 %v1353
      %1487 = vmatprep.subr.bf16.mxu0 0
      %1488 = vmatpush1.bf16.msra.mxu0 %v1354
      %1489 = vmatprep.subr.bf16.mxu0 0
      %1490 = vmatpush1.bf16.msra.mxu0 %v1355
      %1491 = vmatprep.subr.bf16.mxu0 0
      %1492 = vmatpush1.bf16.msra.mxu0 %v1356
      %1493 = vmatprep.subr.bf16.mxu0 0
      %1494 = vmatpush1.bf16.msra.mxu0 %v1357
      %1495 = vmatprep.subr.bf16.mxu0 0
      %1496 = vmatpush1.bf16.msra.mxu0 0
      %1497 = vmatprep.subr.bf16.mxu0 0
      %1498 = vmatpush1.bf16.msra.mxu0 0
      %1499 = vmatprep.subr.bf16.mxu0 0
      %1500 = vmatpush1.bf16.msra.mxu0 0
      %1501 = vmatprep.subr.bf16.mxu0 0
      %1502 = vmatpush1.bf16.msra.mxu0 0
      %1503 = vmatprep.subr.bf16.mxu0 0
      %1504 = vmatpush1.bf16.msra.mxu0 0
      %1505 = vmatprep.subr.bf16.mxu0 0
      %1506 = vmatpush1.bf16.msra.mxu0 0
      %1507 = vmatprep.subr.bf16.mxu0 0
      %1508 = vmatpush1.bf16.msra.mxu0 0
      %1509 = vmatprep.subr.bf16.mxu0 0
      %1510 = vmatpush1.bf16.msra.mxu0 0
      %1511 = vmatprep.mubr.bf16.mxu0 0
      %1512 = vmatmul.mubr.bf16.gmra.mrb[0].mxu0 %v1198
      %v1513 = vpop.f32.mrb[0].mxu0
      %v1514 = vadd.f32 %v1417, %v1513
      %v1515 = vpop.f32.mrb[0].mxu0
      %v1516 = vpop.f32.mrb[0].mxu0
      %v1517 = vadd.f32 %v1420, %v1516
      %v1518 = vpop.f32.mrb[0].mxu0
      %1519 = vmatprep.mubr.bf16.mxu0 0
      %1520 = vmatmul.mubr.bf16.gmra.mrb[0].mxu0 %v1201
      %v1521 = vpop.f32.mrb[0].mxu0
      %v1522 = vadd.f32 %v1425, %v1521
      %v1523 = vpop.f32.mrb[0].mxu0
      %v1524 = vpop.f32.mrb[0].mxu0
      %v1525 = vadd.f32 %v1428, %v1524
      %v1526 = vpop.f32.mrb[0].mxu0
      %1527 = vmatprep.mubr.bf16.mxu0 0
      %1528 = vmatmul.mubr.bf16.gmra.mrb[0].mxu0 %v623
      %v1529 = vpop.f32.mrb[0].mxu0
      %v1530 = vadd.f32 %v1433, %v1529
      %v1531 = vpop.f32.mrb[0].mxu0
      %v1532 = vpop.f32.mrb[0].mxu0
      %v1533 = vadd.f32 %v1436, %v1532
      %v1534 = vpop.f32.mrb[0].mxu0
      %1535 = vmatprep.mubr.bf16.mxu0 0
      %1536 = vmatmul.mubr.bf16.gmra.mrb[0].mxu0 %v650
      %v1537 = vpop.f32.mrb[0].mxu0
      %v1538 = vadd.f32 %v1441, %v1537
      %v1539 = vpop.f32.mrb[0].mxu0
      %v1540 = vpop.f32.mrb[0].mxu0
      %v1541 = vadd.f32 %v1444, %v1540
      %v1542 = vpop.f32.mrb[0].mxu0
      %1543 = vmatprep.mubr.bf16.mxu0 0
      %1544 = vmatmul.mubr.bf16.gmra.mrb[0].mxu0 %v677
      %v1545 = vpop.f32.mrb[0].mxu0
      %v1546 = vadd.f32 %v1449, %v1545
      %v1547 = vpop.f32.mrb[0].mxu0
      %v1548 = vpop.f32.mrb[0].mxu0
      %v1549 = vadd.f32 %v1452, %v1548
      %v1550 = vpop.f32.mrb[0].mxu0
      %1551 = vmatprep.mubr.bf16.mxu0 0
      %1552 = vmatmul.mubr.bf16.gmra.mrb[0].mxu0 %v704
      %v1553 = vpop.f32.mrb[0].mxu0
      %v1554 = vadd.f32 %v1457, %v1553
      %v1555 = vpop.f32.mrb[0].mxu0
      %v1556 = vpop.f32.mrb[0].mxu0
      %v1557 = vadd.f32 %v1460, %v1556
      %v1558 = vpop.f32.mrb[0].mxu0
      %1559 = vmatprep.mubr.bf16.mxu0 0
      %1560 = vmatmul.mubr.bf16.gmra.mrb[0].mxu0 %v731
      %v1561 = vpop.f32.mrb[0].mxu0
      %v1562 = vadd.f32 %v1465, %v1561
      %v1563 = vpop.f32.mrb[0].mxu0
      %v1564 = vpop.f32.mrb[0].mxu0
      %v1565 = vadd.f32 %v1468, %v1564
      %v1566 = vpop.f32.mrb[0].mxu0
      %1567 = vmatprep.mubr.bf16.mxu0 0
      %1568 = vmatmul.mubr.bf16.gmra.mrb[0].mxu0 %v1228
      %v1569 = vpop.f32.mrb[0].mxu0
      %v1570 = vadd.f32 %v1473, %v1569
      %v1571 = vpop.f32.mrb[0].mxu0
      %v1572 = vpop.f32.mrb[0].mxu0
      %v1573 = vadd.f32 %v1476, %v1572
      %v1574 = vpop.f32.mrb[0].mxu0
      %1575 = vdwg.mxu0
      %v1576 = vld [vmem:[%s247 + $0x14] sm:$0x8]
      %v1577 = vld [vmem:[%s247 + $0x18] sm:$0xf]
      %v1578 = vld [vmem:[%s247 + $0x1c] sm:$0xf]
      %v1579 = vld [vmem:[%s247 + $0x20] sm:$0xf]
      %v1580 = vld [vmem:[%s247 + $0x24] sm:$0xf]
      %v1581 = vld [vmem:[%s247 + $0x28] sm:$0xf]
      %v1582 = vld [vmem:[%s247 + $0x2c] sm:$0xf]
      %v1583 = vld [vmem:[%s247 + $0x30] sm:$0xf]
      %v1584 = vld [vmem:[%s247 + $0x34] sm:$0xf]
      %v1585 = vld [vmem:[%s247 + $0x38] sm:$0xf]
      %v1586 = vld [vmem:[%s247 + $0x3c] sm:$0xf]
      %v1587 = vld [vmem:[%s247 + $0x40] sm:$0xf]
      %v1588 = vld [vmem:[%s247 + $0x44] sm:$0xf]
      %v1589 = vld [vmem:[%s247 + $0x48] sm:$0xf]
      %v1590 = vld [vmem:[%s247 + $0x4c] sm:$0xf]
      %v1591 = vld [vmem:[%s247 + $0x50] sm:$0xf]
      %v1592 = vld [vmem:[%s247 + $0x54] sm:$0xf]
      %v1593 = vld [vmem:[%s247 + $0x58] sm:$0x1]
      %v1611 = vunpack.c.l.b16 %v1576
      %v1612 = vunpack.c.l.b16 %v1577
      %v1613 = vunpack.c.l.b16 %v1578
      %v1614 = vunpack.c.l.b16 %v1579
      %v1615 = vunpack.c.l.b16 %v1580
      %v1616 = vunpack.c.l.b16 %v1581
      %v1617 = vunpack.c.l.b16 %v1582
      %v1618 = vunpack.c.l.b16 %v1583
      %v1619 = vunpack.c.l.b16 %v1584
      %v1620 = vunpack.c.l.b16 %v1585
      %v1621 = vunpack.c.l.b16 %v1586
      %v1622 = vunpack.c.l.b16 %v1587
      %v1623 = vunpack.c.l.b16 %v1588
      %v1624 = vunpack.c.l.b16 %v1589
      %v1625 = vunpack.c.l.b16 %v1590
      %v1626 = vunpack.c.l.b16 %v1591
      %v1627 = vunpack.c.l.b16 %v1592
      %v1628 = vpack.c.b16 %v1612, %v1611
      %v1629 = vpack.c.b16 %v1614, %v1613
      %v1630 = vpack.c.b16 %v1616, %v1615
      %v1631 = vpack.c.b16 %v1618, %v1617
      %v1632 = vpack.c.b16 %v1620, %v1619
      %v1633 = vpack.c.b16 %v1622, %v1621
      %v1634 = vpack.c.b16 %v1624, %v1623
      %v1635 = vpack.c.b16 %v1626, %v1625
      %v1636 = vpack.c.b16 %v1627, %v1627
      %v1637 = vpack.c.b16 %v1613, %v1612
      %v1638 = vpack.c.b16 %v1615, %v1614
      %v1639 = vpack.c.b16 %v1617, %v1616
      %v1640 = vpack.c.b16 %v1619, %v1618
      %v1641 = vpack.c.b16 %v1621, %v1620
      %v1642 = vpack.c.b16 %v1623, %v1622
      %v1643 = vpack.c.b16 %v1625, %v1624
      %v1644 = vpack.c.b16 %v1627, %v1626
      %v1646 = vshrl.u32 %v1637, 16
      %v1648 = vrot.slane %v1646, 4
      %v1649 = vshll.u32 %v1637, 16
      %v1651 = vrot.slane %v1649, 5
      %v1652 = vor.u32 %v1648, %v1651
      %v1654 = vshrl.u32 %v1638, 16
      %v1656 = vrot.slane %v1654, 4
      %v1657 = vshll.u32 %v1638, 16
      %v1659 = vrot.slane %v1657, 5
      %v1660 = vor.u32 %v1656, %v1659
      %v1661 = vsel %vm325, %v1652, %v1660
      %v1663 = vshrl.u32 %v1639, 16
      %v1665 = vrot.slane %v1663, 4
      %v1666 = vshll.u32 %v1639, 16
      %v1668 = vrot.slane %v1666, 5
      %v1669 = vor.u32 %v1665, %v1668
      %v1670 = vsel %vm325, %v1660, %v1669
      %v1672 = vshrl.u32 %v1640, 16
      %v1674 = vrot.slane %v1672, 4
      %v1675 = vshll.u32 %v1640, 16
      %v1677 = vrot.slane %v1675, 5
      %v1678 = vor.u32 %v1674, %v1677
      %v1679 = vsel %vm325, %v1669, %v1678
      %v1681 = vshrl.u32 %v1641, 16
      %v1683 = vrot.slane %v1681, 4
      %v1684 = vshll.u32 %v1641, 16
      %v1686 = vrot.slane %v1684, 5
      %v1687 = vor.u32 %v1683, %v1686
      %v1688 = vsel %vm325, %v1678, %v1687
      %v1690 = vshrl.u32 %v1642, 16
      %v1692 = vrot.slane %v1690, 4
      %v1693 = vshll.u32 %v1642, 16
      %v1695 = vrot.slane %v1693, 5
      %v1696 = vor.u32 %v1692, %v1695
      %v1697 = vsel %vm325, %v1687, %v1696
      %v1699 = vshrl.u32 %v1643, 16
      %v1701 = vrot.slane %v1699, 4
      %v1702 = vshll.u32 %v1643, 16
      %v1704 = vrot.slane %v1702, 5
      %v1705 = vor.u32 %v1701, %v1704
      %v1706 = vsel %vm325, %v1696, %v1705
      %v1708 = vshrl.u32 %v1644, 16
      %v1710 = vrot.slane %v1708, 4
      %v1711 = vshll.u32 %v1644, 16
      %v1713 = vrot.slane %v1711, 5
      %v1714 = vor.u32 %v1710, %v1713
      %v1715 = vsel %vm325, %v1705, %v1714
      %v1717 = vunpack.c.l.b16 %v1593
      %v1718 = vpack.c.b16 %v1717, %v1717
      %v1719 = vrot.slane %v1637, 5
      %v1720 = vrot.slane %v1638, 5
      %v1721 = vsel %vm400, %v1719, %v1720
      %v1722 = vrot.slane %v1639, 5
      %v1723 = vsel %vm400, %v1720, %v1722
      %v1724 = vrot.slane %v1640, 5
      %v1725 = vsel %vm400, %v1722, %v1724
      %v1726 = vrot.slane %v1641, 5
      %v1727 = vsel %vm400, %v1724, %v1726
      %v1728 = vrot.slane %v1642, 5
      %v1729 = vsel %vm400, %v1726, %v1728
      %v1730 = vrot.slane %v1643, 5
      %v1731 = vsel %vm400, %v1728, %v1730
      %v1732 = vrot.slane %v1644, 5
      %v1733 = vsel %vm400, %v1730, %v1732
      %v1734 = vrot.slane %v1718, 5
      %v1735 = vsel %vm400, %v1732, %v1734
      %s1736 = scalar_lea.vmem %s2, 384
      %v1737 = vld [vmem:[%s1736] sm:$0xf]
      %v1738 = vld [vmem:[%s1736 + $0x4] sm:$0xf]
      %v1739 = vld [vmem:[%s1736 + $0x8] sm:$0xf]
      %v1740 = vld [vmem:[%s1736 + $0xc] sm:$0xf]
      %v1741 = vld [vmem:[%s1736 + $0x10] sm:$0xf]
      %v1742 = vld [vmem:[%s1736 + $0x14] sm:$0xf]
      %v1743 = vld [vmem:[%s1736 + $0x18] sm:$0xf]
      %v1744 = vld [vmem:[%s1736 + $0x1c] sm:$0xf]
      %v1745 = vld [vmem:[%s1736 + $0x20] sm:$0xf]
      %v1746 = vld [vmem:[%s1736 + $0x24] sm:$0xf]
      %v1747 = vld [vmem:[%s1736 + $0x28] sm:$0xf]
      %v1748 = vld [vmem:[%s1736 + $0x2c] sm:$0xf]
      %v1749 = vld [vmem:[%s1736 + $0x30] sm:$0xf]
      %v1750 = vld [vmem:[%s1736 + $0x34] sm:$0xf]
      %v1751 = vld [vmem:[%s1736 + $0x38] sm:$0xf]
      %v1752 = vld [vmem:[%s1736 + $0x3c] sm:$0xf]
      %v1753 = vld [vmem:[%s1736 + $0x40] sm:$0xf]
      %v1754 = vld [vmem:[%s1736 + $0x44] sm:$0xf]
      %v1755 = vld [vmem:[%s1736 + $0x48] sm:$0xf]
      %v1756 = vld [vmem:[%s1736 + $0x4c] sm:$0xf]
      %v1757 = vld [vmem:[%s1736 + $0x50] sm:$0xf]
      %v1758 = vld [vmem:[%s1736 + $0x54] sm:$0xf]
      %v1759 = vld [vmem:[%s1736 + $0x58] sm:$0xf]
      %v1760 = vld [vmem:[%s1736 + $0x5c] sm:$0xf]
      %v1761 = vld [vmem:[%s1736 + $0x60] sm:$0xf]
      %v1762 = vld [vmem:[%s1736 + $0x64] sm:$0xf]
      %v1763 = vld [vmem:[%s1736 + $0x68] sm:$0xf]
      %v1764 = vld [vmem:[%s1736 + $0x6c] sm:$0xf]
      %v1765 = vld [vmem:[%s1736 + $0x70] sm:$0xf]
      %v1766 = vld [vmem:[%s1736 + $0x74] sm:$0xf]
      %v1767 = vld [vmem:[%s1736 + $0x78] sm:$0xf]
      %v1768 = vld [vmem:[%s1736 + $0x7c] sm:$0xf]
      %v1769 = vld [vmem:[%s1736 + $0x80] sm:$0xf]
      %v1770 = vld [vmem:[%s1736 + $0x84] sm:$0xf]
      %v1771 = vld [vmem:[%s1736 + $0x88] sm:$0xf]
      %v1772 = vld [vmem:[%s1736 + $0x8c] sm:$0xf]
      %v1773 = vld [vmem:[%s1736 + $0x90] sm:$0xf]
      %v1774 = vld [vmem:[%s1736 + $0x94] sm:$0xf]
      %v1775 = vld [vmem:[%s1736 + $0x98] sm:$0xf]
      %v1776 = vld [vmem:[%s1736 + $0x9c] sm:$0xf]
      %v1777 = vld [vmem:[%s1736 + $0xa0] sm:$0xf]
      %v1778 = vld [vmem:[%s1736 + $0xa4] sm:$0xf]
      %v1779 = vld [vmem:[%s1736 + $0xa8] sm:$0xf]
      %v1780 = vld [vmem:[%s1736 + $0xac] sm:$0xf]
      %v1781 = vld [vmem:[%s1736 + $0xb0] sm:$0xf]
      %v1782 = vld [vmem:[%s1736 + $0xb4] sm:$0xf]
      %v1783 = vld [vmem:[%s1736 + $0xb8] sm:$0xf]
      %v1784 = vld [vmem:[%s1736 + $0xbc] sm:$0xf]
      %v1786 = vshrl.u32 %v1628, 16
      %v1788 = vrot.slane %v1786, 3
      %v1789 = vshll.u32 %v1628, 16
      %v1791 = vrot.slane %v1789, 4
      %v1792 = vor.u32 %v1788, %v1791
      %v1794 = vshrl.u32 %v1629, 16
      %v1796 = vrot.slane %v1794, 3
      %v1797 = vshll.u32 %v1629, 16
      %v1799 = vrot.slane %v1797, 4
      %v1800 = vor.u32 %v1796, %v1799
      %v1801 = vsel %vm545, %v1792, %v1800
      %v1803 = vshrl.u32 %v1652, 16
      %v1805 = vrot.slane %v1803, 3
      %v1806 = vshll.u32 %v1652, 16
      %v1808 = vrot.slane %v1806, 4
      %v1809 = vor.u32 %v1805, %v1808
      %v1811 = vshrl.u32 %v1661, 16
      %v1813 = vrot.slane %v1811, 3
      %v1814 = vshll.u32 %v1661, 16
      %v1816 = vrot.slane %v1814, 4
      %v1817 = vor.u32 %v1813, %v1816
      %v1818 = vsel %vm545, %v1809, %v1817
      %v1820 = vshrl.u32 %v1719, 16
      %v1822 = vrot.slane %v1820, 3
      %v1823 = vshll.u32 %v1719, 16
      %v1825 = vrot.slane %v1823, 4
      %v1826 = vor.u32 %v1822, %v1825
      %v1828 = vshrl.u32 %v1721, 16
      %v1830 = vrot.slane %v1828, 3
      %v1831 = vshll.u32 %v1721, 16
      %v1833 = vrot.slane %v1831, 4
      %v1834 = vor.u32 %v1830, %v1833
      %v1835 = vsel %vm545, %v1826, %v1834
      %v1837 = vshrl.u32 %v1630, 16
      %v1839 = vrot.slane %v1837, 3
      %v1840 = vshll.u32 %v1630, 16
      %v1842 = vrot.slane %v1840, 4
      %v1843 = vor.u32 %v1839, %v1842
      %v1844 = vsel %vm545, %v1800, %v1843
      %v1846 = vshrl.u32 %v1670, 16
      %v1848 = vrot.slane %v1846, 3
      %v1849 = vshll.u32 %v1670, 16
      %v1851 = vrot.slane %v1849, 4
      %v1852 = vor.u32 %v1848, %v1851
      %v1853 = vsel %vm545, %v1817, %v1852
      %v1855 = vshrl.u32 %v1723, 16
      %v1857 = vrot.slane %v1855, 3
      %v1858 = vshll.u32 %v1723, 16
      %v1860 = vrot.slane %v1858, 4
      %v1861 = vor.u32 %v1857, %v1860
      %v1862 = vsel %vm545, %v1834, %v1861
      %v1864 = vshrl.u32 %v1631, 16
      %v1866 = vrot.slane %v1864, 3
      %v1867 = vshll.u32 %v1631, 16
      %v1869 = vrot.slane %v1867, 4
      %v1870 = vor.u32 %v1866, %v1869
      %v1871 = vsel %vm545, %v1843, %v1870
      %v1873 = vshrl.u32 %v1679, 16
      %v1875 = vrot.slane %v1873, 3
      %v1876 = vshll.u32 %v1679, 16
      %v1878 = vrot.slane %v1876, 4
      %v1879 = vor.u32 %v1875, %v1878
      %v1880 = vsel %vm545, %v1852, %v1879
      %v1882 = vshrl.u32 %v1725, 16
      %v1884 = vrot.slane %v1882, 3
      %v1885 = vshll.u32 %v1725, 16
      %v1887 = vrot.slane %v1885, 4
      %v1888 = vor.u32 %v1884, %v1887
      %v1889 = vsel %vm545, %v1861, %v1888
      %v1891 = vshrl.u32 %v1632, 16
      %v1893 = vrot.slane %v1891, 3
      %v1894 = vshll.u32 %v1632, 16
      %v1896 = vrot.slane %v1894, 4
      %v1897 = vor.u32 %v1893, %v1896
      %v1898 = vsel %vm545, %v1870, %v1897
      %v1900 = vshrl.u32 %v1688, 16
      %v1902 = vrot.slane %v1900, 3
      %v1903 = vshll.u32 %v1688, 16
      %v1905 = vrot.slane %v1903, 4
      %v1906 = vor.u32 %v1902, %v1905
      %v1907 = vsel %vm545, %v1879, %v1906
      %v1909 = vshrl.u32 %v1727, 16
      %v1911 = vrot.slane %v1909, 3
      %v1912 = vshll.u32 %v1727, 16
      %v1914 = vrot.slane %v1912, 4
      %v1915 = vor.u32 %v1911, %v1914
      %v1916 = vsel %vm545, %v1888, %v1915
      %v1918 = vshrl.u32 %v1633, 16
      %v1920 = vrot.slane %v1918, 3
      %v1921 = vshll.u32 %v1633, 16
      %v1923 = vrot.slane %v1921, 4
      %v1924 = vor.u32 %v1920, %v1923
      %v1925 = vsel %vm545, %v1897, %v1924
      %v1927 = vshrl.u32 %v1697, 16
      %v1929 = vrot.slane %v1927, 3
      %v1930 = vshll.u32 %v1697, 16
      %v1932 = vrot.slane %v1930, 4
      %v1933 = vor.u32 %v1929, %v1932
      %v1934 = vsel %vm545, %v1906, %v1933
      %v1936 = vshrl.u32 %v1729, 16
      %v1938 = vrot.slane %v1936, 3
      %v1939 = vshll.u32 %v1729, 16
      %v1941 = vrot.slane %v1939, 4
      %v1942 = vor.u32 %v1938, %v1941
      %v1943 = vsel %vm545, %v1915, %v1942
      %v1945 = vshrl.u32 %v1634, 16
      %v1947 = vrot.slane %v1945, 3
      %v1948 = vshll.u32 %v1634, 16
      %v1950 = vrot.slane %v1948, 4
      %v1951 = vor.u32 %v1947, %v1950
      %v1952 = vsel %vm545, %v1924, %v1951
      %v1954 = vshrl.u32 %v1706, 16
      %v1956 = vrot.slane %v1954, 3
      %v1957 = vshll.u32 %v1706, 16
      %v1959 = vrot.slane %v1957, 4
      %v1960 = vor.u32 %v1956, %v1959
      %v1961 = vsel %vm545, %v1933, %v1960
      %v1963 = vshrl.u32 %v1731, 16
      %v1965 = vrot.slane %v1963, 3
      %v1966 = vshll.u32 %v1731, 16
      %v1968 = vrot.slane %v1966, 4
      %v1969 = vor.u32 %v1965, %v1968
      %v1970 = vsel %vm545, %v1942, %v1969
      %v1972 = vshrl.u32 %v1635, 16
      %v1974 = vrot.slane %v1972, 3
      %v1975 = vshll.u32 %v1635, 16
      %v1977 = vrot.slane %v1975, 4
      %v1978 = vor.u32 %v1974, %v1977
      %v1979 = vsel %vm545, %v1951, %v1978
      %v1981 = vshrl.u32 %v1715, 16
      %v1983 = vrot.slane %v1981, 3
      %v1984 = vshll.u32 %v1715, 16
      %v1986 = vrot.slane %v1984, 4
      %v1987 = vor.u32 %v1983, %v1986
      %v1988 = vsel %vm545, %v1960, %v1987
      %v1990 = vshrl.u32 %v1733, 16
      %v1992 = vrot.slane %v1990, 3
      %v1993 = vshll.u32 %v1733, 16
      %v1995 = vrot.slane %v1993, 4
      %v1996 = vor.u32 %v1992, %v1995
      %v1997 = vsel %vm545, %v1969, %v1996
      %v1999 = vshrl.u32 %v1636, 16
      %v2001 = vrot.slane %v1999, 3
      %v2002 = vshll.u32 %v1636, 16
      %v2004 = vrot.slane %v2002, 4
      %v2005 = vor.u32 %v2001, %v2004
      %v2006 = vsel %vm545, %v1978, %v2005
      %v2008 = vshrl.u32 %v1714, 16
      %v2010 = vrot.slane %v2008, 3
      %v2011 = vshll.u32 %v1714, 16
      %v2013 = vrot.slane %v2011, 4
      %v2014 = vor.u32 %v2010, %v2013
      %v2015 = vsel %vm545, %v1987, %v2014
      %v2017 = vshrl.u32 %v1735, 16
      %v2019 = vrot.slane %v2017, 3
      %v2020 = vshll.u32 %v1735, 16
      %v2022 = vrot.slane %v2020, 4
      %v2023 = vor.u32 %v2019, %v2022
      %v2024 = vsel %vm545, %v1996, %v2023
      %v2097 = vunpack.c.l.b16 %v1737
      %v2098 = vunpack.c.l.b16 %v1738
      %v2099 = vunpack.c.l.b16 %v1739
      %v2100 = vunpack.c.l.b16 %v1740
      %v2101 = vunpack.c.l.b16 %v1741
      %v2102 = vunpack.c.l.b16 %v1742
      %v2103 = vunpack.c.l.b16 %v1743
      %v2104 = vunpack.c.l.b16 %v1744
      %v2105 = vunpack.c.l.b16 %v1745
      %v2106 = vunpack.c.l.b16 %v1746
      %v2107 = vunpack.c.l.b16 %v1747
      %v2108 = vunpack.c.l.b16 %v1748
      %v2109 = vunpack.c.l.b16 %v1749
      %v2110 = vunpack.c.l.b16 %v1750
      %v2111 = vunpack.c.l.b16 %v1751
      %v2112 = vunpack.c.l.b16 %v1752
      %v2113 = vunpack.c.l.b16 %v1753
      %v2114 = vunpack.c.l.b16 %v1754
      %v2115 = vunpack.c.l.b16 %v1755
      %v2116 = vunpack.c.l.b16 %v1756
      %v2117 = vunpack.c.l.b16 %v1757
      %v2118 = vunpack.c.l.b16 %v1758
      %v2119 = vunpack.c.l.b16 %v1759
      %v2120 = vunpack.c.l.b16 %v1760
      %v2121 = vunpack.c.l.b16 %v1761
      %v2122 = vunpack.c.l.b16 %v1762
      %v2123 = vunpack.c.l.b16 %v1763
      %v2124 = vunpack.c.l.b16 %v1764
      %v2125 = vunpack.c.l.b16 %v1765
      %v2126 = vunpack.c.l.b16 %v1766
      %v2127 = vunpack.c.l.b16 %v1767
      %v2128 = vunpack.c.l.b16 %v1768
      %v2129 = vunpack.c.l.b16 %v1769
      %v2130 = vunpack.c.l.b16 %v1770
      %v2131 = vunpack.c.l.b16 %v1771
      %v2132 = vunpack.c.l.b16 %v1772
      %v2133 = vunpack.c.l.b16 %v1773
      %v2134 = vunpack.c.l.b16 %v1774
      %v2135 = vunpack.c.l.b16 %v1775
      %v2136 = vunpack.c.l.b16 %v1776
      %v2137 = vunpack.c.l.b16 %v1777
      %v2138 = vunpack.c.l.b16 %v1778
      %v2139 = vunpack.c.l.b16 %v1779
      %v2140 = vunpack.c.l.b16 %v1780
      %v2141 = vunpack.c.l.b16 %v1781
      %v2142 = vunpack.c.l.b16 %v1782
      %v2143 = vunpack.c.l.b16 %v1783
      %v2144 = vunpack.c.l.b16 %v1784
      %v2145 = vpack.c.b16 %v2098, %v2097
      %v2146 = vpack.c.b16 %v2100, %v2099
      %v2147 = vpack.c.b16 %v2102, %v2101
      %v2148 = vpack.c.b16 %v2104, %v2103
      %v2149 = vpack.c.b16 %v2106, %v2105
      %v2150 = vpack.c.b16 %v2108, %v2107
      %v2151 = vpack.c.b16 %v2110, %v2109
      %v2152 = vpack.c.b16 %v2112, %v2111
      %v2153 = vpack.c.b16 %v2114, %v2113
      %v2154 = vpack.c.b16 %v2116, %v2115
      %v2155 = vpack.c.b16 %v2118, %v2117
      %v2156 = vpack.c.b16 %v2120, %v2119
      %v2157 = vpack.c.b16 %v2122, %v2121
      %v2158 = vpack.c.b16 %v2124, %v2123
      %v2159 = vpack.c.b16 %v2126, %v2125
      %v2160 = vpack.c.b16 %v2128, %v2127
      %v2161 = vpack.c.b16 %v2130, %v2129
      %v2162 = vpack.c.b16 %v2132, %v2131
      %v2163 = vpack.c.b16 %v2134, %v2133
      %v2164 = vpack.c.b16 %v2136, %v2135
      %v2165 = vpack.c.b16 %v2138, %v2137
      %v2166 = vpack.c.b16 %v2140, %v2139
      %v2167 = vpack.c.b16 %v2142, %v2141
      %v2168 = vpack.c.b16 %v2144, %v2143
      %2193 = vmatprep.subr.bf16.mxu0 0
      %2194 = vmatpush1.bf16.msra.mxu0 %v2145
      %2195 = vmatprep.subr.bf16.mxu0 0
      %2196 = vmatpush1.bf16.msra.mxu0 %v2146
      %2197 = vmatprep.subr.bf16.mxu0 0
      %2198 = vmatpush1.bf16.msra.mxu0 %v2147
      %2199 = vmatprep.subr.bf16.mxu0 0
      %2200 = vmatpush1.bf16.msra.mxu0 %v2148
      %2201 = vmatprep.subr.bf16.mxu0 0
      %2202 = vmatpush1.bf16.msra.mxu0 %v2149
      %2203 = vmatprep.subr.bf16.mxu0 0
      %2204 = vmatpush1.bf16.msra.mxu0 %v2150
      %2205 = vmatprep.subr.bf16.mxu0 0
      %2206 = vmatpush1.bf16.msra.mxu0 %v2151
      %2207 = vmatprep.subr.bf16.mxu0 0
      %2208 = vmatpush1.bf16.msra.mxu0 %v2152
      %2209 = vmatprep.subr.bf16.mxu0 0
      %2210 = vmatpush1.bf16.msra.mxu0 %v2153
      %2211 = vmatprep.subr.bf16.mxu0 0
      %2212 = vmatpush1.bf16.msra.mxu0 %v2154
      %2213 = vmatprep.subr.bf16.mxu0 0
      %2214 = vmatpush1.bf16.msra.mxu0 %v2155
      %2215 = vmatprep.subr.bf16.mxu0 0
      %2216 = vmatpush1.bf16.msra.mxu0 %v2156
      %2217 = vmatprep.subr.bf16.mxu0 0
      %2218 = vmatpush1.bf16.msra.mxu0 %v2157
      %2219 = vmatprep.subr.bf16.mxu0 0
      %2220 = vmatpush1.bf16.msra.mxu0 %v2158
      %2221 = vmatprep.subr.bf16.mxu0 0
      %2222 = vmatpush1.bf16.msra.mxu0 %v2159
      %2223 = vmatprep.subr.bf16.mxu0 0
      %2224 = vmatpush1.bf16.msra.mxu0 %v2160
      %2225 = vmatprep.mubr.bf16.mxu0 %v1818
      %2226 = vmatmul.mubr.bf16.gmra.mrb[0].mxu0 %v1801
      %v2227 = vpop.f32.mrb[0].mxu0
      %v2228 = vadd.f32 0.0, %v2227
      %v2229 = vpop.f32.mrb[0].mxu0
      %v2230 = vpop.f32.mrb[0].mxu0
      %v2231 = vadd.f32 0.0, %v2230
      %v2232 = vpop.f32.mrb[0].mxu0
      %2233 = vmatprep.mubr.bf16.mxu0 %v1853
      %2234 = vmatmul.mubr.bf16.gmra.mrb[0].mxu0 %v1844
      %v2235 = vpop.f32.mrb[0].mxu0
      %v2236 = vadd.f32 0.0, %v2235
      %v2237 = vpop.f32.mrb[0].mxu0
      %v2238 = vpop.f32.mrb[0].mxu0
      %v2239 = vadd.f32 0.0, %v2238
      %v2240 = vpop.f32.mrb[0].mxu0
      %2241 = vmatprep.mubr.bf16.mxu0 %v1880
      %2242 = vmatmul.mubr.bf16.gmra.mrb[0].mxu0 %v1871
      %v2243 = vpop.f32.mrb[0].mxu0
      %v2244 = vadd.f32 0.0, %v2243
      %v2245 = vpop.f32.mrb[0].mxu0
      %v2246 = vpop.f32.mrb[0].mxu0
      %v2247 = vadd.f32 0.0, %v2246
      %v2248 = vpop.f32.mrb[0].mxu0
      %2249 = vmatprep.mubr.bf16.mxu0 %v1907
      %2250 = vmatmul.mubr.bf16.gmra.mrb[0].mxu0 %v1898
      %v2251 = vpop.f32.mrb[0].mxu0
      %v2252 = vadd.f32 0.0, %v2251
      %v2253 = vpop.f32.mrb[0].mxu0
      %v2254 = vpop.f32.mrb[0].mxu0
      %v2255 = vadd.f32 0.0, %v2254
      %v2256 = vpop.f32.mrb[0].mxu0
      %2257 = vmatprep.mubr.bf16.mxu0 %v1934
      %2258 = vmatmul.mubr.bf16.gmra.mrb[0].mxu0 %v1925
      %v2259 = vpop.f32.mrb[0].mxu0
      %v2260 = vadd.f32 0.0, %v2259
      %v2261 = vpop.f32.mrb[0].mxu0
      %v2262 = vpop.f32.mrb[0].mxu0
      %v2263 = vadd.f32 0.0, %v2262
      %v2264 = vpop.f32.mrb[0].mxu0
      %2265 = vmatprep.mubr.bf16.mxu0 %v1961
      %2266 = vmatmul.mubr.bf16.gmra.mrb[0].mxu0 %v1952
      %v2267 = vpop.f32.mrb[0].mxu0
      %v2268 = vadd.f32 0.0, %v2267
      %v2269 = vpop.f32.mrb[0].mxu0
      %v2270 = vpop.f32.mrb[0].mxu0
      %v2271 = vadd.f32 0.0, %v2270
      %v2272 = vpop.f32.mrb[0].mxu0
      %2273 = vmatprep.mubr.bf16.mxu0 %v1988
      %2274 = vmatmul.mubr.bf16.gmra.mrb[0].mxu0 %v1979
      %v2275 = vpop.f32.mrb[0].mxu0
      %v2276 = vadd.f32 0.0, %v2275
      %v2277 = vpop.f32.mrb[0].mxu0
      %v2278 = vpop.f32.mrb[0].mxu0
      %v2279 = vadd.f32 0.0, %v2278
      %v2280 = vpop.f32.mrb[0].mxu0
      %2281 = vmatprep.mubr.bf16.mxu0 %v2015
      %2282 = vmatmul.mubr.bf16.gmra.mrb[0].mxu0 %v2006
      %v2283 = vpop.f32.mrb[0].mxu0
      %v2284 = vadd.f32 0.0, %v2283
      %v2285 = vpop.f32.mrb[0].mxu0
      %v2286 = vpop.f32.mrb[0].mxu0
      %v2287 = vadd.f32 0.0, %v2286
      %v2288 = vpop.f32.mrb[0].mxu0
      %2289 = vdwg.mxu0
      %2290 = vmatprep.subr.bf16.mxu0 0
      %2291 = vmatpush1.bf16.msra.mxu0 %v2161
      %2292 = vmatprep.subr.bf16.mxu0 0
      %2293 = vmatpush1.bf16.msra.mxu0 %v2162
      %2294 = vmatprep.subr.bf16.mxu0 0
      %2295 = vmatpush1.bf16.msra.mxu0 %v2163
      %2296 = vmatprep.subr.bf16.mxu0 0
      %2297 = vmatpush1.bf16.msra.mxu0 %v2164
      %2298 = vmatprep.subr.bf16.mxu0 0
      %2299 = vmatpush1.bf16.msra.mxu0 %v2165
      %2300 = vmatprep.subr.bf16.mxu0 0
      %2301 = vmatpush1.bf16.msra.mxu0 %v2166
      %2302 = vmatprep.subr.bf16.mxu0 0
      %2303 = vmatpush1.bf16.msra.mxu0 %v2167
      %2304 = vmatprep.subr.bf16.mxu0 0
      %2305 = vmatpush1.bf16.msra.mxu0 %v2168
      %2306 = vmatprep.subr.bf16.mxu0 0
      %2307 = vmatpush1.bf16.msra.mxu0 0
      %2308 = vmatprep.subr.bf16.mxu0 0
      %2309 = vmatpush1.bf16.msra.mxu0 0
      %2310 = vmatprep.subr.bf16.mxu0 0
      %2311 = vmatpush1.bf16.msra.mxu0 0
      %2312 = vmatprep.subr.bf16.mxu0 0
      %2313 = vmatpush1.bf16.msra.mxu0 0
      %2314 = vmatprep.subr.bf16.mxu0 0
      %2315 = vmatpush1.bf16.msra.mxu0 0
      %2316 = vmatprep.subr.bf16.mxu0 0
      %2317 = vmatpush1.bf16.msra.mxu0 0
      %2318 = vmatprep.subr.bf16.mxu0 0
      %2319 = vmatpush1.bf16.msra.mxu0 0
      %2320 = vmatprep.subr.bf16.mxu0 0
      %2321 = vmatpush1.bf16.msra.mxu0 0
      %2322 = vmatprep.mubr.bf16.mxu0 0
      %2323 = vmatmul.mubr.bf16.gmra.mrb[0].mxu0 %v1835
      %v2324 = vpop.f32.mrb[0].mxu0
      %v2325 = vadd.f32 %v2228, %v2324
      %v2326 = vpop.f32.mrb[0].mxu0
      %v2327 = vpop.f32.mrb[0].mxu0
      %v2328 = vadd.f32 %v2231, %v2327
      %v2329 = vpop.f32.mrb[0].mxu0
      %2330 = vmatprep.mubr.bf16.mxu0 0
      %2331 = vmatmul.mubr.bf16.gmra.mrb[0].mxu0 %v1862
      %v2332 = vpop.f32.mrb[0].mxu0
      %v2333 = vadd.f32 %v2236, %v2332
      %v2334 = vpop.f32.mrb[0].mxu0
      %v2335 = vpop.f32.mrb[0].mxu0
      %v2336 = vadd.f32 %v2239, %v2335
      %v2337 = vpop.f32.mrb[0].mxu0
      %2338 = vmatprep.mubr.bf16.mxu0 0
      %2339 = vmatmul.mubr.bf16.gmra.mrb[0].mxu0 %v1889
      %v2340 = vpop.f32.mrb[0].mxu0
      %v2341 = vadd.f32 %v2244, %v2340
      %v2342 = vpop.f32.mrb[0].mxu0
      %v2343 = vpop.f32.mrb[0].mxu0
      %v2344 = vadd.f32 %v2247, %v2343
      %v2345 = vpop.f32.mrb[0].mxu0
      %2346 = vmatprep.mubr.bf16.mxu0 0
      %2347 = vmatmul.mubr.bf16.gmra.mrb[0].mxu0 %v1916
      %v2348 = vpop.f32.mrb[0].mxu0
      %v2349 = vadd.f32 %v2252, %v2348
      %v2350 = vpop.f32.mrb[0].mxu0
      %v2351 = vpop.f32.mrb[0].mxu0
      %v2352 = vadd.f32 %v2255, %v2351
      %v2353 = vpop.f32.mrb[0].mxu0
      %2354 = vmatprep.mubr.bf16.mxu0 0
      %2355 = vmatmul.mubr.bf16.gmra.mrb[0].mxu0 %v1943
      %v2356 = vpop.f32.mrb[0].mxu0
      %v2357 = vadd.f32 %v2260, %v2356
      %v2358 = vpop.f32.mrb[0].mxu0
      %v2359 = vpop.f32.mrb[0].mxu0
      %v2360 = vadd.f32 %v2263, %v2359
      %v2361 = vpop.f32.mrb[0].mxu0
      %2362 = vmatprep.mubr.bf16.mxu0 0
      %2363 = vmatmul.mubr.bf16.gmra.mrb[0].mxu0 %v1970
      %v2364 = vpop.f32.mrb[0].mxu0
      %v2365 = vadd.f32 %v2268, %v2364
      %v2366 = vpop.f32.mrb[0].mxu0
      %v2367 = vpop.f32.mrb[0].mxu0
      %v2368 = vadd.f32 %v2271, %v2367
      %v2369 = vpop.f32.mrb[0].mxu0
      %2370 = vmatprep.mubr.bf16.mxu0 0
      %2371 = vmatmul.mubr.bf16.gmra.mrb[0].mxu0 %v1997
      %v2372 = vpop.f32.mrb[0].mxu0
      %v2373 = vadd.f32 %v2276, %v2372
      %v2374 = vpop.f32.mrb[0].mxu0
      %v2375 = vpop.f32.mrb[0].mxu0
      %v2376 = vadd.f32 %v2279, %v2375
      %v2377 = vpop.f32.mrb[0].mxu0
      %2378 = vmatprep.mubr.bf16.mxu0 0
      %2379 = vmatmul.mubr.bf16.gmra.mrb[0].mxu0 %v2024
      %v2380 = vpop.f32.mrb[0].mxu0
      %v2381 = vadd.f32 %v2284, %v2380
      %v2382 = vpop.f32.mrb[0].mxu0
      %v2383 = vpop.f32.mrb[0].mxu0
      %v2384 = vadd.f32 %v2287, %v2383
      %v2385 = vpop.f32.mrb[0].mxu0
      %2386 = vdwg.mxu0
      %v2387 = vadd.f32 %v1514, %v2325
      %v2388 = vadd.f32 %v1517, %v2328
      %v2389 = vadd.f32 %v1522, %v2333
      %v2390 = vadd.f32 %v1525, %v2336
      %v2391 = vadd.f32 %v1530, %v2341
      %v2392 = vadd.f32 %v1533, %v2344
      %v2393 = vadd.f32 %v1538, %v2349
      %v2394 = vadd.f32 %v1541, %v2352
      %v2395 = vadd.f32 %v1546, %v2357
      %v2396 = vadd.f32 %v1549, %v2360
      %v2397 = vadd.f32 %v1554, %v2365
      %v2398 = vadd.f32 %v1557, %v2368
      %v2399 = vadd.f32 %v1562, %v2373
      %v2400 = vadd.f32 %v1565, %v2376
      %v2401 = vadd.f32 %v1570, %v2381
      %v2402 = vadd.f32 %v1573, %v2384
      %v2403 = vld [vmem:[%s3] sm:$0x1]
      %v2405 = vlaneseq
      %v2406 = vshrl.u32 %v2405, 7
      %v2407 = vsub.s32 0, %v2406
      %v2408 = vrot.slane %v2403, %v2407
      %v2410 = vadd.f32 %v2387, %v2408
      %v2411 = vadd.f32 %v2388, %v2408
      %v2412 = vadd.f32 %v2389, %v2408
      %v2413 = vadd.f32 %v2390, %v2408
      %v2414 = vadd.f32 %v2391, %v2408
      %v2415 = vadd.f32 %v2392, %v2408
      %v2416 = vadd.f32 %v2393, %v2408
      %v2417 = vadd.f32 %v2394, %v2408
      %v2418 = vadd.f32 %v2395, %v2408
      %v2419 = vadd.f32 %v2396, %v2408
      %v2420 = vadd.f32 %v2397, %v2408
      %v2421 = vadd.f32 %v2398, %v2408
      %v2422 = vadd.f32 %v2399, %v2408
      %v2423 = vadd.f32 %v2400, %v2408
      %v2424 = vadd.f32 %v2401, %v2408
      %v2425 = vadd.f32 %v2402, %v2408
      %v2426 = vmax.f32 %v2410, 0.0
      %v2427 = vmax.f32 %v2411, 0.0
      %v2428 = vmax.f32 %v2412, 0.0
      %v2429 = vmax.f32 %v2413, 0.0
      %v2430 = vmax.f32 %v2414, 0.0
      %v2431 = vmax.f32 %v2415, 0.0
      %v2432 = vmax.f32 %v2416, 0.0
      %v2433 = vmax.f32 %v2417, 0.0
      %v2434 = vmax.f32 %v2418, 0.0
      %v2435 = vmax.f32 %v2419, 0.0
      %v2436 = vmax.f32 %v2420, 0.0
      %v2437 = vmax.f32 %v2421, 0.0
      %v2438 = vmax.f32 %v2422, 0.0
      %v2439 = vmax.f32 %v2423, 0.0
      %v2440 = vmax.f32 %v2424, 0.0
      %v2441 = vmax.f32 %v2425, 0.0
      %v2442 = vld [vmem:[%s1] sm:$0xff]
      %v2443 = vld [vmem:[%s1 + $0x8] sm:$0xff]
      %v2444 = vld [vmem:[%s1 + $0x10] sm:$0xff]
      %v2445 = vld [vmem:[%s1 + $0x18] sm:$0xff]
      %v2446 = vld [vmem:[%s1 + $0x20] sm:$0xff]
      %v2447 = vld [vmem:[%s1 + $0x28] sm:$0xff]
      %v2448 = vld [vmem:[%s1 + $0x30] sm:$0xff]
      %v2449 = vld [vmem:[%s1 + $0x38] sm:$0xff]
      %v2450 = vld [vmem:[%s1 + $0x40] sm:$0xff]
      %v2451 = vld [vmem:[%s1 + $0x48] sm:$0xff]
      %v2452 = vld [vmem:[%s1 + $0x50] sm:$0xff]
      %v2453 = vld [vmem:[%s1 + $0x58] sm:$0xff]
      %v2454 = vld [vmem:[%s1 + $0x60] sm:$0xff]
      %v2455 = vld [vmem:[%s1 + $0x68] sm:$0xff]
      %v2456 = vld [vmem:[%s1 + $0x70] sm:$0xff]
      %v2457 = vld [vmem:[%s1 + $0x78] sm:$0xff]
      %2459 = vset.pattern.permute.xlu0 0
      %2460 = vperm.xlu0 %2459, %v2442
      %v2461 = vpop.permute.xlu0 %2460
      %2464 = vset.pattern.permute.xlu0 0
      %2465 = vperm.xlu0 %2464, %v2443
      %v2466 = vpop.permute.xlu0 %2465
      %2469 = vset.pattern.permute.xlu0 0
      %2470 = vperm.xlu0 %2469, %v2444
      %v2471 = vpop.permute.xlu0 %2470
      %2474 = vset.pattern.permute.xlu0 0
      %2475 = vperm.xlu0 %2474, %v2445
      %v2476 = vpop.permute.xlu0 %2475
      %2479 = vset.pattern.permute.xlu0 0
      %2480 = vperm.xlu0 %2479, %v2446
      %v2481 = vpop.permute.xlu0 %2480
      %2484 = vset.pattern.permute.xlu0 0
      %2485 = vperm.xlu0 %2484, %v2447
      %v2486 = vpop.permute.xlu0 %2485
      %2489 = vset.pattern.permute.xlu0 0
      %2490 = vperm.xlu0 %2489, %v2448
      %v2491 = vpop.permute.xlu0 %2490
      %2494 = vset.pattern.permute.xlu0 0
      %2495 = vperm.xlu0 %2494, %v2449
      %v2496 = vpop.permute.xlu0 %2495
      %2499 = vset.pattern.permute.xlu0 0
      %2500 = vperm.xlu0 %2499, %v2450
      %v2501 = vpop.permute.xlu0 %2500
      %2504 = vset.pattern.permute.xlu0 0
      %2505 = vperm.xlu0 %2504, %v2451
      %v2506 = vpop.permute.xlu0 %2505
      %2509 = vset.pattern.permute.xlu0 0
      %2510 = vperm.xlu0 %2509, %v2452
      %v2511 = vpop.permute.xlu0 %2510
      %2514 = vset.pattern.permute.xlu0 0
      %2515 = vperm.xlu0 %2514, %v2453
      %v2516 = vpop.permute.xlu0 %2515
      %2519 = vset.pattern.permute.xlu0 0
      %2520 = vperm.xlu0 %2519, %v2454
      %v2521 = vpop.permute.xlu0 %2520
      %2524 = vset.pattern.permute.xlu0 0
      %2525 = vperm.xlu0 %2524, %v2455
      %v2526 = vpop.permute.xlu0 %2525
      %2529 = vset.pattern.permute.xlu0 0
      %2530 = vperm.xlu0 %2529, %v2456
      %v2531 = vpop.permute.xlu0 %2530
      %2534 = vset.pattern.permute.xlu0 0
      %2535 = vperm.xlu0 %2534, %v2457
      %v2536 = vpop.permute.xlu0 %2535
      %v2538 = vmul.f32 %v2426, %v2461
      %v2539 = vmul.f32 %v2427, %v2466
      %v2540 = vmul.f32 %v2428, %v2471
      %v2541 = vmul.f32 %v2429, %v2476
      %v2542 = vmul.f32 %v2430, %v2481
      %v2543 = vmul.f32 %v2431, %v2486
      %v2544 = vmul.f32 %v2432, %v2491
      %v2545 = vmul.f32 %v2433, %v2496
      %v2546 = vmul.f32 %v2434, %v2501
      %v2547 = vmul.f32 %v2435, %v2506
      %v2548 = vmul.f32 %v2436, %v2511
      %v2549 = vmul.f32 %v2437, %v2516
      %v2550 = vmul.f32 %v2438, %v2521
      %v2551 = vmul.f32 %v2439, %v2526
      %v2552 = vmul.f32 %v2440, %v2531
      %v2553 = vmul.f32 %v2441, %v2536
      %2554 = vst [vmem:[#allocation2 + $0x8] sm:$0xff] 0
      %2555 = vst [vmem:[#allocation2 + $0x50] sm:$0xff] 0
      %v2556 = vpack.c.bf16 %v2539, %v2538
      %v2557 = vpack.c.bf16 %v2541, %v2540
      %v2558 = vpack.c.bf16 %v2543, %v2542
      %v2559 = vpack.c.bf16 %v2545, %v2544
      %v2560 = vpack.c.bf16 %v2547, %v2546
      %v2561 = vpack.c.bf16 %v2549, %v2548
      %v2562 = vpack.c.bf16 %v2551, %v2550
      %v2563 = vpack.c.bf16 %v2553, %v2552
      %2564 = vst [vmem:[#allocation2 + $0x10] sm:$0xff] %v2556
      %2565 = vst [vmem:[#allocation2 + $0x18] sm:$0xff] %v2557
      %2566 = vst [vmem:[#allocation2 + $0x20] sm:$0xff] %v2558
      %2567 = vst [vmem:[#allocation2 + $0x28] sm:$0xff] %v2559
      %2568 = vst [vmem:[#allocation2 + $0x30] sm:$0xff] %v2560
      %2569 = vst [vmem:[#allocation2 + $0x38] sm:$0xff] %v2561
      %2570 = vst [vmem:[#allocation2 + $0x40] sm:$0xff] %v2562
      %2571 = vst [vmem:[#allocation2 + $0x48] sm:$0xff] %v2563
      %v2572 = vld [vmem:[#allocation2] sm:$0x80]
      %v2573 = vld [vmem:[#allocation2 + $0x8] sm:$0xff]
      %v2574 = vld [vmem:[#allocation2 + $0x10] sm:$0xff]
      %v2575 = vld [vmem:[#allocation2 + $0x18] sm:$0xff]
      %v2576 = vld [vmem:[#allocation2 + $0x20] sm:$0xff]
      %v2577 = vld [vmem:[#allocation2 + $0x28] sm:$0xff]
      %v2578 = vld [vmem:[#allocation2 + $0x30] sm:$0xff]
      %v2579 = vld [vmem:[#allocation2 + $0x38] sm:$0xff]
      %v2580 = vld [vmem:[#allocation2 + $0x40] sm:$0xff]
      %v2581 = vld [vmem:[#allocation2 + $0x48] sm:$0x1]
      %vm2582 = vsmask.f32 7424
      %v2584 = vshll.u32 %v2573, 16
      %v2586 = vrot.slane %v2584, 1
      %v2587 = vshrl.u32 %v2573, 16
      %v2589 = vor.u32 %v2587, %v2586
      %v2591 = vshll.u32 %v2574, 16
      %v2593 = vrot.slane %v2591, 1
      %v2594 = vsel %vm2582, %v2589, %v2593
      %v2595 = vshrl.u32 %v2574, 16
      %v2597 = vor.u32 %v2595, %v2593
      %v2599 = vshll.u32 %v2575, 16
      %v2601 = vrot.slane %v2599, 1
      %v2602 = vsel %vm2582, %v2597, %v2601
      %v2603 = vshrl.u32 %v2575, 16
      %v2605 = vor.u32 %v2603, %v2601
      %v2607 = vshll.u32 %v2576, 16
      %v2609 = vrot.slane %v2607, 1
      %v2610 = vsel %vm2582, %v2605, %v2609
      %v2611 = vshrl.u32 %v2576, 16
      %v2613 = vor.u32 %v2611, %v2609
      %v2615 = vshll.u32 %v2577, 16
      %v2617 = vrot.slane %v2615, 1
      %v2618 = vsel %vm2582, %v2613, %v2617
      %v2619 = vshrl.u32 %v2577, 16
      %v2621 = vor.u32 %v2619, %v2617
      %v2623 = vshll.u32 %v2578, 16
      %v2625 = vrot.slane %v2623, 1
      %v2626 = vsel %vm2582, %v2621, %v2625
      %v2627 = vshrl.u32 %v2578, 16
      %v2629 = vor.u32 %v2627, %v2625
      %v2631 = vshll.u32 %v2579, 16
      %v2633 = vrot.slane %v2631, 1
      %v2634 = vsel %vm2582, %v2629, %v2633
      %v2635 = vshrl.u32 %v2579, 16
      %v2637 = vor.u32 %v2635, %v2633
      %v2639 = vshll.u32 %v2580, 16
      %v2641 = vrot.slane %v2639, 1
      %v2642 = vsel %vm2582, %v2637, %v2641
      %v2643 = vshrl.u32 %v2580, 16
      %v2645 = vor.u32 %v2643, %v2641
      %vm2655 = vcmask 1046528
      %v2656 = vrot.slane %v2573, 1
      %v2657 = vrot.slane %v2574, 1
      %v2658 = vsel %vm2655, %v2656, %v2657
      %v2659 = vrot.slane %v2575, 1
      %v2660 = vsel %vm2655, %v2657, %v2659
      %v2661 = vrot.slane %v2576, 1
      %v2662 = vsel %vm2655, %v2659, %v2661
      %v2663 = vrot.slane %v2577, 1
      %v2664 = vsel %vm2655, %v2661, %v2663
      %v2665 = vrot.slane %v2578, 1
      %v2666 = vsel %vm2655, %v2663, %v2665
      %v2667 = vrot.slane %v2579, 1
      %v2668 = vsel %vm2655, %v2665, %v2667
      %v2669 = vrot.slane %v2580, 1
      %v2670 = vsel %vm2655, %v2667, %v2669
      %v2671 = vrot.slane %v2581, 1
      %v2672 = vsel %vm2655, %v2669, %v2671
      %v2673 = vld [vmem:[%s4] sm:$0xf]
      %v2674 = vld [vmem:[%s4 + $0x4] sm:$0xf]
      %v2675 = vld [vmem:[%s4 + $0x8] sm:$0xf]
      %v2676 = vld [vmem:[%s4 + $0xc] sm:$0xf]
      %v2677 = vld [vmem:[%s4 + $0x10] sm:$0xf]
      %v2678 = vld [vmem:[%s4 + $0x14] sm:$0xf]
      %v2679 = vld [vmem:[%s4 + $0x18] sm:$0xf]
      %v2680 = vld [vmem:[%s4 + $0x1c] sm:$0xf]
      %v2681 = vld [vmem:[%s4 + $0x20] sm:$0xf]
      %v2682 = vld [vmem:[%s4 + $0x24] sm:$0xf]
      %v2683 = vld [vmem:[%s4 + $0x28] sm:$0xf]
      %v2684 = vld [vmem:[%s4 + $0x2c] sm:$0xf]
      %v2685 = vld [vmem:[%s4 + $0x30] sm:$0xf]
      %v2686 = vld [vmem:[%s4 + $0x34] sm:$0xf]
      %v2687 = vld [vmem:[%s4 + $0x38] sm:$0xf]
      %v2688 = vld [vmem:[%s4 + $0x3c] sm:$0xf]
      %v2689 = vld [vmem:[%s4 + $0x40] sm:$0xf]
      %v2690 = vld [vmem:[%s4 + $0x44] sm:$0xf]
      %v2691 = vld [vmem:[%s4 + $0x48] sm:$0xf]
      %v2692 = vld [vmem:[%s4 + $0x4c] sm:$0xf]
      %v2693 = vld [vmem:[%s4 + $0x50] sm:$0xf]
      %v2694 = vld [vmem:[%s4 + $0x54] sm:$0xf]
      %v2695 = vld [vmem:[%s4 + $0x58] sm:$0xf]
      %v2696 = vld [vmem:[%s4 + $0x5c] sm:$0xf]
      %v2697 = vld [vmem:[%s4 + $0x60] sm:$0xf]
      %v2698 = vld [vmem:[%s4 + $0x64] sm:$0xf]
      %v2699 = vld [vmem:[%s4 + $0x68] sm:$0xf]
      %v2700 = vld [vmem:[%s4 + $0x6c] sm:$0xf]
      %v2701 = vld [vmem:[%s4 + $0x70] sm:$0xf]
      %v2702 = vld [vmem:[%s4 + $0x74] sm:$0xf]
      %v2703 = vld [vmem:[%s4 + $0x78] sm:$0xf]
      %v2704 = vld [vmem:[%s4 + $0x7c] sm:$0xf]
      %v2705 = vld [vmem:[%s4 + $0x80] sm:$0xf]
      %v2706 = vld [vmem:[%s4 + $0x84] sm:$0xf]
      %v2707 = vld [vmem:[%s4 + $0x88] sm:$0xf]
      %v2708 = vld [vmem:[%s4 + $0x8c] sm:$0xf]
      %v2709 = vld [vmem:[%s4 + $0x90] sm:$0xf]
      %v2710 = vld [vmem:[%s4 + $0x94] sm:$0xf]
      %v2711 = vld [vmem:[%s4 + $0x98] sm:$0xf]
      %v2712 = vld [vmem:[%s4 + $0x9c] sm:$0xf]
      %v2713 = vld [vmem:[%s4 + $0xa0] sm:$0xf]
      %v2714 = vld [vmem:[%s4 + $0xa4] sm:$0xf]
      %v2715 = vld [vmem:[%s4 + $0xa8] sm:$0xf]
      %v2716 = vld [vmem:[%s4 + $0xac] sm:$0xf]
      %v2717 = vld [vmem:[%s4 + $0xb0] sm:$0xf]
      %v2718 = vld [vmem:[%s4 + $0xb4] sm:$0xf]
      %v2719 = vld [vmem:[%s4 + $0xb8] sm:$0xf]
      %v2720 = vld [vmem:[%s4 + $0xbc] sm:$0xf]
      %v2721 = vld [vmem:[#allocation2 + $0x8] sm:$0x80]
      %v2722 = vld [vmem:[#allocation2 + $0x48] sm:$0xff]
      %v2723 = vld [vmem:[#allocation2 + $0x50] sm:$0x1]
      %v2725 = vshll.u32 %v2722, 16
      %v2727 = vrot.slane %v2725, 1
      %v2728 = vsel %vm2582, %v2645, %v2727
      %v2729 = vshrl.u32 %v2722, 16
      %v2731 = vor.u32 %v2729, %v2727
      %v2734 = vrot.slane %v2722, 1
      %v2735 = vsel %vm2655, %v2669, %v2734
      %v2736 = vrot.slane %v2723, 1
      %v2737 = vsel %vm2655, %v2734, %v2736
      %s2738 = scalar_lea.vmem %s4, 192
      %v2739 = vld [vmem:[%s2738] sm:$0xf]
      %v2740 = vld [vmem:[%s2738 + $0x4] sm:$0xf]
      %v2741 = vld [vmem:[%s2738 + $0x8] sm:$0xf]
      %v2742 = vld [vmem:[%s2738 + $0xc] sm:$0xf]
      %v2743 = vld [vmem:[%s2738 + $0x10] sm:$0xf]
      %v2744 = vld [vmem:[%s2738 + $0x14] sm:$0xf]
      %v2745 = vld [vmem:[%s2738 + $0x18] sm:$0xf]
      %v2746 = vld [vmem:[%s2738 + $0x1c] sm:$0xf]
      %v2747 = vld [vmem:[%s2738 + $0x20] sm:$0xf]
      %v2748 = vld [vmem:[%s2738 + $0x24] sm:$0xf]
      %v2749 = vld [vmem:[%s2738 + $0x28] sm:$0xf]
      %v2750 = vld [vmem:[%s2738 + $0x2c] sm:$0xf]
      %v2751 = vld [vmem:[%s2738 + $0x30] sm:$0xf]
      %v2752 = vld [vmem:[%s2738 + $0x34] sm:$0xf]
      %v2753 = vld [vmem:[%s2738 + $0x38] sm:$0xf]
      %v2754 = vld [vmem:[%s2738 + $0x3c] sm:$0xf]
      %v2755 = vld [vmem:[%s2738 + $0x40] sm:$0xf]
      %v2756 = vld [vmem:[%s2738 + $0x44] sm:$0xf]
      %v2757 = vld [vmem:[%s2738 + $0x48] sm:$0xf]
      %v2758 = vld [vmem:[%s2738 + $0x4c] sm:$0xf]
      %v2759 = vld [vmem:[%s2738 + $0x50] sm:$0xf]
      %v2760 = vld [vmem:[%s2738 + $0x54] sm:$0xf]
      %v2761 = vld [vmem:[%s2738 + $0x58] sm:$0xf]
      %v2762 = vld [vmem:[%s2738 + $0x5c] sm:$0xf]
      %v2763 = vld [vmem:[%s2738 + $0x60] sm:$0xf]
      %v2764 = vld [vmem:[%s2738 + $0x64] sm:$0xf]
      %v2765 = vld [vmem:[%s2738 + $0x68] sm:$0xf]
      %v2766 = vld [vmem:[%s2738 + $0x6c] sm:$0xf]
      %v2767 = vld [vmem:[%s2738 + $0x70] sm:$0xf]
      %v2768 = vld [vmem:[%s2738 + $0x74] sm:$0xf]
      %v2769 = vld [vmem:[%s2738 + $0x78] sm:$0xf]
      %v2770 = vld [vmem:[%s2738 + $0x7c] sm:$0xf]
      %v2771 = vld [vmem:[%s2738 + $0x80] sm:$0xf]
      %v2772 = vld [vmem:[%s2738 + $0x84] sm:$0xf]
      %v2773 = vld [vmem:[%s2738 + $0x88] sm:$0xf]
      %v2774 = vld [vmem:[%s2738 + $0x8c] sm:$0xf]
      %v2775 = vld [vmem:[%s2738 + $0x90] sm:$0xf]
      %v2776 = vld [vmem:[%s2738 + $0x94] sm:$0xf]
      %v2777 = vld [vmem:[%s2738 + $0x98] sm:$0xf]
      %v2778 = vld [vmem:[%s2738 + $0x9c] sm:$0xf]
      %v2779 = vld [vmem:[%s2738 + $0xa0] sm:$0xf]
      %v2780 = vld [vmem:[%s2738 + $0xa4] sm:$0xf]
      %v2781 = vld [vmem:[%s2738 + $0xa8] sm:$0xf]
      %v2782 = vld [vmem:[%s2738 + $0xac] sm:$0xf]
      %v2783 = vld [vmem:[%s2738 + $0xb0] sm:$0xf]
      %v2784 = vld [vmem:[%s2738 + $0xb4] sm:$0xf]
      %v2785 = vld [vmem:[%s2738 + $0xb8] sm:$0xf]
      %v2786 = vld [vmem:[%s2738 + $0xbc] sm:$0xf]
      %vm2787 = vsmask.f32 256
      %v2789 = vshrl.u32 %v2721, 16
      %v2791 = vrot.slane %v2789, 7
      %v2792 = vrot.slane %v2595, 7
      %v2793 = vor.u32 %v2792, %v2591
      %v2794 = vsel %vm2787, %v2791, %v2793
      %v2796 = vshrl.u32 %v2593, 16
      %v2798 = vrot.slane %v2796, 7
      %v2800 = vshrl.u32 %v2602, 16
      %v2802 = vrot.slane %v2800, 7
      %v2803 = vshll.u32 %v2602, 16
      %v2805 = vor.u32 %v2802, %v2803
      %v2806 = vsel %vm2787, %v2798, %v2805
      %v2808 = vshrl.u32 %v2657, 16
      %v2810 = vrot.slane %v2808, 7
      %v2812 = vshrl.u32 %v2660, 16
      %v2814 = vrot.slane %v2812, 7
      %v2815 = vshll.u32 %v2660, 16
      %v2817 = vor.u32 %v2814, %v2815
      %v2818 = vsel %vm2787, %v2810, %v2817
      %v2819 = vrot.slane %v2603, 7
      %v2820 = vor.u32 %v2819, %v2599
      %v2821 = vsel %vm2787, %v2792, %v2820
      %v2823 = vshrl.u32 %v2610, 16
      %v2825 = vrot.slane %v2823, 7
      %v2826 = vshll.u32 %v2610, 16
      %v2828 = vor.u32 %v2825, %v2826
      %v2829 = vsel %vm2787, %v2802, %v2828
      %v2831 = vshrl.u32 %v2662, 16
      %v2833 = vrot.slane %v2831, 7
      %v2834 = vshll.u32 %v2662, 16
      %v2836 = vor.u32 %v2833, %v2834
      %v2837 = vsel %vm2787, %v2814, %v2836
      %v2838 = vrot.slane %v2611, 7
      %v2839 = vor.u32 %v2838, %v2607
      %v2840 = vsel %vm2787, %v2819, %v2839
      %v2842 = vshrl.u32 %v2618, 16
      %v2844 = vrot.slane %v2842, 7
      %v2845 = vshll.u32 %v2618, 16
      %v2847 = vor.u32 %v2844, %v2845
      %v2848 = vsel %vm2787, %v2825, %v2847
      %v2850 = vshrl.u32 %v2664, 16
      %v2852 = vrot.slane %v2850, 7
      %v2853 = vshll.u32 %v2664, 16
      %v2855 = vor.u32 %v2852, %v2853
      %v2856 = vsel %vm2787, %v2833, %v2855
      %v2857 = vrot.slane %v2619, 7
      %v2858 = vor.u32 %v2857, %v2615
      %v2859 = vsel %vm2787, %v2838, %v2858
      %v2861 = vshrl.u32 %v2626, 16
      %v2863 = vrot.slane %v2861, 7
      %v2864 = vshll.u32 %v2626, 16
      %v2866 = vor.u32 %v2863, %v2864
      %v2867 = vsel %vm2787, %v2844, %v2866
      %v2869 = vshrl.u32 %v2666, 16
      %v2871 = vrot.slane %v2869, 7
      %v2872 = vshll.u32 %v2666, 16
      %v2874 = vor.u32 %v2871, %v2872
      %v2875 = vsel %vm2787, %v2852, %v2874
      %v2876 = vrot.slane %v2627, 7
      %v2877 = vor.u32 %v2876, %v2623
      %v2878 = vsel %vm2787, %v2857, %v2877
      %v2880 = vshrl.u32 %v2634, 16
      %v2882 = vrot.slane %v2880, 7
      %v2883 = vshll.u32 %v2634, 16
      %v2885 = vor.u32 %v2882, %v2883
      %v2886 = vsel %vm2787, %v2863, %v2885
      %v2888 = vshrl.u32 %v2668, 16
      %v2890 = vrot.slane %v2888, 7
      %v2891 = vshll.u32 %v2668, 16
      %v2893 = vor.u32 %v2890, %v2891
      %v2894 = vsel %vm2787, %v2871, %v2893
      %v2895 = vrot.slane %v2635, 7
      %v2896 = vor.u32 %v2895, %v2631
      %v2897 = vsel %vm2787, %v2876, %v2896
      %v2899 = vshrl.u32 %v2642, 16
      %v2901 = vrot.slane %v2899, 7
      %v2902 = vshll.u32 %v2642, 16
      %v2904 = vor.u32 %v2901, %v2902
      %v2905 = vsel %vm2787, %v2882, %v2904
      %v2907 = vshrl.u32 %v2670, 16
      %v2909 = vrot.slane %v2907, 7
      %v2910 = vshll.u32 %v2670, 16
      %v2912 = vor.u32 %v2909, %v2910
      %v2913 = vsel %vm2787, %v2890, %v2912
      %v2914 = vrot.slane %v2643, 7
      %v2915 = vor.u32 %v2914, %v2639
      %v2916 = vsel %vm2787, %v2895, %v2915
      %v2918 = vshrl.u32 %v2728, 16
      %v2920 = vrot.slane %v2918, 7
      %v2921 = vshll.u32 %v2728, 16
      %v2923 = vor.u32 %v2920, %v2921
      %v2924 = vsel %vm2787, %v2901, %v2923
      %v2926 = vshrl.u32 %v2735, 16
      %v2928 = vrot.slane %v2926, 7
      %v2929 = vshll.u32 %v2735, 16
      %v2931 = vor.u32 %v2928, %v2929
      %v2932 = vsel %vm2787, %v2909, %v2931
      %v2933 = vrot.slane %v2729, 7
      %v2934 = vor.u32 %v2933, %v2725
      %v2935 = vsel %vm2787, %v2914, %v2934
      %v2937 = vshrl.u32 %v2731, 16
      %v2939 = vrot.slane %v2937, 7
      %v2940 = vshll.u32 %v2731, 16
      %v2942 = vor.u32 %v2939, %v2940
      %v2943 = vsel %vm2787, %v2920, %v2942
      %v2945 = vshrl.u32 %v2737, 16
      %v2947 = vrot.slane %v2945, 7
      %v2948 = vshll.u32 %v2737, 16
      %v2950 = vor.u32 %v2947, %v2948
      %v2951 = vsel %vm2787, %v2928, %v2950
      %v3024 = vunpack.c.l.b16 %v2739
      %v3025 = vunpack.c.l.b16 %v2740
      %v3026 = vunpack.c.l.b16 %v2741
      %v3027 = vunpack.c.l.b16 %v2742
      %v3028 = vunpack.c.l.b16 %v2743
      %v3029 = vunpack.c.l.b16 %v2744
      %v3030 = vunpack.c.l.b16 %v2745
      %v3031 = vunpack.c.l.b16 %v2746
      %v3032 = vunpack.c.l.b16 %v2747
      %v3033 = vunpack.c.l.b16 %v2748
      %v3034 = vunpack.c.l.b16 %v2749
      %v3035 = vunpack.c.l.b16 %v2750
      %v3036 = vunpack.c.l.b16 %v2751
      %v3037 = vunpack.c.l.b16 %v2752
      %v3038 = vunpack.c.l.b16 %v2753
      %v3039 = vunpack.c.l.b16 %v2754
      %v3040 = vunpack.c.l.b16 %v2755
      %v3041 = vunpack.c.l.b16 %v2756
      %v3042 = vunpack.c.l.b16 %v2757
      %v3043 = vunpack.c.l.b16 %v2758
      %v3044 = vunpack.c.l.b16 %v2759
      %v3045 = vunpack.c.l.b16 %v2760
      %v3046 = vunpack.c.l.b16 %v2761
      %v3047 = vunpack.c.l.b16 %v2762
      %v3048 = vunpack.c.l.b16 %v2763
      %v3049 = vunpack.c.l.b16 %v2764
      %v3050 = vunpack.c.l.b16 %v2765
      %v3051 = vunpack.c.l.b16 %v2766
      %v3052 = vunpack.c.l.b16 %v2767
      %v3053 = vunpack.c.l.b16 %v2768
      %v3054 = vunpack.c.l.b16 %v2769
      %v3055 = vunpack.c.l.b16 %v2770
      %v3056 = vunpack.c.l.b16 %v2771
      %v3057 = vunpack.c.l.b16 %v2772
      %v3058 = vunpack.c.l.b16 %v2773
      %v3059 = vunpack.c.l.b16 %v2774
      %v3060 = vunpack.c.l.b16 %v2775
      %v3061 = vunpack.c.l.b16 %v2776
      %v3062 = vunpack.c.l.b16 %v2777
      %v3063 = vunpack.c.l.b16 %v2778
      %v3064 = vunpack.c.l.b16 %v2779
      %v3065 = vunpack.c.l.b16 %v2780
      %v3066 = vunpack.c.l.b16 %v2781
      %v3067 = vunpack.c.l.b16 %v2782
      %v3068 = vunpack.c.l.b16 %v2783
      %v3069 = vunpack.c.l.b16 %v2784
      %v3070 = vunpack.c.l.b16 %v2785
      %v3071 = vunpack.c.l.b16 %v2786
      %v3072 = vpack.c.b16 %v3025, %v3024
      %v3073 = vpack.c.b16 %v3027, %v3026
      %v3074 = vpack.c.b16 %v3029, %v3028
      %v3075 = vpack.c.b16 %v3031, %v3030
      %v3076 = vpack.c.b16 %v3033, %v3032
      %v3077 = vpack.c.b16 %v3035, %v3034
      %v3078 = vpack.c.b16 %v3037, %v3036
      %v3079 = vpack.c.b16 %v3039, %v3038
      %v3080 = vpack.c.b16 %v3041, %v3040
      %v3081 = vpack.c.b16 %v3043, %v3042
      %v3082 = vpack.c.b16 %v3045, %v3044
      %v3083 = vpack.c.b16 %v3047, %v3046
      %v3084 = vpack.c.b16 %v3049, %v3048
      %v3085 = vpack.c.b16 %v3051, %v3050
      %v3086 = vpack.c.b16 %v3053, %v3052
      %v3087 = vpack.c.b16 %v3055, %v3054
      %v3088 = vpack.c.b16 %v3057, %v3056
      %v3089 = vpack.c.b16 %v3059, %v3058
      %v3090 = vpack.c.b16 %v3061, %v3060
      %v3091 = vpack.c.b16 %v3063, %v3062
      %v3092 = vpack.c.b16 %v3065, %v3064
      %v3093 = vpack.c.b16 %v3067, %v3066
      %v3094 = vpack.c.b16 %v3069, %v3068
      %v3095 = vpack.c.b16 %v3071, %v3070
      %3120 = vmatprep.subr.bf16.mxu0 0
      %3121 = vmatpush1.bf16.msra.mxu0 %v3072
      %3122 = vmatprep.subr.bf16.mxu0 0
      %3123 = vmatpush1.bf16.msra.mxu0 %v3073
      %3124 = vmatprep.subr.bf16.mxu0 0
      %3125 = vmatpush1.bf16.msra.mxu0 %v3074
      %3126 = vmatprep.subr.bf16.mxu0 0
      %3127 = vmatpush1.bf16.msra.mxu0 %v3075
      %3128 = vmatprep.subr.bf16.mxu0 0
      %3129 = vmatpush1.bf16.msra.mxu0 %v3076
      %3130 = vmatprep.subr.bf16.mxu0 0
      %3131 = vmatpush1.bf16.msra.mxu0 %v3077
      %3132 = vmatprep.subr.bf16.mxu0 0
      %3133 = vmatpush1.bf16.msra.mxu0 %v3078
      %3134 = vmatprep.subr.bf16.mxu0 0
      %3135 = vmatpush1.bf16.msra.mxu0 %v3079
      %3136 = vmatprep.subr.bf16.mxu0 0
      %3137 = vmatpush1.bf16.msra.mxu0 %v3080
      %3138 = vmatprep.subr.bf16.mxu0 0
      %3139 = vmatpush1.bf16.msra.mxu0 %v3081
      %3140 = vmatprep.subr.bf16.mxu0 0
      %3141 = vmatpush1.bf16.msra.mxu0 %v3082
      %3142 = vmatprep.subr.bf16.mxu0 0
      %3143 = vmatpush1.bf16.msra.mxu0 %v3083
      %3144 = vmatprep.subr.bf16.mxu0 0
      %3145 = vmatpush1.bf16.msra.mxu0 %v3084
      %3146 = vmatprep.subr.bf16.mxu0 0
      %3147 = vmatpush1.bf16.msra.mxu0 %v3085
      %3148 = vmatprep.subr.bf16.mxu0 0
      %3149 = vmatpush1.bf16.msra.mxu0 %v3086
      %3150 = vmatprep.subr.bf16.mxu0 0
      %3151 = vmatpush1.bf16.msra.mxu0 %v3087
      %3152 = vmatprep.mubr.bf16.mxu0 %v2806
      %3153 = vmatmul.mubr.bf16.gmra.mrb[0].mxu0 %v2794
      %v3154 = vpop.f32.mrb[0].mxu0
      %v3155 = vadd.f32 0.0, %v3154
      %v3156 = vpop.f32.mrb[0].mxu0
      %v3157 = vpop.f32.mrb[0].mxu0
      %v3158 = vadd.f32 0.0, %v3157
      %v3159 = vpop.f32.mrb[0].mxu0
      %3160 = vmatprep.mubr.bf16.mxu0 %v2829
      %3161 = vmatmul.mubr.bf16.gmra.mrb[0].mxu0 %v2821
      %v3162 = vpop.f32.mrb[0].mxu0
      %v3163 = vadd.f32 0.0, %v3162
      %v3164 = vpop.f32.mrb[0].mxu0
      %v3165 = vpop.f32.mrb[0].mxu0
      %v3166 = vadd.f32 0.0, %v3165
      %v3167 = vpop.f32.mrb[0].mxu0
      %3168 = vmatprep.mubr.bf16.mxu0 %v2848
      %3169 = vmatmul.mubr.bf16.gmra.mrb[0].mxu0 %v2840
      %v3170 = vpop.f32.mrb[0].mxu0
      %v3171 = vadd.f32 0.0, %v3170
      %v3172 = vpop.f32.mrb[0].mxu0
      %v3173 = vpop.f32.mrb[0].mxu0
      %v3174 = vadd.f32 0.0, %v3173
      %v3175 = vpop.f32.mrb[0].mxu0
      %3176 = vmatprep.mubr.bf16.mxu0 %v2867
      %3177 = vmatmul.mubr.bf16.gmra.mrb[0].mxu0 %v2859
      %v3178 = vpop.f32.mrb[0].mxu0
      %v3179 = vadd.f32 0.0, %v3178
      %v3180 = vpop.f32.mrb[0].mxu0
      %v3181 = vpop.f32.mrb[0].mxu0
      %v3182 = vadd.f32 0.0, %v3181
      %v3183 = vpop.f32.mrb[0].mxu0
      %3184 = vmatprep.mubr.bf16.mxu0 %v2886
      %3185 = vmatmul.mubr.bf16.gmra.mrb[0].mxu0 %v2878
      %v3186 = vpop.f32.mrb[0].mxu0
      %v3187 = vadd.f32 0.0, %v3186
      %v3188 = vpop.f32.mrb[0].mxu0
      %v3189 = vpop.f32.mrb[0].mxu0
      %v3190 = vadd.f32 0.0, %v3189
      %v3191 = vpop.f32.mrb[0].mxu0
      %3192 = vmatprep.mubr.bf16.mxu0 %v2905
      %3193 = vmatmul.mubr.bf16.gmra.mrb[0].mxu0 %v2897
      %v3194 = vpop.f32.mrb[0].mxu0
      %v3195 = vadd.f32 0.0, %v3194
      %v3196 = vpop.f32.mrb[0].mxu0
      %v3197 = vpop.f32.mrb[0].mxu0
      %v3198 = vadd.f32 0.0, %v3197
      %v3199 = vpop.f32.mrb[0].mxu0
      %3200 = vmatprep.mubr.bf16.mxu0 %v2924
      %3201 = vmatmul.mubr.bf16.gmra.mrb[0].mxu0 %v2916
      %v3202 = vpop.f32.mrb[0].mxu0
      %v3203 = vadd.f32 0.0, %v3202
      %v3204 = vpop.f32.mrb[0].mxu0
      %v3205 = vpop.f32.mrb[0].mxu0
      %v3206 = vadd.f32 0.0, %v3205
      %v3207 = vpop.f32.mrb[0].mxu0
      %3208 = vmatprep.mubr.bf16.mxu0 %v2943
      %3209 = vmatmul.mubr.bf16.gmra.mrb[0].mxu0 %v2935
      %v3210 = vpop.f32.mrb[0].mxu0
      %v3211 = vadd.f32 0.0, %v3210
      %v3212 = vpop.f32.mrb[0].mxu0
      %v3213 = vpop.f32.mrb[0].mxu0
      %v3214 = vadd.f32 0.0, %v3213
      %v3215 = vpop.f32.mrb[0].mxu0
      %3216 = vdwg.mxu0
      %3217 = vmatprep.subr.bf16.mxu0 0
      %3218 = vmatpush1.bf16.msra.mxu0 %v3088
      %3219 = vmatprep.subr.bf16.mxu0 0
      %3220 = vmatpush1.bf16.msra.mxu0 %v3089
      %3221 = vmatprep.subr.bf16.mxu0 0
      %3222 = vmatpush1.bf16.msra.mxu0 %v3090
      %3223 = vmatprep.subr.bf16.mxu0 0
      %3224 = vmatpush1.bf16.msra.mxu0 %v3091
      %3225 = vmatprep.subr.bf16.mxu0 0
      %3226 = vmatpush1.bf16.msra.mxu0 %v3092
      %3227 = vmatprep.subr.bf16.mxu0 0
      %3228 = vmatpush1.bf16.msra.mxu0 %v3093
      %3229 = vmatprep.subr.bf16.mxu0 0
      %3230 = vmatpush1.bf16.msra.mxu0 %v3094
      %3231 = vmatprep.subr.bf16.mxu0 0
      %3232 = vmatpush1.bf16.msra.mxu0 %v3095
      %3233 = vmatprep.subr.bf16.mxu0 0
      %3234 = vmatpush1.bf16.msra.mxu0 0
      %3235 = vmatprep.subr.bf16.mxu0 0
      %3236 = vmatpush1.bf16.msra.mxu0 0
      %3237 = vmatprep.subr.bf16.mxu0 0
      %3238 = vmatpush1.bf16.msra.mxu0 0
      %3239 = vmatprep.subr.bf16.mxu0 0
      %3240 = vmatpush1.bf16.msra.mxu0 0
      %3241 = vmatprep.subr.bf16.mxu0 0
      %3242 = vmatpush1.bf16.msra.mxu0 0
      %3243 = vmatprep.subr.bf16.mxu0 0
      %3244 = vmatpush1.bf16.msra.mxu0 0
      %3245 = vmatprep.subr.bf16.mxu0 0
      %3246 = vmatpush1.bf16.msra.mxu0 0
      %3247 = vmatprep.subr.bf16.mxu0 0
      %3248 = vmatpush1.bf16.msra.mxu0 0
      %3249 = vmatprep.mubr.bf16.mxu0 0
      %3250 = vmatmul.mubr.bf16.gmra.mrb[0].mxu0 %v2818
      %v3251 = vpop.f32.mrb[0].mxu0
      %v3252 = vadd.f32 %v3155, %v3251
      %v3253 = vpop.f32.mrb[0].mxu0
      %v3254 = vpop.f32.mrb[0].mxu0
      %v3255 = vadd.f32 %v3158, %v3254
      %v3256 = vpop.f32.mrb[0].mxu0
      %3257 = vmatprep.mubr.bf16.mxu0 0
      %3258 = vmatmul.mubr.bf16.gmra.mrb[0].mxu0 %v2837
      %v3259 = vpop.f32.mrb[0].mxu0
      %v3260 = vadd.f32 %v3163, %v3259
      %v3261 = vpop.f32.mrb[0].mxu0
      %v3262 = vpop.f32.mrb[0].mxu0
      %v3263 = vadd.f32 %v3166, %v3262
      %v3264 = vpop.f32.mrb[0].mxu0
      %3265 = vmatprep.mubr.bf16.mxu0 0
      %3266 = vmatmul.mubr.bf16.gmra.mrb[0].mxu0 %v2856
      %v3267 = vpop.f32.mrb[0].mxu0
      %v3268 = vadd.f32 %v3171, %v3267
      %v3269 = vpop.f32.mrb[0].mxu0
      %v3270 = vpop.f32.mrb[0].mxu0
      %v3271 = vadd.f32 %v3174, %v3270
      %v3272 = vpop.f32.mrb[0].mxu0
      %3273 = vmatprep.mubr.bf16.mxu0 0
      %3274 = vmatmul.mubr.bf16.gmra.mrb[0].mxu0 %v2875
      %v3275 = vpop.f32.mrb[0].mxu0
      %v3276 = vadd.f32 %v3179, %v3275
      %v3277 = vpop.f32.mrb[0].mxu0
      %v3278 = vpop.f32.mrb[0].mxu0
      %v3279 = vadd.f32 %v3182, %v3278
      %v3280 = vpop.f32.mrb[0].mxu0
      %3281 = vmatprep.mubr.bf16.mxu0 0
      %3282 = vmatmul.mubr.bf16.gmra.mrb[0].mxu0 %v2894
      %v3283 = vpop.f32.mrb[0].mxu0
      %v3284 = vadd.f32 %v3187, %v3283
      %v3285 = vpop.f32.mrb[0].mxu0
      %v3286 = vpop.f32.mrb[0].mxu0
      %v3287 = vadd.f32 %v3190, %v3286
      %v3288 = vpop.f32.mrb[0].mxu0
      %3289 = vmatprep.mubr.bf16.mxu0 0
      %3290 = vmatmul.mubr.bf16.gmra.mrb[0].mxu0 %v2913
      %v3291 = vpop.f32.mrb[0].mxu0
      %v3292 = vadd.f32 %v3195, %v3291
      %v3293 = vpop.f32.mrb[0].mxu0
      %v3294 = vpop.f32.mrb[0].mxu0
      %v3295 = vadd.f32 %v3198, %v3294
      %v3296 = vpop.f32.mrb[0].mxu0
      %3297 = vmatprep.mubr.bf16.mxu0 0
      %3298 = vmatmul.mubr.bf16.gmra.mrb[0].mxu0 %v2932
      %v3299 = vpop.f32.mrb[0].mxu0
      %v3300 = vadd.f32 %v3203, %v3299
      %v3301 = vpop.f32.mrb[0].mxu0
      %v3302 = vpop.f32.mrb[0].mxu0
      %v3303 = vadd.f32 %v3206, %v3302
      %v3304 = vpop.f32.mrb[0].mxu0
      %3305 = vmatprep.mubr.bf16.mxu0 0
      %3306 = vmatmul.mubr.bf16.gmra.mrb[0].mxu0 %v2951
      %v3307 = vpop.f32.mrb[0].mxu0
      %v3308 = vadd.f32 %v3211, %v3307
      %v3309 = vpop.f32.mrb[0].mxu0
      %v3310 = vpop.f32.mrb[0].mxu0
      %v3311 = vadd.f32 %v3214, %v3310
      %v3312 = vpop.f32.mrb[0].mxu0
      %3313 = vdwg.mxu0
      %v3315 = vshrl.u32 %v2572, 16
      %v3317 = vrot.slane %v3315, 7
      %v3318 = vrot.slane %v2587, 7
      %v3319 = vor.u32 %v3318, %v2584
      %v3320 = vsel %vm2787, %v3317, %v3319
      %v3322 = vshrl.u32 %v2586, 16
      %v3324 = vrot.slane %v3322, 7
      %v3326 = vshrl.u32 %v2594, 16
      %v3328 = vrot.slane %v3326, 7
      %v3329 = vshll.u32 %v2594, 16
      %v3331 = vor.u32 %v3328, %v3329
      %v3332 = vsel %vm2787, %v3324, %v3331
      %v3334 = vshrl.u32 %v2656, 16
      %v3336 = vrot.slane %v3334, 7
      %v3338 = vshrl.u32 %v2658, 16
      %v3340 = vrot.slane %v3338, 7
      %v3341 = vshll.u32 %v2658, 16
      %v3343 = vor.u32 %v3340, %v3341
      %v3344 = vsel %vm2787, %v3336, %v3343
      %v3345 = vsel %vm2787, %v3318, %v2793
      %v3346 = vsel %vm2787, %v3328, %v2805
      %v3347 = vsel %vm2787, %v3340, %v2817
      %v3349 = vshrl.u32 %v2645, 16
      %v3351 = vrot.slane %v3349, 7
      %v3352 = vshll.u32 %v2645, 16
      %v3354 = vor.u32 %v3351, %v3352
      %v3355 = vsel %vm2787, %v2901, %v3354
      %v3357 = vshrl.u32 %v2672, 16
      %v3359 = vrot.slane %v3357, 7
      %v3360 = vshll.u32 %v2672, 16
      %v3362 = vor.u32 %v3359, %v3360
      %v3363 = vsel %vm2787, %v2909, %v3362
      %v3420 = vunpack.c.l.b16 %v2673
      %v3421 = vunpack.c.l.b16 %v2674
      %v3422 = vunpack.c.l.b16 %v2675
      %v3423 = vunpack.c.l.b16 %v2676
      %v3424 = vunpack.c.l.b16 %v2677
      %v3425 = vunpack.c.l.b16 %v2678
      %v3426 = vunpack.c.l.b16 %v2679
      %v3427 = vunpack.c.l.b16 %v2680
      %v3428 = vunpack.c.l.b16 %v2681
      %v3429 = vunpack.c.l.b16 %v2682
      %v3430 = vunpack.c.l.b16 %v2683
      %v3431 = vunpack.c.l.b16 %v2684
      %v3432 = vunpack.c.l.b16 %v2685
      %v3433 = vunpack.c.l.b16 %v2686
      %v3434 = vunpack.c.l.b16 %v2687
      %v3435 = vunpack.c.l.b16 %v2688
      %v3436 = vunpack.c.l.b16 %v2689
      %v3437 = vunpack.c.l.b16 %v2690
      %v3438 = vunpack.c.l.b16 %v2691
      %v3439 = vunpack.c.l.b16 %v2692
      %v3440 = vunpack.c.l.b16 %v2693
      %v3441 = vunpack.c.l.b16 %v2694
      %v3442 = vunpack.c.l.b16 %v2695
      %v3443 = vunpack.c.l.b16 %v2696
      %v3444 = vunpack.c.l.b16 %v2697
      %v3445 = vunpack.c.l.b16 %v2698
      %v3446 = vunpack.c.l.b16 %v2699
      %v3447 = vunpack.c.l.b16 %v2700
      %v3448 = vunpack.c.l.b16 %v2701
      %v3449 = vunpack.c.l.b16 %v2702
      %v3450 = vunpack.c.l.b16 %v2703
      %v3451 = vunpack.c.l.b16 %v2704
      %v3452 = vunpack.c.l.b16 %v2705
      %v3453 = vunpack.c.l.b16 %v2706
      %v3454 = vunpack.c.l.b16 %v2707
      %v3455 = vunpack.c.l.b16 %v2708
      %v3456 = vunpack.c.l.b16 %v2709
      %v3457 = vunpack.c.l.b16 %v2710
      %v3458 = vunpack.c.l.b16 %v2711
      %v3459 = vunpack.c.l.b16 %v2712
      %v3460 = vunpack.c.l.b16 %v2713
      %v3461 = vunpack.c.l.b16 %v2714
      %v3462 = vunpack.c.l.b16 %v2715
      %v3463 = vunpack.c.l.b16 %v2716
      %v3464 = vunpack.c.l.b16 %v2717
      %v3465 = vunpack.c.l.b16 %v2718
      %v3466 = vunpack.c.l.b16 %v2719
      %v3467 = vunpack.c.l.b16 %v2720
      %v3468 = vpack.c.b16 %v3421, %v3420
      %v3469 = vpack.c.b16 %v3423, %v3422
      %v3470 = vpack.c.b16 %v3425, %v3424
      %v3471 = vpack.c.b16 %v3427, %v3426
      %v3472 = vpack.c.b16 %v3429, %v3428
      %v3473 = vpack.c.b16 %v3431, %v3430
      %v3474 = vpack.c.b16 %v3433, %v3432
      %v3475 = vpack.c.b16 %v3435, %v3434
      %v3476 = vpack.c.b16 %v3437, %v3436
      %v3477 = vpack.c.b16 %v3439, %v3438
      %v3478 = vpack.c.b16 %v3441, %v3440
      %v3479 = vpack.c.b16 %v3443, %v3442
      %v3480 = vpack.c.b16 %v3445, %v3444
      %v3481 = vpack.c.b16 %v3447, %v3446
      %v3482 = vpack.c.b16 %v3449, %v3448
      %v3483 = vpack.c.b16 %v3451, %v3450
      %v3484 = vpack.c.b16 %v3453, %v3452
      %v3485 = vpack.c.b16 %v3455, %v3454
      %v3486 = vpack.c.b16 %v3457, %v3456
      %v3487 = vpack.c.b16 %v3459, %v3458
      %v3488 = vpack.c.b16 %v3461, %v3460
      %v3489 = vpack.c.b16 %v3463, %v3462
      %v3490 = vpack.c.b16 %v3465, %v3464
      %v3491 = vpack.c.b16 %v3467, %v3466
      %3516 = vmatprep.subr.bf16.mxu0 0
      %3517 = vmatpush1.bf16.msra.mxu0 %v3468
      %3518 = vmatprep.subr.bf16.mxu0 0
      %3519 = vmatpush1.bf16.msra.mxu0 %v3469
      %3520 = vmatprep.subr.bf16.mxu0 0
      %3521 = vmatpush1.bf16.msra.mxu0 %v3470
      %3522 = vmatprep.subr.bf16.mxu0 0
      %3523 = vmatpush1.bf16.msra.mxu0 %v3471
      %3524 = vmatprep.subr.bf16.mxu0 0
      %3525 = vmatpush1.bf16.msra.mxu0 %v3472
      %3526 = vmatprep.subr.bf16.mxu0 0
      %3527 = vmatpush1.bf16.msra.mxu0 %v3473
      %3528 = vmatprep.subr.bf16.mxu0 0
      %3529 = vmatpush1.bf16.msra.mxu0 %v3474
      %3530 = vmatprep.subr.bf16.mxu0 0
      %3531 = vmatpush1.bf16.msra.mxu0 %v3475
      %3532 = vmatprep.subr.bf16.mxu0 0
      %3533 = vmatpush1.bf16.msra.mxu0 %v3476
      %3534 = vmatprep.subr.bf16.mxu0 0
      %3535 = vmatpush1.bf16.msra.mxu0 %v3477
      %3536 = vmatprep.subr.bf16.mxu0 0
      %3537 = vmatpush1.bf16.msra.mxu0 %v3478
      %3538 = vmatprep.subr.bf16.mxu0 0
      %3539 = vmatpush1.bf16.msra.mxu0 %v3479
      %3540 = vmatprep.subr.bf16.mxu0 0
      %3541 = vmatpush1.bf16.msra.mxu0 %v3480
      %3542 = vmatprep.subr.bf16.mxu0 0
      %3543 = vmatpush1.bf16.msra.mxu0 %v3481
      %3544 = vmatprep.subr.bf16.mxu0 0
      %3545 = vmatpush1.bf16.msra.mxu0 %v3482
      %3546 = vmatprep.subr.bf16.mxu0 0
      %3547 = vmatpush1.bf16.msra.mxu0 %v3483
      %3548 = vmatprep.mubr.bf16.mxu0 %v3332
      %3549 = vmatmul.mubr.bf16.gmra.mrb[0].mxu0 %v3320
      %v3550 = vpop.f32.mrb[0].mxu0
      %v3551 = vadd.f32 %v3252, %v3550
      %v3552 = vpop.f32.mrb[0].mxu0
      %v3553 = vpop.f32.mrb[0].mxu0
      %v3554 = vadd.f32 %v3255, %v3553
      %v3555 = vpop.f32.mrb[0].mxu0
      %3556 = vmatprep.mubr.bf16.mxu0 %v3346
      %3557 = vmatmul.mubr.bf16.gmra.mrb[0].mxu0 %v3345
      %v3558 = vpop.f32.mrb[0].mxu0
      %v3559 = vadd.f32 %v3260, %v3558
      %v3560 = vpop.f32.mrb[0].mxu0
      %v3561 = vpop.f32.mrb[0].mxu0
      %v3562 = vadd.f32 %v3263, %v3561
      %v3563 = vpop.f32.mrb[0].mxu0
      %3564 = vmatprep.mubr.bf16.mxu0 %v2829
      %3565 = vmatmul.mubr.bf16.gmra.mrb[0].mxu0 %v2821
      %v3566 = vpop.f32.mrb[0].mxu0
      %v3567 = vadd.f32 %v3268, %v3566
      %v3568 = vpop.f32.mrb[0].mxu0
      %v3569 = vpop.f32.mrb[0].mxu0
      %v3570 = vadd.f32 %v3271, %v3569
      %v3571 = vpop.f32.mrb[0].mxu0
      %3572 = vmatprep.mubr.bf16.mxu0 %v2848
      %3573 = vmatmul.mubr.bf16.gmra.mrb[0].mxu0 %v2840
      %v3574 = vpop.f32.mrb[0].mxu0
      %v3575 = vadd.f32 %v3276, %v3574
      %v3576 = vpop.f32.mrb[0].mxu0
      %v3577 = vpop.f32.mrb[0].mxu0
      %v3578 = vadd.f32 %v3279, %v3577
      %v3579 = vpop.f32.mrb[0].mxu0
      %3580 = vmatprep.mubr.bf16.mxu0 %v2867
      %3581 = vmatmul.mubr.bf16.gmra.mrb[0].mxu0 %v2859
      %v3582 = vpop.f32.mrb[0].mxu0
      %v3583 = vadd.f32 %v3284, %v3582
      %v3584 = vpop.f32.mrb[0].mxu0
      %v3585 = vpop.f32.mrb[0].mxu0
      %v3586 = vadd.f32 %v3287, %v3585
      %v3587 = vpop.f32.mrb[0].mxu0
      %3588 = vmatprep.mubr.bf16.mxu0 %v2886
      %3589 = vmatmul.mubr.bf16.gmra.mrb[0].mxu0 %v2878
      %v3590 = vpop.f32.mrb[0].mxu0
      %v3591 = vadd.f32 %v3292, %v3590
      %v3592 = vpop.f32.mrb[0].mxu0
      %v3593 = vpop.f32.mrb[0].mxu0
      %v3594 = vadd.f32 %v3295, %v3593
      %v3595 = vpop.f32.mrb[0].mxu0
      %3596 = vmatprep.mubr.bf16.mxu0 %v2905
      %3597 = vmatmul.mubr.bf16.gmra.mrb[0].mxu0 %v2897
      %v3598 = vpop.f32.mrb[0].mxu0
      %v3599 = vadd.f32 %v3300, %v3598
      %v3600 = vpop.f32.mrb[0].mxu0
      %v3601 = vpop.f32.mrb[0].mxu0
      %v3602 = vadd.f32 %v3303, %v3601
      %v3603 = vpop.f32.mrb[0].mxu0
      %3604 = vmatprep.mubr.bf16.mxu0 %v3355
      %3605 = vmatmul.mubr.bf16.gmra.mrb[0].mxu0 %v2916
      %v3606 = vpop.f32.mrb[0].mxu0
      %v3607 = vadd.f32 %v3308, %v3606
      %v3608 = vpop.f32.mrb[0].mxu0
      %v3609 = vpop.f32.mrb[0].mxu0
      %v3610 = vadd.f32 %v3311, %v3609
      %v3611 = vpop.f32.mrb[0].mxu0
      %3612 = vdwg.mxu0
      %3613 = vmatprep.subr.bf16.mxu0 0
      %3614 = vmatpush1.bf16.msra.mxu0 %v3484
      %3615 = vmatprep.subr.bf16.mxu0 0
      %3616 = vmatpush1.bf16.msra.mxu0 %v3485
      %3617 = vmatprep.subr.bf16.mxu0 0
      %3618 = vmatpush1.bf16.msra.mxu0 %v3486
      %3619 = vmatprep.subr.bf16.mxu0 0
      %3620 = vmatpush1.bf16.msra.mxu0 %v3487
      %3621 = vmatprep.subr.bf16.mxu0 0
      %3622 = vmatpush1.bf16.msra.mxu0 %v3488
      %3623 = vmatprep.subr.bf16.mxu0 0
      %3624 = vmatpush1.bf16.msra.mxu0 %v3489
      %3625 = vmatprep.subr.bf16.mxu0 0
      %3626 = vmatpush1.bf16.msra.mxu0 %v3490
      %3627 = vmatprep.subr.bf16.mxu0 0
      %3628 = vmatpush1.bf16.msra.mxu0 %v3491
      %3629 = vmatprep.subr.bf16.mxu0 0
      %3630 = vmatpush1.bf16.msra.mxu0 0
      %3631 = vmatprep.subr.bf16.mxu0 0
      %3632 = vmatpush1.bf16.msra.mxu0 0
      %3633 = vmatprep.subr.bf16.mxu0 0
      %3634 = vmatpush1.bf16.msra.mxu0 0
      %3635 = vmatprep.subr.bf16.mxu0 0
      %3636 = vmatpush1.bf16.msra.mxu0 0
      %3637 = vmatprep.subr.bf16.mxu0 0
      %3638 = vmatpush1.bf16.msra.mxu0 0
      %3639 = vmatprep.subr.bf16.mxu0 0
      %3640 = vmatpush1.bf16.msra.mxu0 0
      %3641 = vmatprep.subr.bf16.mxu0 0
      %3642 = vmatpush1.bf16.msra.mxu0 0
      %3643 = vmatprep.subr.bf16.mxu0 0
      %3644 = vmatpush1.bf16.msra.mxu0 0
      %3645 = vmatprep.mubr.bf16.mxu0 0
      %3646 = vmatmul.mubr.bf16.gmra.mrb[0].mxu0 %v3344
      %v3647 = vpop.f32.mrb[0].mxu0
      %v3648 = vadd.f32 %v3551, %v3647
      %v3649 = vpop.f32.mrb[0].mxu0
      %v3650 = vpop.f32.mrb[0].mxu0
      %v3651 = vadd.f32 %v3554, %v3650
      %v3652 = vpop.f32.mrb[0].mxu0
      %3653 = vmatprep.mubr.bf16.mxu0 0
      %3654 = vmatmul.mubr.bf16.gmra.mrb[0].mxu0 %v3347
      %v3655 = vpop.f32.mrb[0].mxu0
      %v3656 = vadd.f32 %v3559, %v3655
      %v3657 = vpop.f32.mrb[0].mxu0
      %v3658 = vpop.f32.mrb[0].mxu0
      %v3659 = vadd.f32 %v3562, %v3658
      %v3660 = vpop.f32.mrb[0].mxu0
      %3661 = vmatprep.mubr.bf16.mxu0 0
      %3662 = vmatmul.mubr.bf16.gmra.mrb[0].mxu0 %v2837
      %v3663 = vpop.f32.mrb[0].mxu0
      %v3664 = vadd.f32 %v3567, %v3663
      %v3665 = vpop.f32.mrb[0].mxu0
      %v3666 = vpop.f32.mrb[0].mxu0
      %v3667 = vadd.f32 %v3570, %v3666
      %v3668 = vpop.f32.mrb[0].mxu0
      %3669 = vmatprep.mubr.bf16.mxu0 0
      %3670 = vmatmul.mubr.bf16.gmra.mrb[0].mxu0 %v2856
      %v3671 = vpop.f32.mrb[0].mxu0
      %v3672 = vadd.f32 %v3575, %v3671
      %v3673 = vpop.f32.mrb[0].mxu0
      %v3674 = vpop.f32.mrb[0].mxu0
      %v3675 = vadd.f32 %v3578, %v3674
      %v3676 = vpop.f32.mrb[0].mxu0
      %3677 = vmatprep.mubr.bf16.mxu0 0
      %3678 = vmatmul.mubr.bf16.gmra.mrb[0].mxu0 %v2875
      %v3679 = vpop.f32.mrb[0].mxu0
      %v3680 = vadd.f32 %v3583, %v3679
      %v3681 = vpop.f32.mrb[0].mxu0
      %v3682 = vpop.f32.mrb[0].mxu0
      %v3683 = vadd.f32 %v3586, %v3682
      %v3684 = vpop.f32.mrb[0].mxu0
      %3685 = vmatprep.mubr.bf16.mxu0 0
      %3686 = vmatmul.mubr.bf16.gmra.mrb[0].mxu0 %v2894
      %v3687 = vpop.f32.mrb[0].mxu0
      %v3688 = vadd.f32 %v3591, %v3687
      %v3689 = vpop.f32.mrb[0].mxu0
      %v3690 = vpop.f32.mrb[0].mxu0
      %v3691 = vadd.f32 %v3594, %v3690
      %v3692 = vpop.f32.mrb[0].mxu0
      %3693 = vmatprep.mubr.bf16.mxu0 0
      %3694 = vmatmul.mubr.bf16.gmra.mrb[0].mxu0 %v2913
      %v3695 = vpop.f32.mrb[0].mxu0
      %v3696 = vadd.f32 %v3599, %v3695
      %v3697 = vpop.f32.mrb[0].mxu0
      %v3698 = vpop.f32.mrb[0].mxu0
      %v3699 = vadd.f32 %v3602, %v3698
      %v3700 = vpop.f32.mrb[0].mxu0
      %3701 = vmatprep.mubr.bf16.mxu0 0
      %3702 = vmatmul.mubr.bf16.gmra.mrb[0].mxu0 %v3363
      %v3703 = vpop.f32.mrb[0].mxu0
      %v3704 = vadd.f32 %v3607, %v3703
      %v3705 = vpop.f32.mrb[0].mxu0
      %v3706 = vpop.f32.mrb[0].mxu0
      %v3707 = vadd.f32 %v3610, %v3706
      %v3708 = vpop.f32.mrb[0].mxu0
      %3709 = vdwg.mxu0
      %v3710 = vld [vmem:[#allocation2 + $0x10] sm:$0x80]
      %v3711 = vld [vmem:[#allocation2 + $0x50] sm:$0xff]
      %v3712 = vld [vmem:[#allocation2 + $0x18] sm:$0xff]
      %v3713 = vld [vmem:[#allocation2 + $0x20] sm:$0xff]
      %v3714 = vld [vmem:[#allocation2 + $0x28] sm:$0xff]
      %v3715 = vld [vmem:[#allocation2 + $0x30] sm:$0xff]
      %v3716 = vld [vmem:[#allocation2 + $0x38] sm:$0xff]
      %v3717 = vld [vmem:[#allocation2 + $0x40] sm:$0xff]
      %v3718 = vld [vmem:[#allocation2 + $0x48] sm:$0xff]
      %v3719 = vld [vmem:[#allocation2 + $0x50] sm:$0xff]
      %v3720 = vld [vmem:[#allocation2 + $0x58] sm:$0x1]
      %v3722 = vshll.u32 %v3711, 16
      %v3724 = vrot.slane %v3722, 1
      %v3725 = vsel %vm2582, %v2731, %v3724
      %v3726 = vshrl.u32 %v3711, 16
      %v3728 = vor.u32 %v3726, %v3724
      %v3738 = vrot.slane %v3712, 1
      %v3739 = vrot.slane %v3713, 1
      %v3740 = vsel %vm2655, %v3738, %v3739
      %v3741 = vrot.slane %v3714, 1
      %v3742 = vsel %vm2655, %v3739, %v3741
      %v3743 = vrot.slane %v3715, 1
      %v3744 = vsel %vm2655, %v3741, %v3743
      %v3745 = vrot.slane %v3716, 1
      %v3746 = vsel %vm2655, %v3743, %v3745
      %v3747 = vrot.slane %v3717, 1
      %v3748 = vsel %vm2655, %v3745, %v3747
      %v3749 = vrot.slane %v3718, 1
      %v3750 = vsel %vm2655, %v3747, %v3749
      %v3751 = vrot.slane %v3719, 1
      %v3752 = vsel %vm2655, %v3749, %v3751
      %v3753 = vrot.slane %v3720, 1
      %v3754 = vsel %vm2655, %v3751, %v3753
      %s3755 = scalar_lea.vmem %s4, 384
      %v3756 = vld [vmem:[%s3755] sm:$0xf]
      %v3757 = vld [vmem:[%s3755 + $0x4] sm:$0xf]
      %v3758 = vld [vmem:[%s3755 + $0x8] sm:$0xf]
      %v3759 = vld [vmem:[%s3755 + $0xc] sm:$0xf]
      %v3760 = vld [vmem:[%s3755 + $0x10] sm:$0xf]
      %v3761 = vld [vmem:[%s3755 + $0x14] sm:$0xf]
      %v3762 = vld [vmem:[%s3755 + $0x18] sm:$0xf]
      %v3763 = vld [vmem:[%s3755 + $0x1c] sm:$0xf]
      %v3764 = vld [vmem:[%s3755 + $0x20] sm:$0xf]
      %v3765 = vld [vmem:[%s3755 + $0x24] sm:$0xf]
      %v3766 = vld [vmem:[%s3755 + $0x28] sm:$0xf]
      %v3767 = vld [vmem:[%s3755 + $0x2c] sm:$0xf]
      %v3768 = vld [vmem:[%s3755 + $0x30] sm:$0xf]
      %v3769 = vld [vmem:[%s3755 + $0x34] sm:$0xf]
      %v3770 = vld [vmem:[%s3755 + $0x38] sm:$0xf]
      %v3771 = vld [vmem:[%s3755 + $0x3c] sm:$0xf]
      %v3772 = vld [vmem:[%s3755 + $0x40] sm:$0xf]
      %v3773 = vld [vmem:[%s3755 + $0x44] sm:$0xf]
      %v3774 = vld [vmem:[%s3755 + $0x48] sm:$0xf]
      %v3775 = vld [vmem:[%s3755 + $0x4c] sm:$0xf]
      %v3776 = vld [vmem:[%s3755 + $0x50] sm:$0xf]
      %v3777 = vld [vmem:[%s3755 + $0x54] sm:$0xf]
      %v3778 = vld [vmem:[%s3755 + $0x58] sm:$0xf]
      %v3779 = vld [vmem:[%s3755 + $0x5c] sm:$0xf]
      %v3780 = vld [vmem:[%s3755 + $0x60] sm:$0xf]
      %v3781 = vld [vmem:[%s3755 + $0x64] sm:$0xf]
      %v3782 = vld [vmem:[%s3755 + $0x68] sm:$0xf]
      %v3783 = vld [vmem:[%s3755 + $0x6c] sm:$0xf]
      %v3784 = vld [vmem:[%s3755 + $0x70] sm:$0xf]
      %v3785 = vld [vmem:[%s3755 + $0x74] sm:$0xf]
      %v3786 = vld [vmem:[%s3755 + $0x78] sm:$0xf]
      %v3787 = vld [vmem:[%s3755 + $0x7c] sm:$0xf]
      %v3788 = vld [vmem:[%s3755 + $0x80] sm:$0xf]
      %v3789 = vld [vmem:[%s3755 + $0x84] sm:$0xf]
      %v3790 = vld [vmem:[%s3755 + $0x88] sm:$0xf]
      %v3791 = vld [vmem:[%s3755 + $0x8c] sm:$0xf]
      %v3792 = vld [vmem:[%s3755 + $0x90] sm:$0xf]
      %v3793 = vld [vmem:[%s3755 + $0x94] sm:$0xf]
      %v3794 = vld [vmem:[%s3755 + $0x98] sm:$0xf]
      %v3795 = vld [vmem:[%s3755 + $0x9c] sm:$0xf]
      %v3796 = vld [vmem:[%s3755 + $0xa0] sm:$0xf]
      %v3797 = vld [vmem:[%s3755 + $0xa4] sm:$0xf]
      %v3798 = vld [vmem:[%s3755 + $0xa8] sm:$0xf]
      %v3799 = vld [vmem:[%s3755 + $0xac] sm:$0xf]
      %v3800 = vld [vmem:[%s3755 + $0xb0] sm:$0xf]
      %v3801 = vld [vmem:[%s3755 + $0xb4] sm:$0xf]
      %v3802 = vld [vmem:[%s3755 + $0xb8] sm:$0xf]
      %v3803 = vld [vmem:[%s3755 + $0xbc] sm:$0xf]
      %v3805 = vshrl.u32 %v3710, 16
      %v3807 = vrot.slane %v3805, 7
      %v3808 = vsel %vm2787, %v3807, %v2820
      %v3810 = vshrl.u32 %v2601, 16
      %v3812 = vrot.slane %v3810, 7
      %v3813 = vsel %vm2787, %v3812, %v2828
      %v3815 = vshrl.u32 %v3738, 16
      %v3817 = vrot.slane %v3815, 7
      %v3819 = vshrl.u32 %v3740, 16
      %v3821 = vrot.slane %v3819, 7
      %v3822 = vshll.u32 %v3740, 16
      %v3824 = vor.u32 %v3821, %v3822
      %v3825 = vsel %vm2787, %v3817, %v3824
      %v3827 = vshrl.u32 %v3742, 16
      %v3829 = vrot.slane %v3827, 7
      %v3830 = vshll.u32 %v3742, 16
      %v3832 = vor.u32 %v3829, %v3830
      %v3833 = vsel %vm2787, %v3821, %v3832
      %v3835 = vshrl.u32 %v3744, 16
      %v3837 = vrot.slane %v3835, 7
      %v3838 = vshll.u32 %v3744, 16
      %v3840 = vor.u32 %v3837, %v3838
      %v3841 = vsel %vm2787, %v3829, %v3840
      %v3843 = vshrl.u32 %v3746, 16
      %v3845 = vrot.slane %v3843, 7
      %v3846 = vshll.u32 %v3746, 16
      %v3848 = vor.u32 %v3845, %v3846
      %v3849 = vsel %vm2787, %v3837, %v3848
      %v3851 = vshrl.u32 %v3748, 16
      %v3853 = vrot.slane %v3851, 7
      %v3854 = vshll.u32 %v3748, 16
      %v3856 = vor.u32 %v3853, %v3854
      %v3857 = vsel %vm2787, %v3845, %v3856
      %v3859 = vshrl.u32 %v3750, 16
      %v3861 = vrot.slane %v3859, 7
      %v3862 = vshll.u32 %v3750, 16
      %v3864 = vor.u32 %v3861, %v3862
      %v3865 = vsel %vm2787, %v3853, %v3864
      %v3867 = vshrl.u32 %v3725, 16
      %v3869 = vrot.slane %v3867, 7
      %v3870 = vshll.u32 %v3725, 16
      %v3872 = vor.u32 %v3869, %v3870
      %v3873 = vsel %vm2787, %v2920, %v3872
      %v3875 = vshrl.u32 %v3752, 16
      %v3877 = vrot.slane %v3875, 7
      %v3878 = vshll.u32 %v3752, 16
      %v3880 = vor.u32 %v3877, %v3878
      %v3881 = vsel %vm2787, %v3861, %v3880
      %v3882 = vrot.slane %v3726, 7
      %v3883 = vor.u32 %v3882, %v3722
      %v3884 = vsel %vm2787, %v2933, %v3883
      %v3886 = vshrl.u32 %v3728, 16
      %v3888 = vrot.slane %v3886, 7
      %v3889 = vshll.u32 %v3728, 16
      %v3891 = vor.u32 %v3888, %v3889
      %v3892 = vsel %vm2787, %v3869, %v3891
      %v3894 = vshrl.u32 %v3754, 16
      %v3896 = vrot.slane %v3894, 7
      %v3897 = vshll.u32 %v3754, 16
      %v3899 = vor.u32 %v3896, %v3897
      %v3900 = vsel %vm2787, %v3877, %v3899
      %v3962 = vunpack.c.l.b16 %v3756
      %v3963 = vunpack.c.l.b16 %v3757
      %v3964 = vunpack.c.l.b16 %v3758
      %v3965 = vunpack.c.l.b16 %v3759
      %v3966 = vunpack.c.l.b16 %v3760
      %v3967 = vunpack.c.l.b16 %v3761
      %v3968 = vunpack.c.l.b16 %v3762
      %v3969 = vunpack.c.l.b16 %v3763
      %v3970 = vunpack.c.l.b16 %v3764
      %v3971 = vunpack.c.l.b16 %v3765
      %v3972 = vunpack.c.l.b16 %v3766
      %v3973 = vunpack.c.l.b16 %v3767
      %v3974 = vunpack.c.l.b16 %v3768
      %v3975 = vunpack.c.l.b16 %v3769
      %v3976 = vunpack.c.l.b16 %v3770
      %v3977 = vunpack.c.l.b16 %v3771
      %v3978 = vunpack.c.l.b16 %v3772
      %v3979 = vunpack.c.l.b16 %v3773
      %v3980 = vunpack.c.l.b16 %v3774
      %v3981 = vunpack.c.l.b16 %v3775
      %v3982 = vunpack.c.l.b16 %v3776
      %v3983 = vunpack.c.l.b16 %v3777
      %v3984 = vunpack.c.l.b16 %v3778
      %v3985 = vunpack.c.l.b16 %v3779
      %v3986 = vunpack.c.l.b16 %v3780
      %v3987 = vunpack.c.l.b16 %v3781
      %v3988 = vunpack.c.l.b16 %v3782
      %v3989 = vunpack.c.l.b16 %v3783
      %v3990 = vunpack.c.l.b16 %v3784
      %v3991 = vunpack.c.l.b16 %v3785
      %v3992 = vunpack.c.l.b16 %v3786
      %v3993 = vunpack.c.l.b16 %v3787
      %v3994 = vunpack.c.l.b16 %v3788
      %v3995 = vunpack.c.l.b16 %v3789
      %v3996 = vunpack.c.l.b16 %v3790
      %v3997 = vunpack.c.l.b16 %v3791
      %v3998 = vunpack.c.l.b16 %v3792
      %v3999 = vunpack.c.l.b16 %v3793
      %v4000 = vunpack.c.l.b16 %v3794
      %v4001 = vunpack.c.l.b16 %v3795
      %v4002 = vunpack.c.l.b16 %v3796
      %v4003 = vunpack.c.l.b16 %v3797
      %v4004 = vunpack.c.l.b16 %v3798
      %v4005 = vunpack.c.l.b16 %v3799
      %v4006 = vunpack.c.l.b16 %v3800
      %v4007 = vunpack.c.l.b16 %v3801
      %v4008 = vunpack.c.l.b16 %v3802
      %v4009 = vunpack.c.l.b16 %v3803
      %v4010 = vpack.c.b16 %v3963, %v3962
      %v4011 = vpack.c.b16 %v3965, %v3964
      %v4012 = vpack.c.b16 %v3967, %v3966
      %v4013 = vpack.c.b16 %v3969, %v3968
      %v4014 = vpack.c.b16 %v3971, %v3970
      %v4015 = vpack.c.b16 %v3973, %v3972
      %v4016 = vpack.c.b16 %v3975, %v3974
      %v4017 = vpack.c.b16 %v3977, %v3976
      %v4018 = vpack.c.b16 %v3979, %v3978
      %v4019 = vpack.c.b16 %v3981, %v3980
      %v4020 = vpack.c.b16 %v3983, %v3982
      %v4021 = vpack.c.b16 %v3985, %v3984
      %v4022 = vpack.c.b16 %v3987, %v3986
      %v4023 = vpack.c.b16 %v3989, %v3988
      %v4024 = vpack.c.b16 %v3991, %v3990
      %v4025 = vpack.c.b16 %v3993, %v3992
      %v4026 = vpack.c.b16 %v3995, %v3994
      %v4027 = vpack.c.b16 %v3997, %v3996
      %v4028 = vpack.c.b16 %v3999, %v3998
      %v4029 = vpack.c.b16 %v4001, %v4000
      %v4030 = vpack.c.b16 %v4003, %v4002
      %v4031 = vpack.c.b16 %v4005, %v4004
      %v4032 = vpack.c.b16 %v4007, %v4006
      %v4033 = vpack.c.b16 %v4009, %v4008
      %4058 = vmatprep.subr.bf16.mxu0 0
      %4059 = vmatpush1.bf16.msra.mxu0 %v4010
      %4060 = vmatprep.subr.bf16.mxu0 0
      %4061 = vmatpush1.bf16.msra.mxu0 %v4011
      %4062 = vmatprep.subr.bf16.mxu0 0
      %4063 = vmatpush1.bf16.msra.mxu0 %v4012
      %4064 = vmatprep.subr.bf16.mxu0 0
      %4065 = vmatpush1.bf16.msra.mxu0 %v4013
      %4066 = vmatprep.subr.bf16.mxu0 0
      %4067 = vmatpush1.bf16.msra.mxu0 %v4014
      %4068 = vmatprep.subr.bf16.mxu0 0
      %4069 = vmatpush1.bf16.msra.mxu0 %v4015
      %4070 = vmatprep.subr.bf16.mxu0 0
      %4071 = vmatpush1.bf16.msra.mxu0 %v4016
      %4072 = vmatprep.subr.bf16.mxu0 0
      %4073 = vmatpush1.bf16.msra.mxu0 %v4017
      %4074 = vmatprep.subr.bf16.mxu0 0
      %4075 = vmatpush1.bf16.msra.mxu0 %v4018
      %4076 = vmatprep.subr.bf16.mxu0 0
      %4077 = vmatpush1.bf16.msra.mxu0 %v4019
      %4078 = vmatprep.subr.bf16.mxu0 0
      %4079 = vmatpush1.bf16.msra.mxu0 %v4020
      %4080 = vmatprep.subr.bf16.mxu0 0
      %4081 = vmatpush1.bf16.msra.mxu0 %v4021
      %4082 = vmatprep.subr.bf16.mxu0 0
      %4083 = vmatpush1.bf16.msra.mxu0 %v4022
      %4084 = vmatprep.subr.bf16.mxu0 0
      %4085 = vmatpush1.bf16.msra.mxu0 %v4023
      %4086 = vmatprep.subr.bf16.mxu0 0
      %4087 = vmatpush1.bf16.msra.mxu0 %v4024
      %4088 = vmatprep.subr.bf16.mxu0 0
      %4089 = vmatpush1.bf16.msra.mxu0 %v4025
      %4090 = vmatprep.mubr.bf16.mxu0 %v3813
      %4091 = vmatmul.mubr.bf16.gmra.mrb[0].mxu0 %v3808
      %v4092 = vpop.f32.mrb[0].mxu0
      %v4093 = vadd.f32 0.0, %v4092
      %v4094 = vpop.f32.mrb[0].mxu0
      %v4095 = vpop.f32.mrb[0].mxu0
      %v4096 = vadd.f32 0.0, %v4095
      %v4097 = vpop.f32.mrb[0].mxu0
      %4098 = vmatprep.mubr.bf16.mxu0 %v2848
      %4099 = vmatmul.mubr.bf16.gmra.mrb[0].mxu0 %v2840
      %v4100 = vpop.f32.mrb[0].mxu0
      %v4101 = vadd.f32 0.0, %v4100
      %v4102 = vpop.f32.mrb[0].mxu0
      %v4103 = vpop.f32.mrb[0].mxu0
      %v4104 = vadd.f32 0.0, %v4103
      %v4105 = vpop.f32.mrb[0].mxu0
      %4106 = vmatprep.mubr.bf16.mxu0 %v2867
      %4107 = vmatmul.mubr.bf16.gmra.mrb[0].mxu0 %v2859
      %v4108 = vpop.f32.mrb[0].mxu0
      %v4109 = vadd.f32 0.0, %v4108
      %v4110 = vpop.f32.mrb[0].mxu0
      %v4111 = vpop.f32.mrb[0].mxu0
      %v4112 = vadd.f32 0.0, %v4111
      %v4113 = vpop.f32.mrb[0].mxu0
      %4114 = vmatprep.mubr.bf16.mxu0 %v2886
      %4115 = vmatmul.mubr.bf16.gmra.mrb[0].mxu0 %v2878
      %v4116 = vpop.f32.mrb[0].mxu0
      %v4117 = vadd.f32 0.0, %v4116
      %v4118 = vpop.f32.mrb[0].mxu0
      %v4119 = vpop.f32.mrb[0].mxu0
      %v4120 = vadd.f32 0.0, %v4119
      %v4121 = vpop.f32.mrb[0].mxu0
      %4122 = vmatprep.mubr.bf16.mxu0 %v2905
      %4123 = vmatmul.mubr.bf16.gmra.mrb[0].mxu0 %v2897
      %v4124 = vpop.f32.mrb[0].mxu0
      %v4125 = vadd.f32 0.0, %v4124
      %v4126 = vpop.f32.mrb[0].mxu0
      %v4127 = vpop.f32.mrb[0].mxu0
      %v4128 = vadd.f32 0.0, %v4127
      %v4129 = vpop.f32.mrb[0].mxu0
      %4130 = vmatprep.mubr.bf16.mxu0 %v2924
      %4131 = vmatmul.mubr.bf16.gmra.mrb[0].mxu0 %v2916
      %v4132 = vpop.f32.mrb[0].mxu0
      %v4133 = vadd.f32 0.0, %v4132
      %v4134 = vpop.f32.mrb[0].mxu0
      %v4135 = vpop.f32.mrb[0].mxu0
      %v4136 = vadd.f32 0.0, %v4135
      %v4137 = vpop.f32.mrb[0].mxu0
      %4138 = vmatprep.mubr.bf16.mxu0 %v3873
      %4139 = vmatmul.mubr.bf16.gmra.mrb[0].mxu0 %v2935
      %v4140 = vpop.f32.mrb[0].mxu0
      %v4141 = vadd.f32 0.0, %v4140
      %v4142 = vpop.f32.mrb[0].mxu0
      %v4143 = vpop.f32.mrb[0].mxu0
      %v4144 = vadd.f32 0.0, %v4143
      %v4145 = vpop.f32.mrb[0].mxu0
      %4146 = vmatprep.mubr.bf16.mxu0 %v3892
      %4147 = vmatmul.mubr.bf16.gmra.mrb[0].mxu0 %v3884
      %v4148 = vpop.f32.mrb[0].mxu0
      %v4149 = vadd.f32 0.0, %v4148
      %v4150 = vpop.f32.mrb[0].mxu0
      %v4151 = vpop.f32.mrb[0].mxu0
      %v4152 = vadd.f32 0.0, %v4151
      %v4153 = vpop.f32.mrb[0].mxu0
      %4154 = vdwg.mxu0
      %4155 = vmatprep.subr.bf16.mxu0 0
      %4156 = vmatpush1.bf16.msra.mxu0 %v4026
      %4157 = vmatprep.subr.bf16.mxu0 0
      %4158 = vmatpush1.bf16.msra.mxu0 %v4027
      %4159 = vmatprep.subr.bf16.mxu0 0
      %4160 = vmatpush1.bf16.msra.mxu0 %v4028
      %4161 = vmatprep.subr.bf16.mxu0 0
      %4162 = vmatpush1.bf16.msra.mxu0 %v4029
      %4163 = vmatprep.subr.bf16.mxu0 0
      %4164 = vmatpush1.bf16.msra.mxu0 %v4030
      %4165 = vmatprep.subr.bf16.mxu0 0
      %4166 = vmatpush1.bf16.msra.mxu0 %v4031
      %4167 = vmatprep.subr.bf16.mxu0 0
      %4168 = vmatpush1.bf16.msra.mxu0 %v4032
      %4169 = vmatprep.subr.bf16.mxu0 0
      %4170 = vmatpush1.bf16.msra.mxu0 %v4033
      %4171 = vmatprep.subr.bf16.mxu0 0
      %4172 = vmatpush1.bf16.msra.mxu0 0
      %4173 = vmatprep.subr.bf16.mxu0 0
      %4174 = vmatpush1.bf16.msra.mxu0 0
      %4175 = vmatprep.subr.bf16.mxu0 0
      %4176 = vmatpush1.bf16.msra.mxu0 0
      %4177 = vmatprep.subr.bf16.mxu0 0
      %4178 = vmatpush1.bf16.msra.mxu0 0
      %4179 = vmatprep.subr.bf16.mxu0 0
      %4180 = vmatpush1.bf16.msra.mxu0 0
      %4181 = vmatprep.subr.bf16.mxu0 0
      %4182 = vmatpush1.bf16.msra.mxu0 0
      %4183 = vmatprep.subr.bf16.mxu0 0
      %4184 = vmatpush1.bf16.msra.mxu0 0
      %4185 = vmatprep.subr.bf16.mxu0 0
      %4186 = vmatpush1.bf16.msra.mxu0 0
      %4187 = vmatprep.mubr.bf16.mxu0 0
      %4188 = vmatmul.mubr.bf16.gmra.mrb[0].mxu0 %v3825
      %v4189 = vpop.f32.mrb[0].mxu0
      %v4190 = vadd.f32 %v4093, %v4189
      %v4191 = vpop.f32.mrb[0].mxu0
      %v4192 = vpop.f32.mrb[0].mxu0
      %v4193 = vadd.f32 %v4096, %v4192
      %v4194 = vpop.f32.mrb[0].mxu0
      %4195 = vmatprep.mubr.bf16.mxu0 0
      %4196 = vmatmul.mubr.bf16.gmra.mrb[0].mxu0 %v3833
      %v4197 = vpop.f32.mrb[0].mxu0
      %v4198 = vadd.f32 %v4101, %v4197
      %v4199 = vpop.f32.mrb[0].mxu0
      %v4200 = vpop.f32.mrb[0].mxu0
      %v4201 = vadd.f32 %v4104, %v4200
      %v4202 = vpop.f32.mrb[0].mxu0
      %4203 = vmatprep.mubr.bf16.mxu0 0
      %4204 = vmatmul.mubr.bf16.gmra.mrb[0].mxu0 %v3841
      %v4205 = vpop.f32.mrb[0].mxu0
      %v4206 = vadd.f32 %v4109, %v4205
      %v4207 = vpop.f32.mrb[0].mxu0
      %v4208 = vpop.f32.mrb[0].mxu0
      %v4209 = vadd.f32 %v4112, %v4208
      %v4210 = vpop.f32.mrb[0].mxu0
      %4211 = vmatprep.mubr.bf16.mxu0 0
      %4212 = vmatmul.mubr.bf16.gmra.mrb[0].mxu0 %v3849
      %v4213 = vpop.f32.mrb[0].mxu0
      %v4214 = vadd.f32 %v4117, %v4213
      %v4215 = vpop.f32.mrb[0].mxu0
      %v4216 = vpop.f32.mrb[0].mxu0
      %v4217 = vadd.f32 %v4120, %v4216
      %v4218 = vpop.f32.mrb[0].mxu0
      %4219 = vmatprep.mubr.bf16.mxu0 0
      %4220 = vmatmul.mubr.bf16.gmra.mrb[0].mxu0 %v3857
      %v4221 = vpop.f32.mrb[0].mxu0
      %v4222 = vadd.f32 %v4125, %v4221
      %v4223 = vpop.f32.mrb[0].mxu0
      %v4224 = vpop.f32.mrb[0].mxu0
      %v4225 = vadd.f32 %v4128, %v4224
      %v4226 = vpop.f32.mrb[0].mxu0
      %4227 = vmatprep.mubr.bf16.mxu0 0
      %4228 = vmatmul.mubr.bf16.gmra.mrb[0].mxu0 %v3865
      %v4229 = vpop.f32.mrb[0].mxu0
      %v4230 = vadd.f32 %v4133, %v4229
      %v4231 = vpop.f32.mrb[0].mxu0
      %v4232 = vpop.f32.mrb[0].mxu0
      %v4233 = vadd.f32 %v4136, %v4232
      %v4234 = vpop.f32.mrb[0].mxu0
      %4235 = vmatprep.mubr.bf16.mxu0 0
      %4236 = vmatmul.mubr.bf16.gmra.mrb[0].mxu0 %v3881
      %v4237 = vpop.f32.mrb[0].mxu0
      %v4238 = vadd.f32 %v4141, %v4237
      %v4239 = vpop.f32.mrb[0].mxu0
      %v4240 = vpop.f32.mrb[0].mxu0
      %v4241 = vadd.f32 %v4144, %v4240
      %v4242 = vpop.f32.mrb[0].mxu0
      %4243 = vmatprep.mubr.bf16.mxu0 0
      %4244 = vmatmul.mubr.bf16.gmra.mrb[0].mxu0 %v3900
      %v4245 = vpop.f32.mrb[0].mxu0
      %v4246 = vadd.f32 %v4149, %v4245
      %v4247 = vpop.f32.mrb[0].mxu0
      %v4248 = vpop.f32.mrb[0].mxu0
      %v4249 = vadd.f32 %v4152, %v4248
      %v4250 = vpop.f32.mrb[0].mxu0
      %4251 = vdwg.mxu0
      %v4252 = vadd.f32 %v3648, %v4190
      %v4253 = vadd.f32 %v3651, %v4193
      %v4254 = vadd.f32 %v3656, %v4198
      %v4255 = vadd.f32 %v3659, %v4201
      %v4256 = vadd.f32 %v3664, %v4206
      %v4257 = vadd.f32 %v3667, %v4209
      %v4258 = vadd.f32 %v3672, %v4214
      %v4259 = vadd.f32 %v3675, %v4217
      %v4260 = vadd.f32 %v3680, %v4222
      %v4261 = vadd.f32 %v3683, %v4225
      %v4262 = vadd.f32 %v3688, %v4230
      %v4263 = vadd.f32 %v3691, %v4233
      %v4264 = vadd.f32 %v3696, %v4238
      %v4265 = vadd.f32 %v3699, %v4241
      %v4266 = vadd.f32 %v3704, %v4246
      %v4267 = vadd.f32 %v3707, %v4249
      %v4268 = vld [vmem:[%s5] sm:$0x1]
      %v4270 = vlaneseq
      %v4271 = vshrl.u32 %v4270, 7
      %v4272 = vsub.s32 0, %v4271
      %v4273 = vrot.slane %v4268, %v4272
      %v4275 = vadd.f32 %v4252, %v4273
      %v4276 = vadd.f32 %v4253, %v4273
      %v4277 = vadd.f32 %v4254, %v4273
      %v4278 = vadd.f32 %v4255, %v4273
      %v4279 = vadd.f32 %v4256, %v4273
      %v4280 = vadd.f32 %v4257, %v4273
      %v4281 = vadd.f32 %v4258, %v4273
      %v4282 = vadd.f32 %v4259, %v4273
      %v4283 = vadd.f32 %v4260, %v4273
      %v4284 = vadd.f32 %v4261, %v4273
      %v4285 = vadd.f32 %v4262, %v4273
      %v4286 = vadd.f32 %v4263, %v4273
      %v4287 = vadd.f32 %v4264, %v4273
      %v4288 = vadd.f32 %v4265, %v4273
      %v4289 = vadd.f32 %v4266, %v4273
      %v4290 = vadd.f32 %v4267, %v4273
      %v4291 = vld [vmem:[%s247 + $0x10] sm:$0xf]
      %v4292 = vld [vmem:[%s247 + $0x14] sm:$0xf]
      %v4293 = vld [vmem:[%s247 + $0x18] sm:$0xf]
      %v4294 = vld [vmem:[%s247 + $0x1c] sm:$0xf]
      %v4295 = vld [vmem:[%s247 + $0x20] sm:$0xf]
      %v4296 = vld [vmem:[%s247 + $0x24] sm:$0xf]
      %v4297 = vld [vmem:[%s247 + $0x28] sm:$0xf]
      %v4298 = vld [vmem:[%s247 + $0x2c] sm:$0xf]
      %v4299 = vld [vmem:[%s247 + $0x30] sm:$0xf]
      %v4300 = vld [vmem:[%s247 + $0x34] sm:$0xf]
      %v4301 = vld [vmem:[%s247 + $0x38] sm:$0xf]
      %v4302 = vld [vmem:[%s247 + $0x3c] sm:$0xf]
      %v4303 = vld [vmem:[%s247 + $0x40] sm:$0xf]
      %v4304 = vld [vmem:[%s247 + $0x44] sm:$0xf]
      %v4305 = vld [vmem:[%s247 + $0x48] sm:$0xf]
      %v4306 = vld [vmem:[%s247 + $0x4c] sm:$0xf]
      %v4307 = vunpack.c.l.bf16 %v4291
      %v4308 = vunpack.c.l.bf16 %v4292
      %v4309 = vunpack.c.l.bf16 %v4293
      %v4310 = vunpack.c.l.bf16 %v4294
      %v4311 = vunpack.c.l.bf16 %v4295
      %v4312 = vunpack.c.l.bf16 %v4296
      %v4313 = vunpack.c.l.bf16 %v4297
      %v4314 = vunpack.c.l.bf16 %v4298
      %v4315 = vunpack.c.l.bf16 %v4299
      %v4316 = vunpack.c.l.bf16 %v4300
      %v4317 = vunpack.c.l.bf16 %v4301
      %v4318 = vunpack.c.l.bf16 %v4302
      %v4319 = vunpack.c.l.bf16 %v4303
      %v4320 = vunpack.c.l.bf16 %v4304
      %v4321 = vunpack.c.l.bf16 %v4305
      %v4322 = vunpack.c.l.bf16 %v4306
      %v4323 = vadd.f32 %v4275, %v4307
      %v4324 = vadd.f32 %v4276, %v4308
      %v4325 = vadd.f32 %v4277, %v4309
      %v4326 = vadd.f32 %v4278, %v4310
      %v4327 = vadd.f32 %v4279, %v4311
      %v4328 = vadd.f32 %v4280, %v4312
      %v4329 = vadd.f32 %v4281, %v4313
      %v4330 = vadd.f32 %v4282, %v4314
      %v4331 = vadd.f32 %v4283, %v4315
      %v4332 = vadd.f32 %v4284, %v4316
      %v4333 = vadd.f32 %v4285, %v4317
      %v4334 = vadd.f32 %v4286, %v4318
      %v4335 = vadd.f32 %v4287, %v4319
      %v4336 = vadd.f32 %v4288, %v4320
      %v4337 = vadd.f32 %v4289, %v4321
      %v4338 = vadd.f32 %v4290, %v4322
      %v4339 = vmax.f32 %v4323, 0.0
      %v4340 = vmax.f32 %v4324, 0.0
      %v4341 = vmax.f32 %v4325, 0.0
      %v4342 = vmax.f32 %v4326, 0.0
      %v4343 = vmax.f32 %v4327, 0.0
      %v4344 = vmax.f32 %v4328, 0.0
      %v4345 = vmax.f32 %v4329, 0.0
      %v4346 = vmax.f32 %v4330, 0.0
      %v4347 = vmax.f32 %v4331, 0.0
      %v4348 = vmax.f32 %v4332, 0.0
      %v4349 = vmax.f32 %v4333, 0.0
      %v4350 = vmax.f32 %v4334, 0.0
      %v4351 = vmax.f32 %v4335, 0.0
      %v4352 = vmax.f32 %v4336, 0.0
      %v4353 = vmax.f32 %v4337, 0.0
      %v4354 = vmax.f32 %v4338, 0.0
      %4355 = vst [vmem:[%s253] sm:$0xff] %v4339
      %4356 = vst [vmem:[%s253 + $0x8] sm:$0xff] %v4340
      %4357 = vst [vmem:[%s253 + $0x10] sm:$0xff] %v4341
      %4358 = vst [vmem:[%s253 + $0x18] sm:$0xff] %v4342
      %4359 = vst [vmem:[%s253 + $0x20] sm:$0xff] %v4343
      %4360 = vst [vmem:[%s253 + $0x28] sm:$0xff] %v4344
      %4361 = vst [vmem:[%s253 + $0x30] sm:$0xff] %v4345
      %4362 = vst [vmem:[%s253 + $0x38] sm:$0xff] %v4346
      %4363 = vst [vmem:[%s253 + $0x40] sm:$0xff] %v4347
      %4364 = vst [vmem:[%s253 + $0x48] sm:$0xff] %v4348
      %4365 = vst [vmem:[%s253 + $0x50] sm:$0xff] %v4349
      %4366 = vst [vmem:[%s253 + $0x58] sm:$0xff] %v4350
      %4367 = vst [vmem:[%s253 + $0x60] sm:$0xff] %v4351
      %4368 = vst [vmem:[%s253 + $0x68] sm:$0xff] %v4352
      %4369 = vst [vmem:[%s253 + $0x70] sm:$0xff] %v4353
      %4370 = vst [vmem:[%s253 + $0x78] sm:$0xff] %v4354
      %s4371 = smul.u32 16, %s17
      %p4372 = scmp.lt.s32.totalorder %s4371, 31
      %s4373 = scalar_select %p4372, %s4371, 31
      %s4374 = smul.addr %s4373, 8
      %s4375 = scalar_lea.vmem %s6, %s4374
      // Predicated region
      $region45: #{basic_block.1} parent=43 // pred_check
        %p4376 = pneg %p166
      $region46: #{basic_block.1} parent=43 // pred_check_branch
        %4378 = sbr.rel (%p4376) target = $region48
      $region47: #{basic_block.1} parent=43 // pred_region
        %s4379 = smul.u32 16, %s17
      $region48: #{basic_block.1} parent=43 // pred_fallthru
        _
    $region44: #{basic_block.1} parent=5 // pred_fallthru
      _
    %p4380 = scmp.le.s32.totalorder 2, %s12
    // Predicated region
    $region49: #{basic_block.1} parent=5 // pred_check
      %p4381 = pneg %p4380
    $region50: #{basic_block.1} parent=5 // pred_check_branch
      %4383 = sbr.rel (%p4381) target = $region52
    $region51: #{basic_block.1} parent=5 // pred_region
      %s4384 = ssub.s32 %s12, 2
      // Predicated region
      $region53: #{basic_block.1} parent=51 // pred_check
        %p4385 = pneg %p172
      $region54: #{basic_block.1} parent=51 // pred_check_branch
        %4387 = sbr.rel (%p4385) target = $region56
      $region55: #{basic_block.1} parent=51 // pred_region
        %s4388 = smul.u32 16, %s18
        %p4389 = scmp.lt.s32.totalorder %s4388, 31
        %s4390 = scalar_select %p4389, %s4388, 31
        %s4391 = smul.addr %s4390, 8
        %s4392 = scalar_lea.vmem %s6, %s4391
      $region56: #{basic_block.1} parent=51 // pred_fallthru
        _
    $region52: #{basic_block.1} parent=5 // pred_fallthru
      _
  $region6: #{basic_block.1} parent=0 // loop_footer
    %s16 = sadd.s32 1, %s12
  $region7: #{basic_block.1} parent=0 // loop_footer_branch
    %11 = sbr.rel target = $region3
  $region8: #{basic_block.1} parent=0 // loop_exit
    _

</llo_original>
